<compile_context>
chip_gen: v5e
topology: v5e:2x2
jax: 0.10.0
libtpu: 0.0.40
codegen_flags: <defaults>
</compile_context>

<pallas_src>
import functools
import math

import jax
import jax.numpy as jnp
from jax import lax
from jax.experimental import pallas as pl
from jax.experimental.pallas import tpu as pltpu


def _round_up(x, m):
  return (x + m - 1) // m * m


def _convnext_kernel(x_hbm, wdw_ref, bdw_ref, gamma_ref, beta_ref,
                     w1_ref, b1_ref, w2_ref, b2_ref, ls_ref,
                     o_ref, xtile, dma_sem, *,
                     c_real, c_pad, th, w, approx_gelu):
  # x_hbm  : [B, H+2, W+2, Cp]  spatially+channel padded input, left in HBM
  # wdw    : [9, Cp]   depthwise 3x3 weights, wdw[dy*3+dx, c]
  # bdw/gamma/beta/b2/ls : [1, Cp];  w1: [Cp, Hdp] bf16;  b1: [1, Hdp]
  # w2     : [Hdp, Cp] bf16
  # o_ref  : [th*w, Cp]  lane/sublane-dense output tile
  # xtile  : VMEM scratch [2, th+2, w+2, Cp]  (double-buffered halo band)
  b = pl.program_id(0)
  r = pl.program_id(1)
  n_rows = pl.num_programs(1)
  slot = r & 1

  def band_copy(row_block, buf_slot):
    return pltpu.make_async_copy(
        x_hbm.at[b, pl.ds(row_block * th, th + 2), :, :],
        xtile.at[buf_slot], dma_sem.at[buf_slot])

  # First band of this image: nothing prefetched it, start it now.
  @pl.when(r == 0)
  def _():
    band_copy(0, 0).start()

  # Prefetch the next band of the same image into the other slot.
  @pl.when(r + 1 < n_rows)
  def _():
    band_copy(r + 1, 1 - slot).start()

  band_copy(r, slot).wait()
  xt = xtile.at[slot]                                # [th+2, w+2, Cp] f32 view

  # ---- depthwise 3x3 conv (cross-correlation; zero padding pre-applied) ----
  # Build the three dx-shifted bands once; dy shifts in the tap loop are
  # leading-axis slices (cheap, no sublane crossing).
  # TODO(synk): route the dx shifts through pltpu.roll (XLU) once roll on odd
  # sublane widths is vetted; slices are kept here for guaranteed lowering.
  x0 = xt[:, 0:w, :]
  x1 = xt[:, 1:w + 1, :]
  x2 = xt[:, 2:w + 2, :]
  bands = (x0, x1, x2)
  acc = x0[0:th] * wdw_ref[0, :]
  for k in range(1, 9):
    dy, dx = divmod(k, 3)
    acc = acc + bands[dx][dy:dy + th] * wdw_ref[k, :]
  y = (acc + bdw_ref[0, :]).reshape(th * w, c_pad)
  resid = x1[1:th + 1].reshape(th * w, c_pad)        # residual = band interior

  # ---- ChannelNorm: LayerNorm over the real C channels ----
  # Padded lanes of y are exactly 0 so sums over Cp equal sums over C; the
  # centered sum-of-squares gets a (Cp - C) * mean^2 correction.
  inv_c = 1.0 / c_real
  mean = jnp.sum(y, axis=-1, keepdims=True) * inv_c
  cent = y - mean
  var = (jnp.sum(cent * cent, axis=-1, keepdims=True)
         - (c_pad - c_real) * (mean * mean)) * inv_c
  yn = cent * lax.rsqrt(jnp.maximum(var, 0.0) + 1e-6)
  yn = yn * gamma_ref[0, :] + beta_ref[0, :]

  # ---- pointwise expand (1x1 conv == matmul), bf16 in / f32 accumulate ----
  h = jnp.dot(yn.astype(jnp.bfloat16), w1_ref[...],
              preferred_element_type=jnp.float32) + b1_ref[0, :]

  # ---- GELU ----
  if approx_gelu:
    # tanh formulation: the transcendental goes to the EUP slot instead of an
    # ~20-op erf polynomial on the saturated VALU (small drift vs exact erf).
    h = 0.5 * h * (1.0 + jnp.tanh(0.7978845608028654
                                  * (h + 0.044715 * (h * h * h))))
  else:
    # exact (erf) GELU -- matches torch nn.GELU default.
    h = 0.5 * h * (1.0 + lax.erf(h * (1.0 / math.sqrt(2.0))))

  # ---- pointwise reduce ----
  z = jnp.dot(h.astype(jnp.bfloat16), w2_ref[...],
              preferred_element_type=jnp.float32) + b2_ref[0, :]

  # ---- LayerScale + residual, lane/sublane-dense 2D store ----
  o_ref[...] = resid + z * ls_ref[0, :]


def _vmem_limit_bytes():
  """Generation-aware VMEM cap (v5e/v6e: 128 MiB phys, v7x: 64 MiB)."""
  try:
    cap = int(pltpu.get_tpu_info().vmem_capacity_bytes)
  except Exception:
    cap = 64 << 20
  return int(min((cap * 3) // 4, 100 << 20))


def _pick_rows_per_tile(H, W, hdp, cp, weight_bytes, budget_bytes):
  """Largest row count dividing H (with (TH*W)%8==0) whose working set fits."""
  # Per-row bytes: 2-slot input band + double-buffered f32 output block +
  # conv temporaries + normed f32/bf16 copies + hidden (f32 + bf16).
  per_row = W * (cp * 56 + hdp * 6)
  fixed = weight_bytes + 2 * 2 * (W + 2) * cp * 4 + (2 << 20)
  avail = max(budget_bytes - fixed, per_row)
  max_rows = max(1, avail // per_row)
  best = None
  for cand in range(1, H + 1):
    if H % cand != 0 or cand > max_rows:
      continue
    if (cand * W) % 8 != 0 and cand != H:
      continue   # output block last-two dims must be (8,128)-friendly or full
    best = cand
  if best is None:
    for cand in range(1, H + 1):
      if H % cand == 0 and ((cand * W) % 8 == 0 or cand == H):
        best = cand
        break
  return best if best is not None else H


def convnext_block(x_nchw, params, rows_per_tile=None, approximate_gelu=True):
  """x_nchw: [B, C, H, W] float32 (PyTorch layout). Returns [B, C, H, W]."""
  B, C, H, W = x_nchw.shape
  Hd = params["w1"].shape[1]
  Cp = _round_up(C, 128)
  Hdp = _round_up(Hd, 128)

  # glue: NCHW -> NHWC, one padded copy (1-px spatial halo + channel pad).
  # TODO(synk): when blocks are chained, keep this padded-NHWC layout between
  # blocks (and optionally stream it as bf16 on v5e) instead of re-padding /
  # transposing per block.
  x = jnp.transpose(x_nchw, (0, 2, 3, 1)).astype(jnp.float32)       # [B,H,W,C]
  xpad = jnp.pad(x, ((0, 0), (1, 1), (1, 1), (0, Cp - C)))          # [B,H+2,W+2,Cp]

  def pad_last(a, target):
    return jnp.pad(a, [(0, 0)] * (a.ndim - 1) + [(0, target - a.shape[-1])])

  w_dw = pad_last(params["w_dw"], Cp)
  b_dw = pad_last(params["b_dw"], Cp)
  gamma = pad_last(params["gamma"], Cp)
  beta = pad_last(params["beta"], Cp)
  b2 = pad_last(params["b2"], Cp)
  ls = pad_last(params["ls"], Cp)
  b1 = pad_last(params["b1"], Hdp)
  w1 = jnp.pad(params["w1"], ((0, Cp - C), (0, Hdp - Hd))).astype(jnp.bfloat16)
  w2 = jnp.pad(params["w2"], ((0, Hdp - Hd), (0, Cp - C))).astype(jnp.bfloat16)

  vmem_limit = _vmem_limit_bytes()
  weight_bytes = (w1.size + w2.size) * 2 + (w_dw.size + 6 * Cp + Hdp) * 4

  if rows_per_tile is None:
    rows_per_tile = _pick_rows_per_tile(H, W, Hdp, Cp, weight_bytes,
                                        int(vmem_limit * 0.9))
  TH = int(rows_per_tile)
  assert H % TH == 0, "rows_per_tile must divide H"
  assert (TH * W) % 8 == 0 or TH == H, "TH*W must be a multiple of 8"
  R = H // TH
  # TODO(synk): for tiny spatial stages (H*W < 256) fold B into the matmul M
  # dimension (several images per grid step) instead of one image per step.

  kernel = functools.partial(_convnext_kernel, c_real=float(C), c_pad=Cp,
                             th=TH, w=W, approx_gelu=approximate_gelu)

  flops = 2 * 2 * B * H * W * Cp * Hdp + 2 * 9 * B * H * W * Cp
  bytes_accessed = (xpad.size + B * H * W * Cp) * 4 + (w1.size + w2.size) * 2

  def _const(shape, resident=False):
    zeros = (0,) * len(shape)
    index_map = lambda b, r: zeros
    if resident:
      return pl.BlockSpec(shape, index_map, pipeline_mode=pl.Buffered(1))
    return pl.BlockSpec(shape, index_map)

  def _run(resident_weights):
    grid_spec = pltpu.PrefetchScalarGridSpec(
        num_scalar_prefetch=0,
        grid=(B, R),
        in_specs=[
            pl.BlockSpec(memory_space=pl.ANY),          # padded input in HBM
            _const((9, Cp)),                            # w_dw
            _const((1, Cp)),                            # b_dw
            _const((1, Cp)),                            # gamma
            _const((1, Cp)),                            # beta
            _const((Cp, Hdp), resident=resident_weights),   # w1 (bf16)
            _const((1, Hdp)),                           # b1
            _const((Hdp, Cp), resident=resident_weights),   # w2 (bf16)
            _const((1, Cp)),                            # b2
            _const((1, Cp)),                            # layer scale
        ],
        out_specs=pl.BlockSpec((None, TH * W, Cp), lambda b, r: (b, r, 0)),
        scratch_shapes=[
            pltpu.VMEM((2, TH + 2, W + 2, Cp), jnp.float32),
            pltpu.SemaphoreType.DMA((2,)),
        ],
    )
    return pl.pallas_call(
        kernel,
        out_shape=jax.ShapeDtypeStruct((B, H * W, Cp), jnp.float32),
        grid_spec=grid_spec,
        compiler_params=pltpu.CompilerParams(
            # Batch axis parallel (both TensorCores on v7x); the row axis must
            # stay in-order on one core because of the band-prefetch chain.
            dimension_semantics=("parallel", "arbitrary"),
            vmem_limit_bytes=int(vmem_limit)),
        cost_estimate=pl.CostEstimate(
            flops=flops,
            transcendentals=B * H * W * Hdp,
            bytes_accessed=bytes_accessed),
    )(xpad, w_dw, b_dw, gamma, beta, w1, b1, w2, b2, ls)

  try:
    out = _run(True)
  except Exception:
    # pl.Buffered(1) (single resident buffer for the constant weights) is a
    # pure VMEM optimization; fall back to default double-buffering if this
    # JAX/Mosaic version rejects buffer_count=1.
    out = _run(False)

  out = out[..., :C].reshape(B, H, W, C)            # drop channel padding
  return jnp.transpose(out, (0, 3, 1, 2))           # NHWC -> NCHW


def convnext_block_ref(x_nchw, params):
  """Pure-JAX f32 reference (exact-erf GELU, same math as the PyTorch module)."""
  x = jnp.transpose(x_nchw, (0, 2, 3, 1)).astype(jnp.float32)
  B, H, W, C = x.shape
  xpad = jnp.pad(x, ((0, 0), (1, 1), (1, 1), (0, 0)))
  acc = jnp.zeros_like(x)
  for dy in range(3):
    for dx in range(3):
      acc = acc + xpad[:, dy:dy + H, dx:dx + W, :] * params["w_dw"][dy * 3 + dx]
  y = acc + params["b_dw"][0]
  mean = jnp.mean(y, -1, keepdims=True)
  var = jnp.mean((y - mean) ** 2, -1, keepdims=True)
  y = (y - mean) * lax.rsqrt(var + 1e-6) * params["gamma"][0] + params["beta"][0]
  h = jnp.einsum("bhwc,cd->bhwd", y, params["w1"]) + params["b1"][0]
  h = 0.5 * h * (1.0 + lax.erf(h / math.sqrt(2.0)))
  z = jnp.einsum("bhwd,dc->bhwc", h, params["w2"]) + params["b2"][0]
  z = z * params["ls"][0]
  return jnp.transpose(x + z, (0, 3, 1, 2))


def init_params(key, dim, expansion_ratio=4, layer_scale_init=1e-6):
  hidden = dim * expansion_ratio
  keys = jax.random.split(key, 8)
  return {
      # depthwise conv weight [dim,1,3,3] flattened to [9, dim] (dy*3+dx major)
      "w_dw": 0.1 * jax.random.normal(keys[0], (9, dim), jnp.float32),
      "b_dw": 0.1 * jax.random.normal(keys[1], (1, dim), jnp.float32),
      # ChannelNorm (LayerNorm over channels) affine
      "gamma": 1.0 + 0.1 * jax.random.normal(keys[2], (1, dim), jnp.float32),
      "beta": 0.1 * jax.random.normal(keys[3], (1, dim), jnp.float32),
      # pointwise expand: torch weight [hidden, dim, 1, 1] -> [dim, hidden]
      "w1": 0.1 * jax.random.normal(keys[4], (dim, hidden), jnp.float32),
      "b1": 0.1 * jax.random.normal(keys[5], (1, hidden), jnp.float32),
      # pointwise reduce: torch weight [dim, hidden, 1, 1] -> [hidden, dim]
      "w2": 0.1 * jax.random.normal(keys[6], (hidden, dim), jnp.float32),
      "b2": 0.1 * jax.random.normal(keys[7], (1, dim), jnp.float32),
      "ls": layer_scale_init * jnp.ones((1, dim), jnp.float32),
  }


if __name__ == "__main__":
  key = jax.random.PRNGKey(0)
  k_x, k_p = jax.random.split(key)

  B, dim, H, W = 2, 8, 16, 16
  x = jax.random.normal(k_x, (B, dim, H, W), jnp.float32)   # NCHW like PyTorch
  # layer_scale_init=1.0 (a parameter value) so the branch is actually tested.
  params = init_params(k_p, dim, layer_scale_init=1.0)

  ref = convnext_block_ref(x, params)

  # Default fast path (tanh GELU on the EUP); rows_per_tile=8 -> 2 row bands
  # per image, exercising the halo'd double-buffered band pipeline.
  out = jax.block_until_ready(convnext_block(x, params, rows_per_tile=8))
  assert out.shape == (B, dim, H, W)
  err = float(jnp.max(jnp.abs(out - ref)))
  # bf16 matmul operands (f32 accumulate) + tanh-GELU drift => loose tolerance.
  assert err < 3e-2, err

  # Exact-erf GELU path (matches torch nn.GELU up to bf16 matmul error).
  out_exact = jax.block_until_ready(
      convnext_block(x, params, rows_per_tile=8, approximate_gelu=False))
  err_exact = float(jnp.max(jnp.abs(out_exact - ref)))
  assert err_exact < 3e-2, err_exact

  print("KERNEL_OK")
</pallas_src>

<mosaic_0001>
module attributes {stable_mosaic.version = 11 : i64} {
  func.func @_convnext_kernel(%arg0: i32, %arg1: i32, %arg2: memref<2x18x18x128xf32, #tpu.memory_space<any>>, %arg3: memref<9x128xf32, #tpu.memory_space<vmem>>, %arg4: memref<1x128xf32, #tpu.memory_space<vmem>>, %arg5: memref<1x128xf32, #tpu.memory_space<vmem>>, %arg6: memref<1x128xf32, #tpu.memory_space<vmem>>, %arg7: memref<128x128xbf16, #tpu.memory_space<vmem>>, %arg8: memref<1x128xf32, #tpu.memory_space<vmem>>, %arg9: memref<128x128xbf16, #tpu.memory_space<vmem>>, %arg10: memref<1x128xf32, #tpu.memory_space<vmem>>, %arg11: memref<1x128xf32, #tpu.memory_space<vmem>>, %arg12: memref<1x128x128xf32, #tpu.memory_space<vmem>>, %arg13: memref<2x10x18x128xf32, #tpu.memory_space<vmem>>, %arg14: memref<2x!tpu.dma_semaphore, #tpu.memory_space<semaphore_mem>>) attributes {dimension_semantics = [#tpu.dimension_semantics<parallel>, #tpu.dimension_semantics<arbitrary>], iteration_bounds = array<i64: 2, 2>, scalar_prefetch = 0 : i64, scratch_operands = 2 : i64, tpu.core_type = #tpu.core_type<tc>, window_params = [{}, {pipeline_mode = #tpu.pipeline_mode<synchronous>, transform_indices = @transform_1, window_bounds = array<i64: 9, 128>}, {pipeline_mode = #tpu.pipeline_mode<synchronous>, transform_indices = @transform_2, window_bounds = array<i64: 1, 128>}, {pipeline_mode = #tpu.pipeline_mode<synchronous>, transform_indices = @transform_3, window_bounds = array<i64: 1, 128>}, {pipeline_mode = #tpu.pipeline_mode<synchronous>, transform_indices = @transform_4, window_bounds = array<i64: 1, 128>}, {pipeline_mode = #tpu.pipeline_mode<synchronous>, transform_indices = @transform_5, window_bounds = array<i64: 128, 128>}, {pipeline_mode = #tpu.pipeline_mode<synchronous>, transform_indices = @transform_6, window_bounds = array<i64: 1, 128>}, {pipeline_mode = #tpu.pipeline_mode<synchronous>, transform_indices = @transform_7, window_bounds = array<i64: 128, 128>}, {pipeline_mode = #tpu.pipeline_mode<synchronous>, transform_indices = @transform_8, window_bounds = array<i64: 1, 128>}, {pipeline_mode = #tpu.pipeline_mode<synchronous>, transform_indices = @transform_9, window_bounds = array<i64: 1, 128>}, {transform_indices = @transform_10, window_bounds = array<i64: 1, 128, 128>}]} {
    %c1_i32 = arith.constant 1 : i32
    %0 = arith.andi %arg1, %c1_i32 : i32
    %c0_i32 = arith.constant 0 : i32
    %1 = arith.cmpi eq, %arg1, %c0_i32 : i32
    %2 = arith.extui %1 : i1 to i32
    %c0_i32_0 = arith.constant 0 : i32
    %3 = arith.cmpi ne, %2, %c0_i32_0 : i32
    scf.if %3 {
      %c0_i32_66 = arith.constant 0 : i32
      %c0_i32_67 = arith.constant 0 : i32
      %c0_i32_68 = arith.constant 0 : i32
      %c0_i32_69 = arith.constant 0 : i32
      %c0_i32_70 = arith.constant 0 : i32
      %164 = tpu.memref_slice %arg2[%arg0, %c0_i32_68, %c0_i32_69, %c0_i32_70] : memref<2x18x18x128xf32, #tpu.memory_space<any>> -> memref<1x10x18x128xf32, #tpu.memory_space<any>>
      %165 = tpu.memref_squeeze %164 : memref<1x10x18x128xf32, #tpu.memory_space<any>> -> memref<10x18x128xf32, #tpu.memory_space<any>>
      %c0_i32_71 = arith.constant 0 : i32
      %c0_i32_72 = arith.constant 0 : i32
      %c0_i32_73 = arith.constant 0 : i32
      %166 = tpu.memref_slice %arg13[%c0_i32_66, %c0_i32_71, %c0_i32_72, %c0_i32_73] : memref<2x10x18x128xf32, #tpu.memory_space<vmem>> -> memref<1x10x18x128xf32, #tpu.memory_space<vmem>>
      %167 = tpu.memref_squeeze %166 : memref<1x10x18x128xf32, #tpu.memory_space<vmem>> -> memref<10x18x128xf32, #tpu.memory_space<vmem>>
      %168 = tpu.memref_slice %arg14[%c0_i32_67] : memref<2x!tpu.dma_semaphore, #tpu.memory_space<semaphore_mem>> -> memref<1x!tpu.dma_semaphore, #tpu.memory_space<semaphore_mem>>
      %169 = tpu.memref_squeeze %168 : memref<1x!tpu.dma_semaphore, #tpu.memory_space<semaphore_mem>> -> memref<!tpu.dma_semaphore, #tpu.memory_space<semaphore_mem>>
      tpu.enqueue_dma source(%165 : memref<10x18x128xf32, #tpu.memory_space<any>>) target(%167 : memref<10x18x128xf32, #tpu.memory_space<vmem>>) target_semaphore(%169 : memref<!tpu.dma_semaphore, #tpu.memory_space<semaphore_mem>>)
    } else {
    }
    %c1_i32_1 = arith.constant 1 : i32
    %4 = arith.addi %arg1, %c1_i32_1 : i32
    %c2_i32 = arith.constant 2 : i32
    %5 = arith.cmpi slt, %4, %c2_i32 : i32
    %6 = arith.extui %5 : i1 to i32
    %c0_i32_2 = arith.constant 0 : i32
    %7 = arith.cmpi ne, %6, %c0_i32_2 : i32
    scf.if %7 {
      %c1_i32_66 = arith.constant 1 : i32
      %164 = arith.addi %arg1, %c1_i32_66 : i32
      %c1_i32_67 = arith.constant 1 : i32
      %165 = arith.subi %c1_i32_67, %0 : i32
      %c8_i32_68 = arith.constant 8 : i32
      %166 = arith.muli %164, %c8_i32_68 : i32
      %c0_i32_69 = arith.constant 0 : i32
      %c0_i32_70 = arith.constant 0 : i32
      %167 = tpu.memref_slice %arg2[%arg0, %166, %c0_i32_69, %c0_i32_70] : memref<2x18x18x128xf32, #tpu.memory_space<any>> -> memref<1x10x18x128xf32, #tpu.memory_space<any>>
      %168 = tpu.memref_squeeze %167 : memref<1x10x18x128xf32, #tpu.memory_space<any>> -> memref<10x18x128xf32, #tpu.memory_space<any>>
      %c0_i32_71 = arith.constant 0 : i32
      %c0_i32_72 = arith.constant 0 : i32
      %c0_i32_73 = arith.constant 0 : i32
      %169 = tpu.memref_slice %arg13[%165, %c0_i32_71, %c0_i32_72, %c0_i32_73] : memref<2x10x18x128xf32, #tpu.memory_space<vmem>> -> memref<1x10x18x128xf32, #tpu.memory_space<vmem>>
      %170 = tpu.memref_squeeze %169 : memref<1x10x18x128xf32, #tpu.memory_space<vmem>> -> memref<10x18x128xf32, #tpu.memory_space<vmem>>
      %171 = tpu.memref_slice %arg14[%165] : memref<2x!tpu.dma_semaphore, #tpu.memory_space<semaphore_mem>> -> memref<1x!tpu.dma_semaphore, #tpu.memory_space<semaphore_mem>>
      %172 = tpu.memref_squeeze %171 : memref<1x!tpu.dma_semaphore, #tpu.memory_space<semaphore_mem>> -> memref<!tpu.dma_semaphore, #tpu.memory_space<semaphore_mem>>
      tpu.enqueue_dma source(%168 : memref<10x18x128xf32, #tpu.memory_space<any>>) target(%170 : memref<10x18x128xf32, #tpu.memory_space<vmem>>) target_semaphore(%172 : memref<!tpu.dma_semaphore, #tpu.memory_space<semaphore_mem>>)
    } else {
    }
    %c8_i32 = arith.constant 8 : i32
    %8 = arith.muli %arg1, %c8_i32 : i32
    %c0_i32_3 = arith.constant 0 : i32
    %c0_i32_4 = arith.constant 0 : i32
    %9 = tpu.memref_slice %arg2[%arg0, %8, %c0_i32_3, %c0_i32_4] : memref<2x18x18x128xf32, #tpu.memory_space<any>> -> memref<1x10x18x128xf32, #tpu.memory_space<any>>
    %10 = tpu.memref_squeeze %9 : memref<1x10x18x128xf32, #tpu.memory_space<any>> -> memref<10x18x128xf32, #tpu.memory_space<any>>
    %c0_i32_5 = arith.constant 0 : i32
    %c0_i32_6 = arith.constant 0 : i32
    %c0_i32_7 = arith.constant 0 : i32
    %11 = tpu.memref_slice %arg13[%0, %c0_i32_5, %c0_i32_6, %c0_i32_7] : memref<2x10x18x128xf32, #tpu.memory_space<vmem>> -> memref<1x10x18x128xf32, #tpu.memory_space<vmem>>
    %12 = tpu.memref_squeeze %11 : memref<1x10x18x128xf32, #tpu.memory_space<vmem>> -> memref<10x18x128xf32, #tpu.memory_space<vmem>>
    %13 = tpu.memref_slice %arg14[%0] : memref<2x!tpu.dma_semaphore, #tpu.memory_space<semaphore_mem>> -> memref<1x!tpu.dma_semaphore, #tpu.memory_space<semaphore_mem>>
    %14 = tpu.memref_squeeze %13 : memref<1x!tpu.dma_semaphore, #tpu.memory_space<semaphore_mem>> -> memref<!tpu.dma_semaphore, #tpu.memory_space<semaphore_mem>>
    tpu.wait_dma2 semaphore(%14 : memref<!tpu.dma_semaphore, #tpu.memory_space<semaphore_mem>>) src(%10 : memref<10x18x128xf32, #tpu.memory_space<any>>) dst(%12 : memref<10x18x128xf32, #tpu.memory_space<vmem>>)
    %c0_i32_8 = arith.constant 0 : i32
    %c0_i32_9 = arith.constant 0 : i32
    %c0_i32_10 = arith.constant 0 : i32
    %15 = tpu.memref_slice %arg13[%0, %c0_i32_8, %c0_i32_9, %c0_i32_10] : memref<2x10x18x128xf32, #tpu.memory_space<vmem>> -> memref<1x10x18x128xf32, #tpu.memory_space<vmem>>
    %16 = tpu.memref_squeeze %15 : memref<1x10x18x128xf32, #tpu.memory_space<vmem>> -> memref<10x18x128xf32, #tpu.memory_space<vmem>>
    %c0 = arith.constant 0 : index
    %c0_11 = arith.constant 0 : index
    %c0_12 = arith.constant 0 : index
    %17 = vector.load %16[%c0, %c0_11, %c0_12] : memref<10x18x128xf32, #tpu.memory_space<vmem>>, vector<10x16x128xf32>
    %c0_i32_13 = arith.constant 0 : i32
    %c0_i32_14 = arith.constant 0 : i32
    %c0_i32_15 = arith.constant 0 : i32
    %18 = tpu.memref_slice %arg13[%0, %c0_i32_13, %c0_i32_14, %c0_i32_15] : memref<2x10x18x128xf32, #tpu.memory_space<vmem>> -> memref<1x10x18x128xf32, #tpu.memory_space<vmem>>
    %19 = tpu.memref_squeeze %18 : memref<1x10x18x128xf32, #tpu.memory_space<vmem>> -> memref<10x18x128xf32, #tpu.memory_space<vmem>>
    %c0_16 = arith.constant 0 : index
    %c1 = arith.constant 1 : index
    %c0_17 = arith.constant 0 : index
    %20 = vector.load %19[%c0_16, %c1, %c0_17] : memref<10x18x128xf32, #tpu.memory_space<vmem>>, vector<10x16x128xf32>
    %c0_i32_18 = arith.constant 0 : i32
    %c0_i32_19 = arith.constant 0 : i32
    %c0_i32_20 = arith.constant 0 : i32
    %21 = tpu.memref_slice %arg13[%0, %c0_i32_18, %c0_i32_19, %c0_i32_20] : memref<2x10x18x128xf32, #tpu.memory_space<vmem>> -> memref<1x10x18x128xf32, #tpu.memory_space<vmem>>
    %22 = tpu.memref_squeeze %21 : memref<1x10x18x128xf32, #tpu.memory_space<vmem>> -> memref<10x18x128xf32, #tpu.memory_space<vmem>>
    %c0_21 = arith.constant 0 : index
    %c2 = arith.constant 2 : index
    %c0_22 = arith.constant 0 : index
    %23 = vector.load %22[%c0_21, %c2, %c0_22] : memref<10x18x128xf32, #tpu.memory_space<vmem>>, vector<10x16x128xf32>
    %24 = vector.extract_strided_slice %17 {offsets = [0, 0, 0], sizes = [8, 16, 128], strides = [1, 1, 1]} : vector<10x16x128xf32> to vector<8x16x128xf32>
    %c0_23 = arith.constant 0 : index
    %c0_24 = arith.constant 0 : index
    %25 = vector.load %arg3[%c0_23, %c0_24] : memref<9x128xf32, #tpu.memory_space<vmem>>, vector<1x128xf32>
    %26 = vector.shape_cast %25 : vector<1x128xf32> to vector<128xf32>
    %27 = vector.shape_cast %26 : vector<128xf32> to vector<1x1x128xf32>
    %28 = vector.broadcast %27 : vector<1x1x128xf32> to vector<8x16x128xf32>
    %29 = arith.mulf %24, %28 : vector<8x16x128xf32>
    %30 = vector.extract_strided_slice %20 {offsets = [0, 0, 0], sizes = [8, 16, 128], strides = [1, 1, 1]} : vector<10x16x128xf32> to vector<8x16x128xf32>
    %c1_25 = arith.constant 1 : index
    %c0_26 = arith.constant 0 : index
    %31 = vector.load %arg3[%c1_25, %c0_26] : memref<9x128xf32, #tpu.memory_space<vmem>>, vector<1x128xf32>
    %32 = vector.shape_cast %31 : vector<1x128xf32> to vector<128xf32>
    %33 = vector.shape_cast %32 : vector<128xf32> to vector<1x1x128xf32>
    %34 = vector.broadcast %33 : vector<1x1x128xf32> to vector<8x16x128xf32>
    %35 = arith.mulf %30, %34 : vector<8x16x128xf32>
    %36 = arith.addf %29, %35 : vector<8x16x128xf32>
    %37 = vector.extract_strided_slice %23 {offsets = [0, 0, 0], sizes = [8, 16, 128], strides = [1, 1, 1]} : vector<10x16x128xf32> to vector<8x16x128xf32>
    %c2_27 = arith.constant 2 : index
    %c0_28 = arith.constant 0 : index
    %38 = vector.load %arg3[%c2_27, %c0_28] : memref<9x128xf32, #tpu.memory_space<vmem>>, vector<1x128xf32>
    %39 = vector.shape_cast %38 : vector<1x128xf32> to vector<128xf32>
    %40 = vector.shape_cast %39 : vector<128xf32> to vector<1x1x128xf32>
    %41 = vector.broadcast %40 : vector<1x1x128xf32> to vector<8x16x128xf32>
    %42 = arith.mulf %37, %41 : vector<8x16x128xf32>
    %43 = arith.addf %36, %42 : vector<8x16x128xf32>
    %44 = vector.extract_strided_slice %17 {offsets = [1, 0, 0], sizes = [8, 16, 128], strides = [1, 1, 1]} : vector<10x16x128xf32> to vector<8x16x128xf32>
    %c3 = arith.constant 3 : index
    %c0_29 = arith.constant 0 : index
    %45 = vector.load %arg3[%c3, %c0_29] : memref<9x128xf32, #tpu.memory_space<vmem>>, vector<1x128xf32>
    %46 = vector.shape_cast %45 : vector<1x128xf32> to vector<128xf32>
    %47 = vector.shape_cast %46 : vector<128xf32> to vector<1x1x128xf32>
    %48 = vector.broadcast %47 : vector<1x1x128xf32> to vector<8x16x128xf32>
    %49 = arith.mulf %44, %48 : vector<8x16x128xf32>
    %50 = arith.addf %43, %49 : vector<8x16x128xf32>
    %51 = vector.extract_strided_slice %20 {offsets = [1, 0, 0], sizes = [8, 16, 128], strides = [1, 1, 1]} : vector<10x16x128xf32> to vector<8x16x128xf32>
    %c4 = arith.constant 4 : index
    %c0_30 = arith.constant 0 : index
    %52 = vector.load %arg3[%c4, %c0_30] : memref<9x128xf32, #tpu.memory_space<vmem>>, vector<1x128xf32>
    %53 = vector.shape_cast %52 : vector<1x128xf32> to vector<128xf32>
    %54 = vector.shape_cast %53 : vector<128xf32> to vector<1x1x128xf32>
    %55 = vector.broadcast %54 : vector<1x1x128xf32> to vector<8x16x128xf32>
    %56 = arith.mulf %51, %55 : vector<8x16x128xf32>
    %57 = arith.addf %50, %56 : vector<8x16x128xf32>
    %58 = vector.extract_strided_slice %23 {offsets = [1, 0, 0], sizes = [8, 16, 128], strides = [1, 1, 1]} : vector<10x16x128xf32> to vector<8x16x128xf32>
    %c5 = arith.constant 5 : index
    %c0_31 = arith.constant 0 : index
    %59 = vector.load %arg3[%c5, %c0_31] : memref<9x128xf32, #tpu.memory_space<vmem>>, vector<1x128xf32>
    %60 = vector.shape_cast %59 : vector<1x128xf32> to vector<128xf32>
    %61 = vector.shape_cast %60 : vector<128xf32> to vector<1x1x128xf32>
    %62 = vector.broadcast %61 : vector<1x1x128xf32> to vector<8x16x128xf32>
    %63 = arith.mulf %58, %62 : vector<8x16x128xf32>
    %64 = arith.addf %57, %63 : vector<8x16x128xf32>
    %65 = vector.extract_strided_slice %17 {offsets = [2, 0, 0], sizes = [8, 16, 128], strides = [1, 1, 1]} : vector<10x16x128xf32> to vector<8x16x128xf32>
    %c6 = arith.constant 6 : index
    %c0_32 = arith.constant 0 : index
    %66 = vector.load %arg3[%c6, %c0_32] : memref<9x128xf32, #tpu.memory_space<vmem>>, vector<1x128xf32>
    %67 = vector.shape_cast %66 : vector<1x128xf32> to vector<128xf32>
    %68 = vector.shape_cast %67 : vector<128xf32> to vector<1x1x128xf32>
    %69 = vector.broadcast %68 : vector<1x1x128xf32> to vector<8x16x128xf32>
    %70 = arith.mulf %65, %69 : vector<8x16x128xf32>
    %71 = arith.addf %64, %70 : vector<8x16x128xf32>
    %72 = vector.extract_strided_slice %20 {offsets = [2, 0, 0], sizes = [8, 16, 128], strides = [1, 1, 1]} : vector<10x16x128xf32> to vector<8x16x128xf32>
    %c7 = arith.constant 7 : index
    %c0_33 = arith.constant 0 : index
    %73 = vector.load %arg3[%c7, %c0_33] : memref<9x128xf32, #tpu.memory_space<vmem>>, vector<1x128xf32>
    %74 = vector.shape_cast %73 : vector<1x128xf32> to vector<128xf32>
    %75 = vector.shape_cast %74 : vector<128xf32> to vector<1x1x128xf32>
    %76 = vector.broadcast %75 : vector<1x1x128xf32> to vector<8x16x128xf32>
    %77 = arith.mulf %72, %76 : vector<8x16x128xf32>
    %78 = arith.addf %71, %77 : vector<8x16x128xf32>
    %79 = vector.extract_strided_slice %23 {offsets = [2, 0, 0], sizes = [8, 16, 128], strides = [1, 1, 1]} : vector<10x16x128xf32> to vector<8x16x128xf32>
    %c8 = arith.constant 8 : index
    %c0_34 = arith.constant 0 : index
    %80 = vector.load %arg3[%c8, %c0_34] : memref<9x128xf32, #tpu.memory_space<vmem>>, vector<1x128xf32>
    %81 = vector.shape_cast %80 : vector<1x128xf32> to vector<128xf32>
    %82 = vector.shape_cast %81 : vector<128xf32> to vector<1x1x128xf32>
    %83 = vector.broadcast %82 : vector<1x1x128xf32> to vector<8x16x128xf32>
    %84 = arith.mulf %79, %83 : vector<8x16x128xf32>
    %85 = arith.addf %78, %84 : vector<8x16x128xf32>
    %c0_35 = arith.constant 0 : index
    %c0_36 = arith.constant 0 : index
    %86 = vector.load %arg4[%c0_35, %c0_36] : memref<1x128xf32, #tpu.memory_space<vmem>>, vector<1x128xf32>
    %87 = vector.shape_cast %86 : vector<1x128xf32> to vector<128xf32>
    %88 = vector.shape_cast %87 : vector<128xf32> to vector<1x1x128xf32>
    %89 = vector.broadcast %88 : vector<1x1x128xf32> to vector<8x16x128xf32>
    %90 = arith.addf %85, %89 : vector<8x16x128xf32>
    %91 = vector.shape_cast %90 : vector<8x16x128xf32> to vector<128x128xf32>
    %92 = vector.extract_strided_slice %20 {offsets = [1, 0, 0], sizes = [8, 16, 128], strides = [1, 1, 1]} : vector<10x16x128xf32> to vector<8x16x128xf32>
    %93 = vector.shape_cast %92 : vector<8x16x128xf32> to vector<128x128xf32>
    %cst = arith.constant dense<0.000000e+00> : vector<128xf32>
    %94 = vector.multi_reduction <add>, %91, %cst [1] : vector<128x128xf32> to vector<128xf32>
    %95 = vector.shape_cast %94 : vector<128xf32> to vector<128x1xf32>
    %cst_37 = arith.constant 1.250000e-01 : f32
    %96 = vector.broadcast %cst_37 : f32 to vector<128x1xf32>
    %97 = arith.mulf %95, %96 : vector<128x1xf32>
    %98 = vector.broadcast %97 : vector<128x1xf32> to vector<128x128xf32>
    %99 = arith.subf %91, %98 : vector<128x128xf32>
    %100 = arith.mulf %99, %99 : vector<128x128xf32>
    %cst_38 = arith.constant dense<0.000000e+00> : vector<128xf32>
    %101 = vector.multi_reduction <add>, %100, %cst_38 [1] : vector<128x128xf32> to vector<128xf32>
    %102 = vector.shape_cast %101 : vector<128xf32> to vector<128x1xf32>
    %103 = arith.mulf %97, %97 : vector<128x1xf32>
    %cst_39 = arith.constant 1.200000e+02 : f32
    %104 = vector.broadcast %cst_39 : f32 to vector<128x1xf32>
    %105 = arith.mulf %104, %103 : vector<128x1xf32>
    %106 = arith.subf %102, %105 : vector<128x1xf32>
    %cst_40 = arith.constant 1.250000e-01 : f32
    %107 = vector.broadcast %cst_40 : f32 to vector<128x1xf32>
    %108 = arith.mulf %106, %107 : vector<128x1xf32>
    %cst_41 = arith.constant 0.000000e+00 : f32
    %109 = vector.broadcast %cst_41 : f32 to vector<128x1xf32>
    %110 = arith.maximumf %108, %109 : vector<128x1xf32>
    %cst_42 = arith.constant 9.99999997E-7 : f32
    %111 = vector.broadcast %cst_42 : f32 to vector<128x1xf32>
    %112 = arith.addf %110, %111 : vector<128x1xf32>
    %113 = math.rsqrt %112 : vector<128x1xf32>
    %114 = vector.broadcast %113 : vector<128x1xf32> to vector<128x128xf32>
    %115 = arith.mulf %99, %114 : vector<128x128xf32>
    %c0_43 = arith.constant 0 : index
    %c0_44 = arith.constant 0 : index
    %116 = vector.load %arg5[%c0_43, %c0_44] : memref<1x128xf32, #tpu.memory_space<vmem>>, vector<1x128xf32>
    %117 = vector.shape_cast %116 : vector<1x128xf32> to vector<128xf32>
    %118 = vector.shape_cast %117 : vector<128xf32> to vector<1x128xf32>
    %119 = vector.broadcast %118 : vector<1x128xf32> to vector<128x128xf32>
    %120 = arith.mulf %115, %119 : vector<128x128xf32>
    %c0_45 = arith.constant 0 : index
    %c0_46 = arith.constant 0 : index
    %121 = vector.load %arg6[%c0_45, %c0_46] : memref<1x128xf32, #tpu.memory_space<vmem>>, vector<1x128xf32>
    %122 = vector.shape_cast %121 : vector<1x128xf32> to vector<128xf32>
    %123 = vector.shape_cast %122 : vector<128xf32> to vector<1x128xf32>
    %124 = vector.broadcast %123 : vector<1x128xf32> to vector<128x128xf32>
    %125 = arith.addf %120, %124 : vector<128x128xf32>
    %126 = arith.truncf %125 : vector<128x128xf32> to vector<128x128xbf16>
    %c0_47 = arith.constant 0 : index
    %c0_48 = arith.constant 0 : index
    %127 = vector.load %arg7[%c0_47, %c0_48] : memref<128x128xbf16, #tpu.memory_space<vmem>>, vector<128x128xbf16>
    %cst_49 = arith.constant dense<0.000000e+00> : vector<128x128xf32>
    %128 = tpu.matmul %126, %127, %cst_49 {dimension_numbers = #tpu.dot_dimension_numbers<[1], [0], [0], [1], [0, 0, 1, 1], [], []>} : vector<128x128xbf16>, vector<128x128xbf16>, vector<128x128xf32> -> vector<128x128xf32>
    %c0_50 = arith.constant 0 : index
    %c0_51 = arith.constant 0 : index
    %129 = vector.load %arg8[%c0_50, %c0_51] : memref<1x128xf32, #tpu.memory_space<vmem>>, vector<1x128xf32>
    %130 = vector.shape_cast %129 : vector<1x128xf32> to vector<128xf32>
    %131 = vector.shape_cast %130 : vector<128xf32> to vector<1x128xf32>
    %132 = vector.broadcast %131 : vector<1x128xf32> to vector<128x128xf32>
    %133 = arith.addf %128, %132 : vector<128x128xf32>
    %cst_52 = arith.constant 5.000000e-01 : f32
    %134 = vector.broadcast %cst_52 : f32 to vector<128x128xf32>
    %135 = arith.mulf %134, %133 : vector<128x128xf32>
    %136 = arith.mulf %133, %133 : vector<128x128xf32>
    %137 = arith.mulf %136, %133 : vector<128x128xf32>
    %cst_53 = arith.constant 4.471500e-02 : f32
    %138 = vector.broadcast %cst_53 : f32 to vector<128x128xf32>
    %139 = arith.mulf %138, %137 : vector<128x128xf32>
    %140 = arith.addf %133, %139 : vector<128x128xf32>
    %cst_54 = arith.constant 0.797884583 : f32
    %141 = vector.broadcast %cst_54 : f32 to vector<128x128xf32>
    %142 = arith.mulf %141, %140 : vector<128x128xf32>
    %143 = math.tanh %142 : vector<128x128xf32>
    %cst_55 = arith.constant 1.000000e+00 : f32
    %144 = vector.broadcast %cst_55 : f32 to vector<128x128xf32>
    %145 = arith.addf %144, %143 : vector<128x128xf32>
    %146 = arith.mulf %135, %145 : vector<128x128xf32>
    %147 = arith.truncf %146 : vector<128x128xf32> to vector<128x128xbf16>
    %c0_56 = arith.constant 0 : index
    %c0_57 = arith.constant 0 : index
    %148 = vector.load %arg9[%c0_56, %c0_57] : memref<128x128xbf16, #tpu.memory_space<vmem>>, vector<128x128xbf16>
    %cst_58 = arith.constant dense<0.000000e+00> : vector<128x128xf32>
    %149 = tpu.matmul %147, %148, %cst_58 {dimension_numbers = #tpu.dot_dimension_numbers<[1], [0], [0], [1], [0, 0, 1, 1], [], []>} : vector<128x128xbf16>, vector<128x128xbf16>, vector<128x128xf32> -> vector<128x128xf32>
    %c0_59 = arith.constant 0 : index
    %c0_60 = arith.constant 0 : index
    %150 = vector.load %arg10[%c0_59, %c0_60] : memref<1x128xf32, #tpu.memory_space<vmem>>, vector<1x128xf32>
    %151 = vector.shape_cast %150 : vector<1x128xf32> to vector<128xf32>
    %152 = vector.shape_cast %151 : vector<128xf32> to vector<1x128xf32>
    %153 = vector.broadcast %152 : vector<1x128xf32> to vector<128x128xf32>
    %154 = arith.addf %149, %153 : vector<128x128xf32>
    %c0_61 = arith.constant 0 : index
    %c0_62 = arith.constant 0 : index
    %155 = vector.load %arg11[%c0_61, %c0_62] : memref<1x128xf32, #tpu.memory_space<vmem>>, vector<1x128xf32>
    %156 = vector.shape_cast %155 : vector<1x128xf32> to vector<128xf32>
    %157 = vector.shape_cast %156 : vector<128xf32> to vector<1x128xf32>
    %158 = vector.broadcast %157 : vector<1x128xf32> to vector<128x128xf32>
    %159 = arith.mulf %154, %158 : vector<128x128xf32>
    %160 = arith.addf %93, %159 : vector<128x128xf32>
    %c0_63 = arith.constant 0 : index
    %c0_64 = arith.constant 0 : index
    %c0_65 = arith.constant 0 : index
    %161 = vector.load %arg12[%c0_63, %c0_64, %c0_65] : memref<1x128x128xf32, #tpu.memory_space<vmem>>, vector<1x128x128xf32>
    %162 = vector.shape_cast %161 : vector<1x128x128xf32> to vector<128x128xf32>
    %163 = vector.shape_cast %160 : vector<128x128xf32> to vector<1x128x128xf32>
    tpu.vector_store %arg12[%c0_63, %c0_64, %c0_65], %163 {strides = array<i32>} : memref<1x128x128xf32, #tpu.memory_space<vmem>>, vector<1x128x128xf32>,
    return
  }
  func.func @transform_1(%arg0: i32, %arg1: i32) -> (i32, i32) {
    %c0_i32 = arith.constant 0 : i32
    %c0_i32_0 = arith.constant 0 : i32
    %c0_i32_1 = arith.constant 0 : i32
    return %c0_i32, %c0_i32_0 : i32, i32
  }
  func.func @transform_2(%arg0: i32, %arg1: i32) -> (i32, i32) {
    %c0_i32 = arith.constant 0 : i32
    %c0_i32_0 = arith.constant 0 : i32
    %c0_i32_1 = arith.constant 0 : i32
    return %c0_i32, %c0_i32_0 : i32, i32
  }
  func.func @transform_3(%arg0: i32, %arg1: i32) -> (i32, i32) {
    %c0_i32 = arith.constant 0 : i32
    %c0_i32_0 = arith.constant 0 : i32
    %c0_i32_1 = arith.constant 0 : i32
    return %c0_i32, %c0_i32_0 : i32, i32
  }
  func.func @transform_4(%arg0: i32, %arg1: i32) -> (i32, i32) {
    %c0_i32 = arith.constant 0 : i32
    %c0_i32_0 = arith.constant 0 : i32
    %c0_i32_1 = arith.constant 0 : i32
    return %c0_i32, %c0_i32_0 : i32, i32
  }
  func.func @transform_5(%arg0: i32, %arg1: i32) -> (i32, i32) {
    %c0_i32 = arith.constant 0 : i32
    %c0_i32_0 = arith.constant 0 : i32
    %c0_i32_1 = arith.constant 0 : i32
    return %c0_i32, %c0_i32_0 : i32, i32
  }
  func.func @transform_6(%arg0: i32, %arg1: i32) -> (i32, i32) {
    %c0_i32 = arith.constant 0 : i32
    %c0_i32_0 = arith.constant 0 : i32
    %c0_i32_1 = arith.constant 0 : i32
    return %c0_i32, %c0_i32_0 : i32, i32
  }
  func.func @transform_7(%arg0: i32, %arg1: i32) -> (i32, i32) {
    %c0_i32 = arith.constant 0 : i32
    %c0_i32_0 = arith.constant 0 : i32
    %c0_i32_1 = arith.constant 0 : i32
    return %c0_i32, %c0_i32_0 : i32, i32
  }
  func.func @transform_8(%arg0: i32, %arg1: i32) -> (i32, i32) {
    %c0_i32 = arith.constant 0 : i32
    %c0_i32_0 = arith.constant 0 : i32
    %c0_i32_1 = arith.constant 0 : i32
    return %c0_i32, %c0_i32_0 : i32, i32
  }
  func.func @transform_9(%arg0: i32, %arg1: i32) -> (i32, i32) {
    %c0_i32 = arith.constant 0 : i32
    %c0_i32_0 = arith.constant 0 : i32
    %c0_i32_1 = arith.constant 0 : i32
    return %c0_i32, %c0_i32_0 : i32, i32
  }
  func.func @transform_10(%arg0: i32, %arg1: i32) -> (i32, i32, i32) {
    %c0_i32 = arith.constant 0 : i32
    %c0_i32_0 = arith.constant 0 : i32
    return %arg0, %arg1, %c0_i32 : i32, i32, i32
  }
}

module attributes {stable_mosaic.version = 11 : i64} {
  func.func @_convnext_kernel(%arg0: i32, %arg1: i32, %arg2: memref<2x18x18x128xf32, #tpu.memory_space<any>>, %arg3: memref<9x128xf32, #tpu.memory_space<vmem>>, %arg4: memref<1x128xf32, #tpu.memory_space<vmem>>, %arg5: memref<1x128xf32, #tpu.memory_space<vmem>>, %arg6: memref<1x128xf32, #tpu.memory_space<vmem>>, %arg7: memref<128x128xbf16, #tpu.memory_space<vmem>>, %arg8: memref<1x128xf32, #tpu.memory_space<vmem>>, %arg9: memref<128x128xbf16, #tpu.memory_space<vmem>>, %arg10: memref<1x128xf32, #tpu.memory_space<vmem>>, %arg11: memref<1x128xf32, #tpu.memory_space<vmem>>, %arg12: memref<1x128x128xf32, #tpu.memory_space<vmem>>, %arg13: memref<2x10x18x128xf32, #tpu.memory_space<vmem>>, %arg14: memref<2x!tpu.dma_semaphore, #tpu.memory_space<semaphore_mem>>) attributes {dimension_semantics = [#tpu.dimension_semantics<parallel>, #tpu.dimension_semantics<arbitrary>], iteration_bounds = array<i64: 2, 2>, scalar_prefetch = 0 : i64, scratch_operands = 2 : i64, tpu.core_type = #tpu.core_type<tc>, window_params = [{}, {pipeline_mode = #tpu.pipeline_mode<synchronous>, transform_indices = @transform_1, window_bounds = array<i64: 9, 128>}, {pipeline_mode = #tpu.pipeline_mode<synchronous>, transform_indices = @transform_2, window_bounds = array<i64: 1, 128>}, {pipeline_mode = #tpu.pipeline_mode<synchronous>, transform_indices = @transform_3, window_bounds = array<i64: 1, 128>}, {pipeline_mode = #tpu.pipeline_mode<synchronous>, transform_indices = @transform_4, window_bounds = array<i64: 1, 128>}, {pipeline_mode = #tpu.pipeline_mode<synchronous>, transform_indices = @transform_5, window_bounds = array<i64: 128, 128>}, {pipeline_mode = #tpu.pipeline_mode<synchronous>, transform_indices = @transform_6, window_bounds = array<i64: 1, 128>}, {pipeline_mode = #tpu.pipeline_mode<synchronous>, transform_indices = @transform_7, window_bounds = array<i64: 128, 128>}, {pipeline_mode = #tpu.pipeline_mode<synchronous>, transform_indices = @transform_8, window_bounds = array<i64: 1, 128>}, {pipeline_mode = #tpu.pipeline_mode<synchronous>, transform_indices = @transform_9, window_bounds = array<i64: 1, 128>}, {transform_indices = @transform_10, window_bounds = array<i64: 1, 128, 128>}]} {
    %c1_i32 = arith.constant 1 : i32
    %0 = arith.andi %arg1, %c1_i32 : i32
    %c0_i32 = arith.constant 0 : i32
    %1 = arith.cmpi eq, %arg1, %c0_i32 : i32
    %2 = arith.extui %1 : i1 to i32
    %c0_i32_0 = arith.constant 0 : i32
    %3 = arith.cmpi ne, %2, %c0_i32_0 : i32
    scf.if %3 {
      %c0_i32_66 = arith.constant 0 : i32
      %c0_i32_67 = arith.constant 0 : i32
      %c0_i32_68 = arith.constant 0 : i32
      %c0_i32_69 = arith.constant 0 : i32
      %c0_i32_70 = arith.constant 0 : i32
      %164 = tpu.memref_slice %arg2[%arg0, %c0_i32_68, %c0_i32_69, %c0_i32_70] : memref<2x18x18x128xf32, #tpu.memory_space<any>> -> memref<1x10x18x128xf32, #tpu.memory_space<any>>
      %165 = tpu.memref_squeeze %164 : memref<1x10x18x128xf32, #tpu.memory_space<any>> -> memref<10x18x128xf32, #tpu.memory_space<any>>
      %c0_i32_71 = arith.constant 0 : i32
      %c0_i32_72 = arith.constant 0 : i32
      %c0_i32_73 = arith.constant 0 : i32
      %166 = tpu.memref_slice %arg13[%c0_i32_66, %c0_i32_71, %c0_i32_72, %c0_i32_73] : memref<2x10x18x128xf32, #tpu.memory_space<vmem>> -> memref<1x10x18x128xf32, #tpu.memory_space<vmem>>
      %167 = tpu.memref_squeeze %166 : memref<1x10x18x128xf32, #tpu.memory_space<vmem>> -> memref<10x18x128xf32, #tpu.memory_space<vmem>>
      %168 = tpu.memref_slice %arg14[%c0_i32_67] : memref<2x!tpu.dma_semaphore, #tpu.memory_space<semaphore_mem>> -> memref<1x!tpu.dma_semaphore, #tpu.memory_space<semaphore_mem>>
      %169 = tpu.memref_squeeze %168 : memref<1x!tpu.dma_semaphore, #tpu.memory_space<semaphore_mem>> -> memref<!tpu.dma_semaphore, #tpu.memory_space<semaphore_mem>>
      tpu.enqueue_dma source(%165 : memref<10x18x128xf32, #tpu.memory_space<any>>) target(%167 : memref<10x18x128xf32, #tpu.memory_space<vmem>>) target_semaphore(%169 : memref<!tpu.dma_semaphore, #tpu.memory_space<semaphore_mem>>)
    } else {
    }
    %c1_i32_1 = arith.constant 1 : i32
    %4 = arith.addi %arg1, %c1_i32_1 : i32
    %c2_i32 = arith.constant 2 : i32
    %5 = arith.cmpi slt, %4, %c2_i32 : i32
    %6 = arith.extui %5 : i1 to i32
    %c0_i32_2 = arith.constant 0 : i32
    %7 = arith.cmpi ne, %6, %c0_i32_2 : i32
    scf.if %7 {
      %c1_i32_66 = arith.constant 1 : i32
      %164 = arith.addi %arg1, %c1_i32_66 : i32
      %c1_i32_67 = arith.constant 1 : i32
      %165 = arith.subi %c1_i32_67, %0 : i32
      %c8_i32_68 = arith.constant 8 : i32
      %166 = arith.muli %164, %c8_i32_68 : i32
      %c0_i32_69 = arith.constant 0 : i32
      %c0_i32_70 = arith.constant 0 : i32
      %167 = tpu.memref_slice %arg2[%arg0, %166, %c0_i32_69, %c0_i32_70] : memref<2x18x18x128xf32, #tpu.memory_space<any>> -> memref<1x10x18x128xf32, #tpu.memory_space<any>>
      %168 = tpu.memref_squeeze %167 : memref<1x10x18x128xf32, #tpu.memory_space<any>> -> memref<10x18x128xf32, #tpu.memory_space<any>>
      %c0_i32_71 = arith.constant 0 : i32
      %c0_i32_72 = arith.constant 0 : i32
      %c0_i32_73 = arith.constant 0 : i32
      %169 = tpu.memref_slice %arg13[%165, %c0_i32_71, %c0_i32_72, %c0_i32_73] : memref<2x10x18x128xf32, #tpu.memory_space<vmem>> -> memref<1x10x18x128xf32, #tpu.memory_space<vmem>>
      %170 = tpu.memref_squeeze %169 : memref<1x10x18x128xf32, #tpu.memory_space<vmem>> -> memref<10x18x128xf32, #tpu.memory_space<vmem>>
      %171 = tpu.memref_slice %arg14[%165] : memref<2x!tpu.dma_semaphore, #tpu.memory_space<semaphore_mem>> -> memref<1x!tpu.dma_semaphore, #tpu.memory_space<semaphore_mem>>
      %172 = tpu.memref_squeeze %171 : memref<1x!tpu.dma_semaphore, #tpu.memory_space<semaphore_mem>> -> memref<!tpu.dma_semaphore, #tpu.memory_space<semaphore_mem>>
      tpu.enqueue_dma source(%168 : memref<10x18x128xf32, #tpu.memory_space<any>>) target(%170 : memref<10x18x128xf32, #tpu.memory_space<vmem>>) target_semaphore(%172 : memref<!tpu.dma_semaphore, #tpu.memory_space<semaphore_mem>>)
    } else {
    }
    %c8_i32 = arith.constant 8 : i32
    %8 = arith.muli %arg1, %c8_i32 : i32
    %c0_i32_3 = arith.constant 0 : i32
    %c0_i32_4 = arith.constant 0 : i32
    %9 = tpu.memref_slice %arg2[%arg0, %8, %c0_i32_3, %c0_i32_4] : memref<2x18x18x128xf32, #tpu.memory_space<any>> -> memref<1x10x18x128xf32, #tpu.memory_space<any>>
    %10 = tpu.memref_squeeze %9 : memref<1x10x18x128xf32, #tpu.memory_space<any>> -> memref<10x18x128xf32, #tpu.memory_space<any>>
    %c0_i32_5 = arith.constant 0 : i32
    %c0_i32_6 = arith.constant 0 : i32
    %c0_i32_7 = arith.constant 0 : i32
    %11 = tpu.memref_slice %arg13[%0, %c0_i32_5, %c0_i32_6, %c0_i32_7] : memref<2x10x18x128xf32, #tpu.memory_space<vmem>> -> memref<1x10x18x128xf32, #tpu.memory_space<vmem>>
    %12 = tpu.memref_squeeze %11 : memref<1x10x18x128xf32, #tpu.memory_space<vmem>> -> memref<10x18x128xf32, #tpu.memory_space<vmem>>
    %13 = tpu.memref_slice %arg14[%0] : memref<2x!tpu.dma_semaphore, #tpu.memory_space<semaphore_mem>> -> memref<1x!tpu.dma_semaphore, #tpu.memory_space<semaphore_mem>>
    %14 = tpu.memref_squeeze %13 : memref<1x!tpu.dma_semaphore, #tpu.memory_space<semaphore_mem>> -> memref<!tpu.dma_semaphore, #tpu.memory_space<semaphore_mem>>
    tpu.wait_dma2 semaphore(%14 : memref<!tpu.dma_semaphore, #tpu.memory_space<semaphore_mem>>) src(%10 : memref<10x18x128xf32, #tpu.memory_space<any>>) dst(%12 : memref<10x18x128xf32, #tpu.memory_space<vmem>>)
    %c0_i32_8 = arith.constant 0 : i32
    %c0_i32_9 = arith.constant 0 : i32
    %c0_i32_10 = arith.constant 0 : i32
    %15 = tpu.memref_slice %arg13[%0, %c0_i32_8, %c0_i32_9, %c0_i32_10] : memref<2x10x18x128xf32, #tpu.memory_space<vmem>> -> memref<1x10x18x128xf32, #tpu.memory_space<vmem>>
    %16 = tpu.memref_squeeze %15 : memref<1x10x18x128xf32, #tpu.memory_space<vmem>> -> memref<10x18x128xf32, #tpu.memory_space<vmem>>
    %c0 = arith.constant 0 : index
    %c0_11 = arith.constant 0 : index
    %c0_12 = arith.constant 0 : index
    %17 = vector.load %16[%c0, %c0_11, %c0_12] : memref<10x18x128xf32, #tpu.memory_space<vmem>>, vector<10x16x128xf32>
    %c0_i32_13 = arith.constant 0 : i32
    %c0_i32_14 = arith.constant 0 : i32
    %c0_i32_15 = arith.constant 0 : i32
    %18 = tpu.memref_slice %arg13[%0, %c0_i32_13, %c0_i32_14, %c0_i32_15] : memref<2x10x18x128xf32, #tpu.memory_space<vmem>> -> memref<1x10x18x128xf32, #tpu.memory_space<vmem>>
    %19 = tpu.memref_squeeze %18 : memref<1x10x18x128xf32, #tpu.memory_space<vmem>> -> memref<10x18x128xf32, #tpu.memory_space<vmem>>
    %c0_16 = arith.constant 0 : index
    %c1 = arith.constant 1 : index
    %c0_17 = arith.constant 0 : index
    %20 = vector.load %19[%c0_16, %c1, %c0_17] : memref<10x18x128xf32, #tpu.memory_space<vmem>>, vector<10x16x128xf32>
    %c0_i32_18 = arith.constant 0 : i32
    %c0_i32_19 = arith.constant 0 : i32
    %c0_i32_20 = arith.constant 0 : i32
    %21 = tpu.memref_slice %arg13[%0, %c0_i32_18, %c0_i32_19, %c0_i32_20] : memref<2x10x18x128xf32, #tpu.memory_space<vmem>> -> memref<1x10x18x128xf32, #tpu.memory_space<vmem>>
    %22 = tpu.memref_squeeze %21 : memref<1x10x18x128xf32, #tpu.memory_space<vmem>> -> memref<10x18x128xf32, #tpu.memory_space<vmem>>
    %c0_21 = arith.constant 0 : index
    %c2 = arith.constant 2 : index
    %c0_22 = arith.constant 0 : index
    %23 = vector.load %22[%c0_21, %c2, %c0_22] : memref<10x18x128xf32, #tpu.memory_space<vmem>>, vector<10x16x128xf32>
    %24 = vector.extract_strided_slice %17 {offsets = [0, 0, 0], sizes = [8, 16, 128], strides = [1, 1, 1]} : vector<10x16x128xf32> to vector<8x16x128xf32>
    %c0_23 = arith.constant 0 : index
    %c0_24 = arith.constant 0 : index
    %25 = vector.load %arg3[%c0_23, %c0_24] : memref<9x128xf32, #tpu.memory_space<vmem>>, vector<1x128xf32>
    %26 = vector.shape_cast %25 : vector<1x128xf32> to vector<128xf32>
    %27 = vector.shape_cast %26 : vector<128xf32> to vector<1x1x128xf32>
    %28 = vector.broadcast %27 : vector<1x1x128xf32> to vector<8x16x128xf32>
    %29 = arith.mulf %24, %28 : vector<8x16x128xf32>
    %30 = vector.extract_strided_slice %20 {offsets = [0, 0, 0], sizes = [8, 16, 128], strides = [1, 1, 1]} : vector<10x16x128xf32> to vector<8x16x128xf32>
    %c1_25 = arith.constant 1 : index
    %c0_26 = arith.constant 0 : index
    %31 = vector.load %arg3[%c1_25, %c0_26] : memref<9x128xf32, #tpu.memory_space<vmem>>, vector<1x128xf32>
    %32 = vector.shape_cast %31 : vector<1x128xf32> to vector<128xf32>
    %33 = vector.shape_cast %32 : vector<128xf32> to vector<1x1x128xf32>
    %34 = vector.broadcast %33 : vector<1x1x128xf32> to vector<8x16x128xf32>
    %35 = arith.mulf %30, %34 : vector<8x16x128xf32>
    %36 = arith.addf %29, %35 : vector<8x16x128xf32>
    %37 = vector.extract_strided_slice %23 {offsets = [0, 0, 0], sizes = [8, 16, 128], strides = [1, 1, 1]} : vector<10x16x128xf32> to vector<8x16x128xf32>
    %c2_27 = arith.constant 2 : index
    %c0_28 = arith.constant 0 : index
    %38 = vector.load %arg3[%c2_27, %c0_28] : memref<9x128xf32, #tpu.memory_space<vmem>>, vector<1x128xf32>
    %39 = vector.shape_cast %38 : vector<1x128xf32> to vector<128xf32>
    %40 = vector.shape_cast %39 : vector<128xf32> to vector<1x1x128xf32>
    %41 = vector.broadcast %40 : vector<1x1x128xf32> to vector<8x16x128xf32>
    %42 = arith.mulf %37, %41 : vector<8x16x128xf32>
    %43 = arith.addf %36, %42 : vector<8x16x128xf32>
    %44 = vector.extract_strided_slice %17 {offsets = [1, 0, 0], sizes = [8, 16, 128], strides = [1, 1, 1]} : vector<10x16x128xf32> to vector<8x16x128xf32>
    %c3 = arith.constant 3 : index
    %c0_29 = arith.constant 0 : index
    %45 = vector.load %arg3[%c3, %c0_29] : memref<9x128xf32, #tpu.memory_space<vmem>>, vector<1x128xf32>
    %46 = vector.shape_cast %45 : vector<1x128xf32> to vector<128xf32>
    %47 = vector.shape_cast %46 : vector<128xf32> to vector<1x1x128xf32>
    %48 = vector.broadcast %47 : vector<1x1x128xf32> to vector<8x16x128xf32>
    %49 = arith.mulf %44, %48 : vector<8x16x128xf32>
    %50 = arith.addf %43, %49 : vector<8x16x128xf32>
    %51 = vector.extract_strided_slice %20 {offsets = [1, 0, 0], sizes = [8, 16, 128], strides = [1, 1, 1]} : vector<10x16x128xf32> to vector<8x16x128xf32>
    %c4 = arith.constant 4 : index
    %c0_30 = arith.constant 0 : index
    %52 = vector.load %arg3[%c4, %c0_30] : memref<9x128xf32, #tpu.memory_space<vmem>>, vector<1x128xf32>
    %53 = vector.shape_cast %52 : vector<1x128xf32> to vector<128xf32>
    %54 = vector.shape_cast %53 : vector<128xf32> to vector<1x1x128xf32>
    %55 = vector.broadcast %54 : vector<1x1x128xf32> to vector<8x16x128xf32>
    %56 = arith.mulf %51, %55 : vector<8x16x128xf32>
    %57 = arith.addf %50, %56 : vector<8x16x128xf32>
    %58 = vector.extract_strided_slice %23 {offsets = [1, 0, 0], sizes = [8, 16, 128], strides = [1, 1, 1]} : vector<10x16x128xf32> to vector<8x16x128xf32>
    %c5 = arith.constant 5 : index
    %c0_31 = arith.constant 0 : index
    %59 = vector.load %arg3[%c5, %c0_31] : memref<9x128xf32, #tpu.memory_space<vmem>>, vector<1x128xf32>
    %60 = vector.shape_cast %59 : vector<1x128xf32> to vector<128xf32>
    %61 = vector.shape_cast %60 : vector<128xf32> to vector<1x1x128xf32>
    %62 = vector.broadcast %61 : vector<1x1x128xf32> to vector<8x16x128xf32>
    %63 = arith.mulf %58, %62 : vector<8x16x128xf32>
    %64 = arith.addf %57, %63 : vector<8x16x128xf32>
    %65 = vector.extract_strided_slice %17 {offsets = [2, 0, 0], sizes = [8, 16, 128], strides = [1, 1, 1]} : vector<10x16x128xf32> to vector<8x16x128xf32>
    %c6 = arith.constant 6 : index
    %c0_32 = arith.constant 0 : index
    %66 = vector.load %arg3[%c6, %c0_32] : memref<9x128xf32, #tpu.memory_space<vmem>>, vector<1x128xf32>
    %67 = vector.shape_cast %66 : vector<1x128xf32> to vector<128xf32>
    %68 = vector.shape_cast %67 : vector<128xf32> to vector<1x1x128xf32>
    %69 = vector.broadcast %68 : vector<1x1x128xf32> to vector<8x16x128xf32>
    %70 = arith.mulf %65, %69 : vector<8x16x128xf32>
    %71 = arith.addf %64, %70 : vector<8x16x128xf32>
    %72 = vector.extract_strided_slice %20 {offsets = [2, 0, 0], sizes = [8, 16, 128], strides = [1, 1, 1]} : vector<10x16x128xf32> to vector<8x16x128xf32>
    %c7 = arith.constant 7 : index
    %c0_33 = arith.constant 0 : index
    %73 = vector.load %arg3[%c7, %c0_33] : memref<9x128xf32, #tpu.memory_space<vmem>>, vector<1x128xf32>
    %74 = vector.shape_cast %73 : vector<1x128xf32> to vector<128xf32>
    %75 = vector.shape_cast %74 : vector<128xf32> to vector<1x1x128xf32>
    %76 = vector.broadcast %75 : vector<1x1x128xf32> to vector<8x16x128xf32>
    %77 = arith.mulf %72, %76 : vector<8x16x128xf32>
    %78 = arith.addf %71, %77 : vector<8x16x128xf32>
    %79 = vector.extract_strided_slice %23 {offsets = [2, 0, 0], sizes = [8, 16, 128], strides = [1, 1, 1]} : vector<10x16x128xf32> to vector<8x16x128xf32>
    %c8 = arith.constant 8 : index
    %c0_34 = arith.constant 0 : index
    %80 = vector.load %arg3[%c8, %c0_34] : memref<9x128xf32, #tpu.memory_space<vmem>>, vector<1x128xf32>
    %81 = vector.shape_cast %80 : vector<1x128xf32> to vector<128xf32>
    %82 = vector.shape_cast %81 : vector<128xf32> to vector<1x1x128xf32>
    %83 = vector.broadcast %82 : vector<1x1x128xf32> to vector<8x16x128xf32>
    %84 = arith.mulf %79, %83 : vector<8x16x128xf32>
    %85 = arith.addf %78, %84 : vector<8x16x128xf32>
    %c0_35 = arith.constant 0 : index
    %c0_36 = arith.constant 0 : index
    %86 = vector.load %arg4[%c0_35, %c0_36] : memref<1x128xf32, #tpu.memory_space<vmem>>, vector<1x128xf32>
    %87 = vector.shape_cast %86 : vector<1x128xf32> to vector<128xf32>
    %88 = vector.shape_cast %87 : vector<128xf32> to vector<1x1x128xf32>
    %89 = vector.broadcast %88 : vector<1x1x128xf32> to vector<8x16x128xf32>
    %90 = arith.addf %85, %89 : vector<8x16x128xf32>
    %91 = vector.shape_cast %90 : vector<8x16x128xf32> to vector<128x128xf32>
    %92 = vector.extract_strided_slice %20 {offsets = [1, 0, 0], sizes = [8, 16, 128], strides = [1, 1, 1]} : vector<10x16x128xf32> to vector<8x16x128xf32>
    %93 = vector.shape_cast %92 : vector<8x16x128xf32> to vector<128x128xf32>
    %cst = arith.constant dense<0.000000e+00> : vector<128xf32>
    %94 = vector.multi_reduction <add>, %91, %cst [1] : vector<128x128xf32> to vector<128xf32>
    %95 = vector.shape_cast %94 : vector<128xf32> to vector<128x1xf32>
    %cst_37 = arith.constant 1.250000e-01 : f32
    %96 = vector.broadcast %cst_37 : f32 to vector<128x1xf32>
    %97 = arith.mulf %95, %96 : vector<128x1xf32>
    %98 = vector.broadcast %97 : vector<128x1xf32> to vector<128x128xf32>
    %99 = arith.subf %91, %98 : vector<128x128xf32>
    %100 = arith.mulf %99, %99 : vector<128x128xf32>
    %cst_38 = arith.constant dense<0.000000e+00> : vector<128xf32>
    %101 = vector.multi_reduction <add>, %100, %cst_38 [1] : vector<128x128xf32> to vector<128xf32>
    %102 = vector.shape_cast %101 : vector<128xf32> to vector<128x1xf32>
    %103 = arith.mulf %97, %97 : vector<128x1xf32>
    %cst_39 = arith.constant 1.200000e+02 : f32
    %104 = vector.broadcast %cst_39 : f32 to vector<128x1xf32>
    %105 = arith.mulf %104, %103 : vector<128x1xf32>
    %106 = arith.subf %102, %105 : vector<128x1xf32>
    %cst_40 = arith.constant 1.250000e-01 : f32
    %107 = vector.broadcast %cst_40 : f32 to vector<128x1xf32>
    %108 = arith.mulf %106, %107 : vector<128x1xf32>
    %cst_41 = arith.constant 0.000000e+00 : f32
    %109 = vector.broadcast %cst_41 : f32 to vector<128x1xf32>
    %110 = arith.maximumf %108, %109 : vector<128x1xf32>
    %cst_42 = arith.constant 9.99999997E-7 : f32
    %111 = vector.broadcast %cst_42 : f32 to vector<128x1xf32>
    %112 = arith.addf %110, %111 : vector<128x1xf32>
    %113 = math.rsqrt %112 : vector<128x1xf32>
    %114 = vector.broadcast %113 : vector<128x1xf32> to vector<128x128xf32>
    %115 = arith.mulf %99, %114 : vector<128x128xf32>
    %c0_43 = arith.constant 0 : index
    %c0_44 = arith.constant 0 : index
    %116 = vector.load %arg5[%c0_43, %c0_44] : memref<1x128xf32, #tpu.memory_space<vmem>>, vector<1x128xf32>
    %117 = vector.shape_cast %116 : vector<1x128xf32> to vector<128xf32>
    %118 = vector.shape_cast %117 : vector<128xf32> to vector<1x128xf32>
    %119 = vector.broadcast %118 : vector<1x128xf32> to vector<128x128xf32>
    %120 = arith.mulf %115, %119 : vector<128x128xf32>
    %c0_45 = arith.constant 0 : index
    %c0_46 = arith.constant 0 : index
    %121 = vector.load %arg6[%c0_45, %c0_46] : memref<1x128xf32, #tpu.memory_space<vmem>>, vector<1x128xf32>
    %122 = vector.shape_cast %121 : vector<1x128xf32> to vector<128xf32>
    %123 = vector.shape_cast %122 : vector<128xf32> to vector<1x128xf32>
    %124 = vector.broadcast %123 : vector<1x128xf32> to vector<128x128xf32>
    %125 = arith.addf %120, %124 : vector<128x128xf32>
    %126 = arith.truncf %125 : vector<128x128xf32> to vector<128x128xbf16>
    %c0_47 = arith.constant 0 : index
    %c0_48 = arith.constant 0 : index
    %127 = vector.load %arg7[%c0_47, %c0_48] : memref<128x128xbf16, #tpu.memory_space<vmem>>, vector<128x128xbf16>
    %cst_49 = arith.constant dense<0.000000e+00> : vector<128x128xf32>
    %128 = tpu.matmul %126, %127, %cst_49 {dimension_numbers = #tpu.dot_dimension_numbers<[1], [0], [0], [1], [0, 0, 1, 1], [], []>} : vector<128x128xbf16>, vector<128x128xbf16>, vector<128x128xf32> -> vector<128x128xf32>
    %c0_50 = arith.constant 0 : index
    %c0_51 = arith.constant 0 : index
    %129 = vector.load %arg8[%c0_50, %c0_51] : memref<1x128xf32, #tpu.memory_space<vmem>>, vector<1x128xf32>
    %130 = vector.shape_cast %129 : vector<1x128xf32> to vector<128xf32>
    %131 = vector.shape_cast %130 : vector<128xf32> to vector<1x128xf32>
    %132 = vector.broadcast %131 : vector<1x128xf32> to vector<128x128xf32>
    %133 = arith.addf %128, %132 : vector<128x128xf32>
    %cst_52 = arith.constant 5.000000e-01 : f32
    %134 = vector.broadcast %cst_52 : f32 to vector<128x128xf32>
    %135 = arith.mulf %134, %133 : vector<128x128xf32>
    %136 = arith.mulf %133, %133 : vector<128x128xf32>
    %137 = arith.mulf %136, %133 : vector<128x128xf32>
    %cst_53 = arith.constant 4.471500e-02 : f32
    %138 = vector.broadcast %cst_53 : f32 to vector<128x128xf32>
    %139 = arith.mulf %138, %137 : vector<128x128xf32>
    %140 = arith.addf %133, %139 : vector<128x128xf32>
    %cst_54 = arith.constant 0.797884583 : f32
    %141 = vector.broadcast %cst_54 : f32 to vector<128x128xf32>
    %142 = arith.mulf %141, %140 : vector<128x128xf32>
    %143 = math.tanh %142 : vector<128x128xf32>
    %cst_55 = arith.constant 1.000000e+00 : f32
    %144 = vector.broadcast %cst_55 : f32 to vector<128x128xf32>
    %145 = arith.addf %144, %143 : vector<128x128xf32>
    %146 = arith.mulf %135, %145 : vector<128x128xf32>
    %147 = arith.truncf %146 : vector<128x128xf32> to vector<128x128xbf16>
    %c0_56 = arith.constant 0 : index
    %c0_57 = arith.constant 0 : index
    %148 = vector.load %arg9[%c0_56, %c0_57] : memref<128x128xbf16, #tpu.memory_space<vmem>>, vector<128x128xbf16>
    %cst_58 = arith.constant dense<0.000000e+00> : vector<128x128xf32>
    %149 = tpu.matmul %147, %148, %cst_58 {dimension_numbers = #tpu.dot_dimension_numbers<[1], [0], [0], [1], [0, 0, 1, 1], [], []>} : vector<128x128xbf16>, vector<128x128xbf16>, vector<128x128xf32> -> vector<128x128xf32>
    %c0_59 = arith.constant 0 : index
    %c0_60 = arith.constant 0 : index
    %150 = vector.load %arg10[%c0_59, %c0_60] : memref<1x128xf32, #tpu.memory_space<vmem>>, vector<1x128xf32>
    %151 = vector.shape_cast %150 : vector<1x128xf32> to vector<128xf32>
    %152 = vector.shape_cast %151 : vector<128xf32> to vector<1x128xf32>
    %153 = vector.broadcast %152 : vector<1x128xf32> to vector<128x128xf32>
    %154 = arith.addf %149, %153 : vector<128x128xf32>
    %c0_61 = arith.constant 0 : index
    %c0_62 = arith.constant 0 : index
    %155 = vector.load %arg11[%c0_61, %c0_62] : memref<1x128xf32, #tpu.memory_space<vmem>>, vector<1x128xf32>
    %156 = vector.shape_cast %155 : vector<1x128xf32> to vector<128xf32>
    %157 = vector.shape_cast %156 : vector<128xf32> to vector<1x128xf32>
    %158 = vector.broadcast %157 : vector<1x128xf32> to vector<128x128xf32>
    %159 = arith.mulf %154, %158 : vector<128x128xf32>
    %160 = arith.addf %93, %159 : vector<128x128xf32>
    %c0_63 = arith.constant 0 : index
    %c0_64 = arith.constant 0 : index
    %c0_65 = arith.constant 0 : index
    %161 = vector.load %arg12[%c0_63, %c0_64, %c0_65] : memref<1x128x128xf32, #tpu.memory_space<vmem>>, vector<1x128x128xf32>
    %162 = vector.shape_cast %161 : vector<1x128x128xf32> to vector<128x128xf32>
    %163 = vector.shape_cast %160 : vector<128x128xf32> to vector<1x128x128xf32>
    tpu.vector_store %arg12[%c0_63, %c0_64, %c0_65], %163 {strides = array<i32>} : memref<1x128x128xf32, #tpu.memory_space<vmem>>, vector<1x128x128xf32>,
    return
  }
  func.func @transform_1(%arg0: i32, %arg1: i32) -> (i32, i32) {
    %c0_i32 = arith.constant 0 : i32
    %c0_i32_0 = arith.constant 0 : i32
    %c0_i32_1 = arith.constant 0 : i32
    return %c0_i32, %c0_i32_0 : i32, i32
  }
  func.func @transform_2(%arg0: i32, %arg1: i32) -> (i32, i32) {
    %c0_i32 = arith.constant 0 : i32
    %c0_i32_0 = arith.constant 0 : i32
    %c0_i32_1 = arith.constant 0 : i32
    return %c0_i32, %c0_i32_0 : i32, i32
  }
  func.func @transform_3(%arg0: i32, %arg1: i32) -> (i32, i32) {
    %c0_i32 = arith.constant 0 : i32
    %c0_i32_0 = arith.constant 0 : i32
    %c0_i32_1 = arith.constant 0 : i32
    return %c0_i32, %c0_i32_0 : i32, i32
  }
  func.func @transform_4(%arg0: i32, %arg1: i32) -> (i32, i32) {
    %c0_i32 = arith.constant 0 : i32
    %c0_i32_0 = arith.constant 0 : i32
    %c0_i32_1 = arith.constant 0 : i32
    return %c0_i32, %c0_i32_0 : i32, i32
  }
  func.func @transform_5(%arg0: i32, %arg1: i32) -> (i32, i32) {
    %c0_i32 = arith.constant 0 : i32
    %c0_i32_0 = arith.constant 0 : i32
    %c0_i32_1 = arith.constant 0 : i32
    return %c0_i32, %c0_i32_0 : i32, i32
  }
  func.func @transform_6(%arg0: i32, %arg1: i32) -> (i32, i32) {
    %c0_i32 = arith.constant 0 : i32
    %c0_i32_0 = arith.constant 0 : i32
    %c0_i32_1 = arith.constant 0 : i32
    return %c0_i32, %c0_i32_0 : i32, i32
  }
  func.func @transform_7(%arg0: i32, %arg1: i32) -> (i32, i32) {
    %c0_i32 = arith.constant 0 : i32
    %c0_i32_0 = arith.constant 0 : i32
    %c0_i32_1 = arith.constant 0 : i32
    return %c0_i32, %c0_i32_0 : i32, i32
  }
  func.func @transform_8(%arg0: i32, %arg1: i32) -> (i32, i32) {
    %c0_i32 = arith.constant 0 : i32
    %c0_i32_0 = arith.constant 0 : i32
    %c0_i32_1 = arith.constant 0 : i32
    return %c0_i32, %c0_i32_0 : i32, i32
  }
  func.func @transform_9(%arg0: i32, %arg1: i32) -> (i32, i32) {
    %c0_i32 = arith.constant 0 : i32
    %c0_i32_0 = arith.constant 0 : i32
    %c0_i32_1 = arith.constant 0 : i32
    return %c0_i32, %c0_i32_0 : i32, i32
  }
  func.func @transform_10(%arg0: i32, %arg1: i32) -> (i32, i32, i32) {
    %c0_i32 = arith.constant 0 : i32
    %c0_i32_0 = arith.constant 0 : i32
    return %arg0, %arg1, %c0_i32 : i32, i32, i32
  }
}

</mosaic_0001>

<llo_original>
// kernel: tpu_custom_call.1
$region0: #{tpu_custom_call.1}
  #allocation0 [shape = 'u32[]', space=smem, size = 0x4, offset = 0x4, fixed_abs, tag = 'smem constant byte address 0x4 - core index']
  #allocation1 [shape = 'u32[72,128]{1,0:T(1,128)}', space=vmem, size = 0x9000, scoped, tag = 'internal scratch']
  #allocation2 [shape = 'f32[2,10,18,128]{3,2,1,0:T(8,128)}', space=vmem, size = 0x3c000, scoped, tag = 'scratch operand']
  #allocation3 [shape = 's32[2]{0}', space=sflag, size = 0x8, scoped, tag = 'scratch operand']
  #allocation6 [shape = 's32[]', space=sflag, size = 0x4, offset = 0, fixed_abs, tag = 'sflag constant byte address 0x0 - dummy sync flag']
  #allocation7 [shape = 's32[]', space=sflag, size = 0x4, offset = 0, fixed_abs, tag = 'sflag constant byte address 0x0 - dummy sync flag']
  %s0 = inlined_call_operand.vmem [shape: f32[2,18,18,128], index: 0, kind: input, shape index: {}]
  %s1 = inlined_call_operand.vmem [shape: f32[9,128], index: 1, kind: input, shape index: {}]
  %s2 = inlined_call_operand.vmem [shape: f32[1,128], index: 2, kind: input, shape index: {}]
  %s3 = inlined_call_operand.vmem [shape: f32[1,128], index: 3, kind: input, shape index: {}]
  %s4 = inlined_call_operand.vmem [shape: f32[1,128], index: 4, kind: input, shape index: {}]
  %s5 = inlined_call_operand.vmem [shape: bf16[128,128], index: 5, kind: input, shape index: {}]
  %s6 = inlined_call_operand.vmem [shape: f32[1,128], index: 6, kind: input, shape index: {}]
  %s7 = inlined_call_operand.vmem [shape: bf16[128,128], index: 7, kind: input, shape index: {}]
  %s8 = inlined_call_operand.vmem [shape: f32[1,128], index: 8, kind: input, shape index: {}]
  %s9 = inlined_call_operand.vmem [shape: f32[1,128], index: 9, kind: input, shape index: {}]
  %s10 = inlined_call_operand.hbm [shape: f32[2,256,128], index: 10, kind: output, shape index: {}]
  %s11 = sld [smem:[#allocation0]]
  $region121: #{tpu_custom_call.1} parent=0
    _
  %s13 = ssub.s32 1, %s11
  %s14 = scalar_select 0, %s13, %s11
  $region1: #{tpu_custom_call.1} parent=0
    #allocation4 [shape = 'u8[131072]{0}', space=vmem, size = 0x20000, scoped, tag = 'output window, operand 0']
    #allocation5 [shape = 's32[2]{0}', space=sflag, size = 0x8, scoped, tag = 'scoped memory for tpu_custom_call.1']
    %15 = vsyncpa [#allocation5], 0
    %s16 = scalar_lea.sflag [#allocation5], 1
    %17 = vsyncpa %s16, 0
    loop: start=0, step=1, limit=6
    $region2: #{tpu_custom_call.1} parent=1 // loop_pre_header
      _
    $region3: #{tpu_custom_call.1} parent=1 // loop_header
      %s19 = sphi 0, %s23
      %p20 = scmp.ge.s32.totalorder %s19, 6
      %s26 = sphi 0, %s38
      %s27 = sphi 0, %s34
      %s28 = sphi 0, %s26
      %s29 = sphi 0, %s27
      %s30 = sphi 0, %s28
      %s31 = sphi 0, %s29
      %s39 = sphi 0, %s39
      %s41 = sphi 0, %s39
      %s42 = sphi 0, %s41
      %s56 = sphi 0, %s42
      %s60 = sphi 0, %s60
      %s62 = sphi 0, %s60
      %s63 = sphi 0, %s62
      %s77 = sphi 0, %s63
      %s81 = sphi 0, %s81
      %s83 = sphi 0, %s81
      %s84 = sphi 0, %s83
      %s98 = sphi 0, %s84
      %s102 = sphi 0, %s102
      %s104 = sphi 0, %s102
      %s105 = sphi 0, %s104
      %s119 = sphi 0, %s105
      %s123 = sphi 0, %s123
      %s125 = sphi 0, %s123
      %s126 = sphi 0, %s125
      %s140 = sphi 0, %s126
      %s144 = sphi 0, %s144
      %s146 = sphi 0, %s144
      %s147 = sphi 0, %s146
      %s161 = sphi 0, %s147
      %s165 = sphi 0, %s165
      %s167 = sphi 0, %s165
      %s168 = sphi 0, %s167
      %s182 = sphi 0, %s168
      %s186 = sphi 0, %s186
      %s188 = sphi 0, %s186
      %s189 = sphi 0, %s188
      %s203 = sphi 0, %s189
      %s207 = sphi 0, %s207
      %s209 = sphi 0, %s207
      %s210 = sphi 0, %s209
      %s224 = sphi 0, %s210
      %s232 = sphi 0, %s234
      %s235 = sphi 0, %s232
      %s236 = sphi 0, %s235
      %s252 = sphi 0, %s236
    $region4: #{tpu_custom_call.1} parent=1 // loop_header_branch
      %22 = sbr.rel (%p20) target = $region8
    $region5: #{tpu_custom_call.1} parent=1 // loop_body
      %s24 = ssub.s32 %s19, 1
      %s25 = ssub.s32 %s19, 2
      %s32 = sadd.s32 1, %s27
      %p33 = scmp.ge.s32.totalorder %s32, 2
      %s34 = scalar_select %p33, 0, %s32
      %s35 = sadd.s32 1, %s26
      %s36 = scalar_select %p33, %s35, %s26
      %p37 = scmp.ge.s32.totalorder %s36, 2
      %s38 = scalar_select %p37, 0, %s36
      %s40 = sadd.s32 %s39, 1
      %p43 = scmp.eq.s32.totalorder %s19, 3
      %p44 = scmp.ne.s32.totalorder %s39, %s41
      %p45 = scmp.eq.s32.totalorder %s19, 0
      %p46 = por %p44, %p45
      %p47 = scmp.ne.s32.totalorder %s39, %s41
      %p48 = scmp.eq.s32.totalorder %s24, 3
      %p49 = por %p47, %p48
      %p50 = scmp.ne.s32.totalorder %s41, %s42
      %p51 = scmp.eq.s32.totalorder %s24, 0
      %p52 = por %p50, %p51
      %p53 = scmp.ne.s32.totalorder %s41, %s42
      %p54 = scmp.eq.s32.totalorder %s25, 3
      %p55 = por %p53, %p54
      %p57 = scmp.ne.s32.totalorder %s42, %s56
      %p58 = scmp.eq.s32.totalorder %s25, 0
      %p59 = por %p57, %p58
      %s61 = sadd.s32 %s60, 1
      %p64 = scmp.eq.s32.totalorder %s19, 3
      %p65 = scmp.ne.s32.totalorder %s60, %s62
      %p66 = scmp.eq.s32.totalorder %s19, 0
      %p67 = por %p65, %p66
      %p68 = scmp.ne.s32.totalorder %s60, %s62
      %p69 = scmp.eq.s32.totalorder %s24, 3
      %p70 = por %p68, %p69
      %p71 = scmp.ne.s32.totalorder %s62, %s63
      %p72 = scmp.eq.s32.totalorder %s24, 0
      %p73 = por %p71, %p72
      %p74 = scmp.ne.s32.totalorder %s62, %s63
      %p75 = scmp.eq.s32.totalorder %s25, 3
      %p76 = por %p74, %p75
      %p78 = scmp.ne.s32.totalorder %s63, %s77
      %p79 = scmp.eq.s32.totalorder %s25, 0
      %p80 = por %p78, %p79
      %s82 = sadd.s32 %s81, 1
      %p85 = scmp.eq.s32.totalorder %s19, 3
      %p86 = scmp.ne.s32.totalorder %s81, %s83
      %p87 = scmp.eq.s32.totalorder %s19, 0
      %p88 = por %p86, %p87
      %p89 = scmp.ne.s32.totalorder %s81, %s83
      %p90 = scmp.eq.s32.totalorder %s24, 3
      %p91 = por %p89, %p90
      %p92 = scmp.ne.s32.totalorder %s83, %s84
      %p93 = scmp.eq.s32.totalorder %s24, 0
      %p94 = por %p92, %p93
      %p95 = scmp.ne.s32.totalorder %s83, %s84
      %p96 = scmp.eq.s32.totalorder %s25, 3
      %p97 = por %p95, %p96
      %p99 = scmp.ne.s32.totalorder %s84, %s98
      %p100 = scmp.eq.s32.totalorder %s25, 0
      %p101 = por %p99, %p100
      %s103 = sadd.s32 %s102, 1
      %p106 = scmp.eq.s32.totalorder %s19, 3
      %p107 = scmp.ne.s32.totalorder %s102, %s104
      %p108 = scmp.eq.s32.totalorder %s19, 0
      %p109 = por %p107, %p108
      %p110 = scmp.ne.s32.totalorder %s102, %s104
      %p111 = scmp.eq.s32.totalorder %s24, 3
      %p112 = por %p110, %p111
      %p113 = scmp.ne.s32.totalorder %s104, %s105
      %p114 = scmp.eq.s32.totalorder %s24, 0
      %p115 = por %p113, %p114
      %p116 = scmp.ne.s32.totalorder %s104, %s105
      %p117 = scmp.eq.s32.totalorder %s25, 3
      %p118 = por %p116, %p117
      %p120 = scmp.ne.s32.totalorder %s105, %s119
      %p121 = scmp.eq.s32.totalorder %s25, 0
      %p122 = por %p120, %p121
      %s124 = sadd.s32 %s123, 1
      %p127 = scmp.eq.s32.totalorder %s19, 3
      %p128 = scmp.ne.s32.totalorder %s123, %s125
      %p129 = scmp.eq.s32.totalorder %s19, 0
      %p130 = por %p128, %p129
      %p131 = scmp.ne.s32.totalorder %s123, %s125
      %p132 = scmp.eq.s32.totalorder %s24, 3
      %p133 = por %p131, %p132
      %p134 = scmp.ne.s32.totalorder %s125, %s126
      %p135 = scmp.eq.s32.totalorder %s24, 0
      %p136 = por %p134, %p135
      %p137 = scmp.ne.s32.totalorder %s125, %s126
      %p138 = scmp.eq.s32.totalorder %s25, 3
      %p139 = por %p137, %p138
      %p141 = scmp.ne.s32.totalorder %s126, %s140
      %p142 = scmp.eq.s32.totalorder %s25, 0
      %p143 = por %p141, %p142
      %s145 = sadd.s32 %s144, 1
      %p148 = scmp.eq.s32.totalorder %s19, 3
      %p149 = scmp.ne.s32.totalorder %s144, %s146
      %p150 = scmp.eq.s32.totalorder %s19, 0
      %p151 = por %p149, %p150
      %p152 = scmp.ne.s32.totalorder %s144, %s146
      %p153 = scmp.eq.s32.totalorder %s24, 3
      %p154 = por %p152, %p153
      %p155 = scmp.ne.s32.totalorder %s146, %s147
      %p156 = scmp.eq.s32.totalorder %s24, 0
      %p157 = por %p155, %p156
      %p158 = scmp.ne.s32.totalorder %s146, %s147
      %p159 = scmp.eq.s32.totalorder %s25, 3
      %p160 = por %p158, %p159
      %p162 = scmp.ne.s32.totalorder %s147, %s161
      %p163 = scmp.eq.s32.totalorder %s25, 0
      %p164 = por %p162, %p163
      %s166 = sadd.s32 %s165, 1
      %p169 = scmp.eq.s32.totalorder %s19, 3
      %p170 = scmp.ne.s32.totalorder %s165, %s167
      %p171 = scmp.eq.s32.totalorder %s19, 0
      %p172 = por %p170, %p171
      %p173 = scmp.ne.s32.totalorder %s165, %s167
      %p174 = scmp.eq.s32.totalorder %s24, 3
      %p175 = por %p173, %p174
      %p176 = scmp.ne.s32.totalorder %s167, %s168
      %p177 = scmp.eq.s32.totalorder %s24, 0
      %p178 = por %p176, %p177
      %p179 = scmp.ne.s32.totalorder %s167, %s168
      %p180 = scmp.eq.s32.totalorder %s25, 3
      %p181 = por %p179, %p180
      %p183 = scmp.ne.s32.totalorder %s168, %s182
      %p184 = scmp.eq.s32.totalorder %s25, 0
      %p185 = por %p183, %p184
      %s187 = sadd.s32 %s186, 1
      %p190 = scmp.eq.s32.totalorder %s19, 3
      %p191 = scmp.ne.s32.totalorder %s186, %s188
      %p192 = scmp.eq.s32.totalorder %s19, 0
      %p193 = por %p191, %p192
      %p194 = scmp.ne.s32.totalorder %s186, %s188
      %p195 = scmp.eq.s32.totalorder %s24, 3
      %p196 = por %p194, %p195
      %p197 = scmp.ne.s32.totalorder %s188, %s189
      %p198 = scmp.eq.s32.totalorder %s24, 0
      %p199 = por %p197, %p198
      %p200 = scmp.ne.s32.totalorder %s188, %s189
      %p201 = scmp.eq.s32.totalorder %s25, 3
      %p202 = por %p200, %p201
      %p204 = scmp.ne.s32.totalorder %s189, %s203
      %p205 = scmp.eq.s32.totalorder %s25, 0
      %p206 = por %p204, %p205
      %s208 = sadd.s32 %s207, 1
      %p211 = scmp.eq.s32.totalorder %s19, 3
      %p212 = scmp.ne.s32.totalorder %s207, %s209
      %p213 = scmp.eq.s32.totalorder %s19, 0
      %p214 = por %p212, %p213
      %p215 = scmp.ne.s32.totalorder %s207, %s209
      %p216 = scmp.eq.s32.totalorder %s24, 3
      %p217 = por %p215, %p216
      %p218 = scmp.ne.s32.totalorder %s209, %s210
      %p219 = scmp.eq.s32.totalorder %s24, 0
      %p220 = por %p218, %p219
      %p221 = scmp.ne.s32.totalorder %s209, %s210
      %p222 = scmp.eq.s32.totalorder %s25, 3
      %p223 = por %p221, %p222
      %p225 = scmp.ne.s32.totalorder %s210, %s224
      %p226 = scmp.eq.s32.totalorder %s25, 0
      %p227 = por %p225, %p226
      %s228 = ssub.s32 %s26, %s38
      %s229 = ssub.s32 %s27, %s34
      %s230 = sor.u32 %s228, %s229
      %p231 = scmp.eq.s32.totalorder %s230, 0
      %s233 = sadd.s32 %s232, 1
      %s234 = scalar_select %p231, %s232, %s233
      %p237 = pneg %p231
      %p238 = scmp.eq.s32.totalorder %s19, 3
      %p239 = por %p237, %p238
      %p240 = scmp.ne.s32.totalorder %s232, %s235
      %p241 = scmp.eq.s32.totalorder %s19, 0
      %p242 = por %p240, %p241
      %p243 = scmp.ne.s32.totalorder %s232, %s235
      %p244 = scmp.eq.s32.totalorder %s24, 3
      %p245 = por %p243, %p244
      %p246 = scmp.ne.s32.totalorder %s235, %s236
      %p247 = scmp.eq.s32.totalorder %s24, 0
      %p248 = por %p246, %p247
      %p249 = scmp.ne.s32.totalorder %s235, %s236
      %p250 = scmp.eq.s32.totalorder %s25, 3
      %p251 = por %p249, %p250
      %p253 = scmp.ne.s32.totalorder %s236, %s252
      %p254 = scmp.eq.s32.totalorder %s25, 0
      %p255 = por %p253, %p254
      %p256 = scmp.le.s32.totalorder 1, %s19
      %p257 = scmp.lt.s32.totalorder %s19, 5
      %p258 = pnand %p256, %p257
      %p259 = pneg %p258
      // Predicated region
      $region9: #{tpu_custom_call.1} parent=5 // pred_check
        _
      $region10: #{tpu_custom_call.1} parent=5 // pred_check_branch
        %261 = sbr.rel (%p258) target = $region12
      $region11: #{tpu_custom_call.1} parent=5 // pred_region
        %s262 = ssub.s32 %s19, 1
        // Predicated region
        $region13: #{tpu_custom_call.1} parent=11 // pred_check
          %p263 = pneg %p52
        $region14: #{tpu_custom_call.1} parent=11 // pred_check_branch
          %265 = sbr.rel (%p263) target = $region16
        $region15: #{tpu_custom_call.1} parent=11 // pred_region
          _
        $region16: #{tpu_custom_call.1} parent=11 // pred_fallthru
          _
        // Predicated region
        $region17: #{tpu_custom_call.1} parent=11 // pred_check
          %p266 = pneg %p73
        $region18: #{tpu_custom_call.1} parent=11 // pred_check_branch
          %268 = sbr.rel (%p266) target = $region20
        $region19: #{tpu_custom_call.1} parent=11 // pred_region
          _
        $region20: #{tpu_custom_call.1} parent=11 // pred_fallthru
          _
        // Predicated region
        $region21: #{tpu_custom_call.1} parent=11 // pred_check
          %p269 = pneg %p94
        $region22: #{tpu_custom_call.1} parent=11 // pred_check_branch
          %271 = sbr.rel (%p269) target = $region24
        $region23: #{tpu_custom_call.1} parent=11 // pred_region
          _
        $region24: #{tpu_custom_call.1} parent=11 // pred_fallthru
          _
        // Predicated region
        $region25: #{tpu_custom_call.1} parent=11 // pred_check
          %p272 = pneg %p115
        $region26: #{tpu_custom_call.1} parent=11 // pred_check_branch
          %274 = sbr.rel (%p272) target = $region28
        $region27: #{tpu_custom_call.1} parent=11 // pred_region
          _
        $region28: #{tpu_custom_call.1} parent=11 // pred_fallthru
          _
        // Predicated region
        $region29: #{tpu_custom_call.1} parent=11 // pred_check
          %p275 = pneg %p136
        $region30: #{tpu_custom_call.1} parent=11 // pred_check_branch
          %277 = sbr.rel (%p275) target = $region32
        $region31: #{tpu_custom_call.1} parent=11 // pred_region
          _
        $region32: #{tpu_custom_call.1} parent=11 // pred_fallthru
          _
        // Predicated region
        $region33: #{tpu_custom_call.1} parent=11 // pred_check
          %p278 = pneg %p157
        $region34: #{tpu_custom_call.1} parent=11 // pred_check_branch
          %280 = sbr.rel (%p278) target = $region36
        $region35: #{tpu_custom_call.1} parent=11 // pred_region
          _
        $region36: #{tpu_custom_call.1} parent=11 // pred_fallthru
          _
        // Predicated region
        $region37: #{tpu_custom_call.1} parent=11 // pred_check
          %p281 = pneg %p178
        $region38: #{tpu_custom_call.1} parent=11 // pred_check_branch
          %283 = sbr.rel (%p281) target = $region40
        $region39: #{tpu_custom_call.1} parent=11 // pred_region
          _
        $region40: #{tpu_custom_call.1} parent=11 // pred_fallthru
          _
        // Predicated region
        $region41: #{tpu_custom_call.1} parent=11 // pred_check
          %p284 = pneg %p199
        $region42: #{tpu_custom_call.1} parent=11 // pred_check_branch
          %286 = sbr.rel (%p284) target = $region44
        $region43: #{tpu_custom_call.1} parent=11 // pred_region
          _
        $region44: #{tpu_custom_call.1} parent=11 // pred_fallthru
          _
        // Predicated region
        $region45: #{tpu_custom_call.1} parent=11 // pred_check
          %p287 = pneg %p220
        $region46: #{tpu_custom_call.1} parent=11 // pred_check_branch
          %289 = sbr.rel (%p287) target = $region48
        $region47: #{tpu_custom_call.1} parent=11 // pred_region
          _
        $region48: #{tpu_custom_call.1} parent=11 // pred_fallthru
          _
      $region12: #{tpu_custom_call.1} parent=5 // pred_fallthru
        _
      %p290 = scmp.lt.s32.totalorder %s19, 4
      // Predicated region
      $region49: #{tpu_custom_call.1} parent=5 // pred_check
        %p291 = pneg %p290
      $region50: #{tpu_custom_call.1} parent=5 // pred_check_branch
        %293 = sbr.rel (%p291) target = $region52
      $region51: #{tpu_custom_call.1} parent=5 // pred_region
        _
      $region52: #{tpu_custom_call.1} parent=5 // pred_fallthru
        _
      %p294 = scmp.le.s32.totalorder 1, %s19
      %p295 = scmp.lt.s32.totalorder %s19, 5
      %p296 = pnand %p294, %p295
      %p297 = pneg %p296
      // Predicated region
      $region53: #{tpu_custom_call.1} parent=5 // pred_check
        _
      $region54: #{tpu_custom_call.1} parent=5 // pred_check_branch
        %299 = sbr.rel (%p296) target = $region56
      $region55: #{tpu_custom_call.1} parent=5 // pred_region
        %s300 = ssub.s32 %s19, 1
        %p301 = pneg %p52
        %p302 = pneg %p49
        %p303 = pneg %p73
        %p304 = pneg %p70
        %p305 = pneg %p94
        %p306 = pneg %p91
        %p307 = pneg %p115
        %p308 = pneg %p112
        %p309 = pneg %p136
        %p310 = pneg %p133
        %p311 = pneg %p157
        %p312 = pneg %p154
        %p313 = pneg %p178
        %p314 = pneg %p175
        %p315 = pneg %p199
        %p316 = pneg %p196
        %p317 = pneg %p220
        %p318 = pneg %p217
        %p319 = pneg %p248
        %p320 = pneg %p245
        %s321 = sand.u32 %s235, 1
        %s322 = scalar_lea.sflag [#allocation5], %s321
        %s323 = sand.u32 %s235, 1
        %s324 = smul.addr %s323, 128
        %s325 = scalar_lea.vmem [#allocation4], %s324
        %s326 = smul.u32 16, %s29
        %s327 = sand.u32 %s29, 1
        %p328 = scmp.eq.s32.totalorder %s29, 0
        // Predicated region
        $region57: #{tpu_custom_call.1} parent=55 // pred_check
          %p329 = pneg %p328
        $region58: #{tpu_custom_call.1} parent=55 // pred_check_branch
          %331 = sbr.rel (%p329) target = $region60
        $region59: #{tpu_custom_call.1} parent=55 // pred_region
          %s332 = smul.u32 %s28, 432
          %s333 = scalar_lea.vmem %s0, %s332
          // Predicated region
          $region61: #{tpu_custom_call.1} parent=59 // pred_check
            _
          $region62: #{tpu_custom_call.1} parent=59 // pred_check_branch
            %335 = sbr.rel (0) target = $region64
          $region63: #{tpu_custom_call.1} parent=59 // pred_region
            %s336 = scalar_lea.vmem %s333, 16
            %s337 = scalar_lea.vmem [#allocation2], 16
            loop: start=0, step=1, limit=1
            $region65: #{tpu_custom_call.1} parent=63 // loop_pre_header
              _
            $region66: #{tpu_custom_call.1} parent=63 // loop_header
              %s339 = sphi 0, %s343
              %p340 = scmp.ge.s32.totalorder %s339, 1
              %s344 = sphi %s333, %s333
              %s345 = sphi [#allocation2], [#allocation2]
            $region67: #{tpu_custom_call.1} parent=63 // loop_header_branch
              %342 = sbr.rel (%p340) target = $region71
            $region68: #{tpu_custom_call.1} parent=63 // loop_body
              %v346 = vld [vmem:[%s344] sm:$0xff]
              %347 = vst [vmem:[%s345] sm:$0xff] %v346
              %v348 = vld [vmem:[%s344 + $0x8] sm:$0xff]
              %349 = vst [vmem:[%s345 + $0x8] sm:$0xff] %v348
              %v350 = vld [vmem:[%s344 + $0x18] sm:$0xff]
              %351 = vst [vmem:[%s345 + $0x18] sm:$0xff] %v350
              %v352 = vld [vmem:[%s344 + $0x20] sm:$0xff]
              %353 = vst [vmem:[%s345 + $0x20] sm:$0xff] %v352
              %v354 = vld [vmem:[%s344 + $0x30] sm:$0xff]
              %355 = vst [vmem:[%s345 + $0x30] sm:$0xff] %v354
              %v356 = vld [vmem:[%s344 + $0x38] sm:$0xff]
              %357 = vst [vmem:[%s345 + $0x38] sm:$0xff] %v356
              %v358 = vld [vmem:[%s344 + $0x48] sm:$0xff]
              %359 = vst [vmem:[%s345 + $0x48] sm:$0xff] %v358
              %v360 = vld [vmem:[%s344 + $0x50] sm:$0xff]
              %361 = vst [vmem:[%s345 + $0x50] sm:$0xff] %v360
              %v362 = vld [vmem:[%s344 + $0x60] sm:$0xff]
              %363 = vst [vmem:[%s345 + $0x60] sm:$0xff] %v362
              %v364 = vld [vmem:[%s344 + $0x68] sm:$0xff]
              %365 = vst [vmem:[%s345 + $0x68] sm:$0xff] %v364
              %v366 = vld [vmem:[%s344 + $0x78] sm:$0xff]
              %367 = vst [vmem:[%s345 + $0x78] sm:$0xff] %v366
              %v368 = vld [vmem:[%s344 + $0x80] sm:$0xff]
              %369 = vst [vmem:[%s345 + $0x80] sm:$0xff] %v368
              %v370 = vld [vmem:[%s344 + $0x90] sm:$0xff]
              %371 = vst [vmem:[%s345 + $0x90] sm:$0xff] %v370
              %v372 = vld [vmem:[%s344 + $0x98] sm:$0xff]
              %373 = vst [vmem:[%s345 + $0x98] sm:$0xff] %v372
              %v374 = vld [vmem:[%s344 + $0xa8] sm:$0xff]
              %375 = vst [vmem:[%s345 + $0xa8] sm:$0xff] %v374
              %v376 = vld [vmem:[%s344 + $0xb0] sm:$0xff]
              %377 = vst [vmem:[%s345 + $0xb0] sm:$0xff] %v376
              %v378 = vld [vmem:[%s344 + $0xc0] sm:$0xff]
              %379 = vst [vmem:[%s345 + $0xc0] sm:$0xff] %v378
              %v380 = vld [vmem:[%s344 + $0xc8] sm:$0xff]
              %381 = vst [vmem:[%s345 + $0xc8] sm:$0xff] %v380
              %v382 = vld [vmem:[%s344 + $0xd8] sm:$0xff]
              %383 = vst [vmem:[%s345 + $0xd8] sm:$0xff] %v382
              %v384 = vld [vmem:[%s344 + $0xe0] sm:$0xff]
              %385 = vst [vmem:[%s345 + $0xe0] sm:$0xff] %v384
            $region69: #{tpu_custom_call.1} parent=63 // loop_footer
              %s343 = sadd.s32 1, %s339
            $region70: #{tpu_custom_call.1} parent=63 // loop_footer_branch
              %338 = sbr.rel target = $region66
            $region71: #{tpu_custom_call.1} parent=63 // loop_exit
              _
            %s387 = ssub.s32 4, 1
            loop: start=0, step=1, limit=1
            $region72: #{tpu_custom_call.1} parent=63 // loop_pre_header
              _
            $region73: #{tpu_custom_call.1} parent=63 // loop_header
              %s389 = sphi 0, %s393
              %p390 = scmp.ge.s32.totalorder %s389, 1
              %s394 = sphi %s336, %s336
              %s395 = sphi %s337, %s337
            $region74: #{tpu_custom_call.1} parent=63 // loop_header_branch
              %392 = sbr.rel (%p390) target = $region78
            $region75: #{tpu_custom_call.1} parent=63 // loop_body
              %v396 = vld [vmem:[%s394] sm:%s387]
              %397 = vst [vmem:[%s395] sm:%s387] %v396
              %v398 = vld [vmem:[%s394 + $0x18] sm:%s387]
              %399 = vst [vmem:[%s395 + $0x18] sm:%s387] %v398
              %v400 = vld [vmem:[%s394 + $0x30] sm:%s387]
              %401 = vst [vmem:[%s395 + $0x30] sm:%s387] %v400
              %v402 = vld [vmem:[%s394 + $0x48] sm:%s387]
              %403 = vst [vmem:[%s395 + $0x48] sm:%s387] %v402
              %v404 = vld [vmem:[%s394 + $0x60] sm:%s387]
              %405 = vst [vmem:[%s395 + $0x60] sm:%s387] %v404
              %v406 = vld [vmem:[%s394 + $0x78] sm:%s387]
              %407 = vst [vmem:[%s395 + $0x78] sm:%s387] %v406
              %v408 = vld [vmem:[%s394 + $0x90] sm:%s387]
              %409 = vst [vmem:[%s395 + $0x90] sm:%s387] %v408
              %v410 = vld [vmem:[%s394 + $0xa8] sm:%s387]
              %411 = vst [vmem:[%s395 + $0xa8] sm:%s387] %v410
              %v412 = vld [vmem:[%s394 + $0xc0] sm:%s387]
              %413 = vst [vmem:[%s395 + $0xc0] sm:%s387] %v412
              %v414 = vld [vmem:[%s394 + $0xd8] sm:%s387]
              %415 = vst [vmem:[%s395 + $0xd8] sm:%s387] %v414
            $region76: #{tpu_custom_call.1} parent=63 // loop_footer
              %s393 = sadd.s32 1, %s389
            $region77: #{tpu_custom_call.1} parent=63 // loop_footer_branch
              %388 = sbr.rel target = $region73
            $region78: #{tpu_custom_call.1} parent=63 // loop_exit
              _
          $region64: #{tpu_custom_call.1} parent=59 // pred_fallthru
            _
          // Predicated region
          $region79: #{tpu_custom_call.1} parent=59 // pred_check
            _
          $region80: #{tpu_custom_call.1} parent=59 // pred_check_branch
            %418 = sbr.rel (0) target = $region82
          $region81: #{tpu_custom_call.1} parent=59 // pred_region
            %419 = vsyncadd [#allocation3], 2880
          $region82: #{tpu_custom_call.1} parent=59 // pred_fallthru
            _
        $region60: #{tpu_custom_call.1} parent=55 // pred_fallthru
          _
        %s420 = sadd.s32 %s29, 1
        %p421 = scmp.lt.s32.totalorder %s420, 2
        // Predicated region
        $region83: #{tpu_custom_call.1} parent=55 // pred_check
          %p422 = pneg %p421
        $region84: #{tpu_custom_call.1} parent=55 // pred_check_branch
          %424 = sbr.rel (%p422) target = $region86
        $region85: #{tpu_custom_call.1} parent=55 // pred_region
          %s425 = ssub.s32 1, %s327
          %s426 = smul.u32 %s420, 8
          %s427 = smul.u32 %s426, 24
          %s428 = smul.u32 %s28, 432
          %s429 = sadd.s32 %s427, %s428
          %s430 = scalar_lea.vmem %s0, %s429
          %s431 = smul.u32 %s425, 240
          %s432 = scalar_lea.vmem [#allocation2], %s431
          %s433 = scalar_lea.sflag [#allocation3], %s425
          // Predicated region
          $region87: #{tpu_custom_call.1} parent=85 // pred_check
            _
          $region88: #{tpu_custom_call.1} parent=85 // pred_check_branch
            %435 = sbr.rel (0) target = $region90
          $region89: #{tpu_custom_call.1} parent=85 // pred_region
            %s436 = scalar_lea.vmem %s430, 16
            %s437 = scalar_lea.vmem %s432, 16 [#allocation2]
            loop: start=0, step=1, limit=1
            $region91: #{tpu_custom_call.1} parent=89 // loop_pre_header
              _
            $region92: #{tpu_custom_call.1} parent=89 // loop_header
              %s439 = sphi 0, %s443
              %p440 = scmp.ge.s32.totalorder %s439, 1
              %s444 = sphi %s430, %s430
              %s445 = sphi %s432, %s432
            $region93: #{tpu_custom_call.1} parent=89 // loop_header_branch
              %442 = sbr.rel (%p440) target = $region97
            $region94: #{tpu_custom_call.1} parent=89 // loop_body
              %v446 = vld [vmem:[%s444] sm:$0xff]
              %447 = vst [vmem:[%s445] sm:$0xff] %v446
              %v448 = vld [vmem:[%s444 + $0x8] sm:$0xff]
              %449 = vst [vmem:[%s445 + $0x8] sm:$0xff] %v448
              %v450 = vld [vmem:[%s444 + $0x18] sm:$0xff]
              %451 = vst [vmem:[%s445 + $0x18] sm:$0xff] %v450
              %v452 = vld [vmem:[%s444 + $0x20] sm:$0xff]
              %453 = vst [vmem:[%s445 + $0x20] sm:$0xff] %v452
              %v454 = vld [vmem:[%s444 + $0x30] sm:$0xff]
              %455 = vst [vmem:[%s445 + $0x30] sm:$0xff] %v454
              %v456 = vld [vmem:[%s444 + $0x38] sm:$0xff]
              %457 = vst [vmem:[%s445 + $0x38] sm:$0xff] %v456
              %v458 = vld [vmem:[%s444 + $0x48] sm:$0xff]
              %459 = vst [vmem:[%s445 + $0x48] sm:$0xff] %v458
              %v460 = vld [vmem:[%s444 + $0x50] sm:$0xff]
              %461 = vst [vmem:[%s445 + $0x50] sm:$0xff] %v460
              %v462 = vld [vmem:[%s444 + $0x60] sm:$0xff]
              %463 = vst [vmem:[%s445 + $0x60] sm:$0xff] %v462
              %v464 = vld [vmem:[%s444 + $0x68] sm:$0xff]
              %465 = vst [vmem:[%s445 + $0x68] sm:$0xff] %v464
              %v466 = vld [vmem:[%s444 + $0x78] sm:$0xff]
              %467 = vst [vmem:[%s445 + $0x78] sm:$0xff] %v466
              %v468 = vld [vmem:[%s444 + $0x80] sm:$0xff]
              %469 = vst [vmem:[%s445 + $0x80] sm:$0xff] %v468
              %v470 = vld [vmem:[%s444 + $0x90] sm:$0xff]
              %471 = vst [vmem:[%s445 + $0x90] sm:$0xff] %v470
              %v472 = vld [vmem:[%s444 + $0x98] sm:$0xff]
              %473 = vst [vmem:[%s445 + $0x98] sm:$0xff] %v472
              %v474 = vld [vmem:[%s444 + $0xa8] sm:$0xff]
              %475 = vst [vmem:[%s445 + $0xa8] sm:$0xff] %v474
              %v476 = vld [vmem:[%s444 + $0xb0] sm:$0xff]
              %477 = vst [vmem:[%s445 + $0xb0] sm:$0xff] %v476
              %v478 = vld [vmem:[%s444 + $0xc0] sm:$0xff]
              %479 = vst [vmem:[%s445 + $0xc0] sm:$0xff] %v478
              %v480 = vld [vmem:[%s444 + $0xc8] sm:$0xff]
              %481 = vst [vmem:[%s445 + $0xc8] sm:$0xff] %v480
              %v482 = vld [vmem:[%s444 + $0xd8] sm:$0xff]
              %483 = vst [vmem:[%s445 + $0xd8] sm:$0xff] %v482
              %v484 = vld [vmem:[%s444 + $0xe0] sm:$0xff]
              %485 = vst [vmem:[%s445 + $0xe0] sm:$0xff] %v484
            $region95: #{tpu_custom_call.1} parent=89 // loop_footer
              %s443 = sadd.s32 1, %s439
            $region96: #{tpu_custom_call.1} parent=89 // loop_footer_branch
              %438 = sbr.rel target = $region92
            $region97: #{tpu_custom_call.1} parent=89 // loop_exit
              _
            %s487 = ssub.s32 4, 1
            loop: start=0, step=1, limit=1
            $region98: #{tpu_custom_call.1} parent=89 // loop_pre_header
              _
            $region99: #{tpu_custom_call.1} parent=89 // loop_header
              %s489 = sphi 0, %s493
              %p490 = scmp.ge.s32.totalorder %s489, 1
              %s494 = sphi %s436, %s436
              %s495 = sphi %s437, %s437
            $region100: #{tpu_custom_call.1} parent=89 // loop_header_branch
              %492 = sbr.rel (%p490) target = $region104
            $region101: #{tpu_custom_call.1} parent=89 // loop_body
              %v496 = vld [vmem:[%s494] sm:%s487]
              %497 = vst [vmem:[%s495] sm:%s487] %v496
              %v498 = vld [vmem:[%s494 + $0x18] sm:%s487]
              %499 = vst [vmem:[%s495 + $0x18] sm:%s487] %v498
              %v500 = vld [vmem:[%s494 + $0x30] sm:%s487]
              %501 = vst [vmem:[%s495 + $0x30] sm:%s487] %v500
              %v502 = vld [vmem:[%s494 + $0x48] sm:%s487]
              %503 = vst [vmem:[%s495 + $0x48] sm:%s487] %v502
              %v504 = vld [vmem:[%s494 + $0x60] sm:%s487]
              %505 = vst [vmem:[%s495 + $0x60] sm:%s487] %v504
              %v506 = vld [vmem:[%s494 + $0x78] sm:%s487]
              %507 = vst [vmem:[%s495 + $0x78] sm:%s487] %v506
              %v508 = vld [vmem:[%s494 + $0x90] sm:%s487]
              %509 = vst [vmem:[%s495 + $0x90] sm:%s487] %v508
              %v510 = vld [vmem:[%s494 + $0xa8] sm:%s487]
              %511 = vst [vmem:[%s495 + $0xa8] sm:%s487] %v510
              %v512 = vld [vmem:[%s494 + $0xc0] sm:%s487]
              %513 = vst [vmem:[%s495 + $0xc0] sm:%s487] %v512
              %v514 = vld [vmem:[%s494 + $0xd8] sm:%s487]
              %515 = vst [vmem:[%s495 + $0xd8] sm:%s487] %v514
            $region102: #{tpu_custom_call.1} parent=89 // loop_footer
              %s493 = sadd.s32 1, %s489
            $region103: #{tpu_custom_call.1} parent=89 // loop_footer_branch
              %488 = sbr.rel target = $region99
            $region104: #{tpu_custom_call.1} parent=89 // loop_exit
              _
          $region90: #{tpu_custom_call.1} parent=85 // pred_fallthru
            _
          // Predicated region
          $region105: #{tpu_custom_call.1} parent=85 // pred_check
            _
          $region106: #{tpu_custom_call.1} parent=85 // pred_check_branch
            %518 = sbr.rel (0) target = $region108
          $region107: #{tpu_custom_call.1} parent=85 // pred_region
            %519 = vsyncadd %s433, 2880
          $region108: #{tpu_custom_call.1} parent=85 // pred_fallthru
            _
        $region86: #{tpu_custom_call.1} parent=55 // pred_fallthru
          _
        %s520 = smul.u32 %s327, 240
        %s521 = scalar_lea.vmem [#allocation2], %s520
        %s522 = scalar_lea.sflag [#allocation3], %s327
        %s523 = smul.u32 10, 18
        %s524 = smul.u32 %s523, 1
        %s525 = sshll.u32 %s524, 4
        %526 = dma.done %s522, %s525
        %v527 = vld [vmem:[%s521] sm:$0xff]
        %v528 = vld [vmem:[%s521 + $0x8] sm:$0xff]
        %v529 = vld [vmem:[%s521 + $0x18] sm:$0xff]
        %v530 = vld [vmem:[%s521 + $0x20] sm:$0xff]
        %v531 = vld [vmem:[%s521 + $0x30] sm:$0xff]
        %v532 = vld [vmem:[%s521 + $0x38] sm:$0xff]
        %v533 = vld [vmem:[%s521 + $0x48] sm:$0xff]
        %v534 = vld [vmem:[%s521 + $0x50] sm:$0xff]
        %v535 = vld [vmem:[%s521 + $0x60] sm:$0xff]
        %v536 = vld [vmem:[%s521 + $0x68] sm:$0xff]
        %v537 = vld [vmem:[%s521 + $0x78] sm:$0xff]
        %v538 = vld [vmem:[%s521 + $0x80] sm:$0xff]
        %v539 = vld [vmem:[%s521 + $0x90] sm:$0xff]
        %v540 = vld [vmem:[%s521 + $0x98] sm:$0xff]
        %v541 = vld [vmem:[%s521 + $0xa8] sm:$0xff]
        %v542 = vld [vmem:[%s521 + $0xb0] sm:$0xff]
        %v543 = vld [vmem:[%s521 + $0xc0] sm:$0xff]
        %v544 = vld [vmem:[%s521 + $0xc8] sm:$0xff]
        %v545 = vld [vmem:[%s521 + $0xd8] sm:$0xff]
        %v546 = vld [vmem:[%s521 + $0xe0] sm:$0xff]
        %v547 = vld [vmem:[%s521 + $0x1] sm:$0xff]
        %v548 = vld [vmem:[%s521 + $0x9] sm:$0xff]
        %v549 = vld [vmem:[%s521 + $0x19] sm:$0xff]
        %v550 = vld [vmem:[%s521 + $0x21] sm:$0xff]
        %v551 = vld [vmem:[%s521 + $0x31] sm:$0xff]
        %v552 = vld [vmem:[%s521 + $0x39] sm:$0xff]
        %v553 = vld [vmem:[%s521 + $0x49] sm:$0xff]
        %v554 = vld [vmem:[%s521 + $0x51] sm:$0xff]
        %v555 = vld [vmem:[%s521 + $0x61] sm:$0xff]
        %v556 = vld [vmem:[%s521 + $0x69] sm:$0xff]
        %v557 = vld [vmem:[%s521 + $0x79] sm:$0xff]
        %v558 = vld [vmem:[%s521 + $0x81] sm:$0xff]
        %v559 = vld [vmem:[%s521 + $0x91] sm:$0xff]
        %v560 = vld [vmem:[%s521 + $0x99] sm:$0xff]
        %v561 = vld [vmem:[%s521 + $0xa9] sm:$0xff]
        %v562 = vld [vmem:[%s521 + $0xb1] sm:$0xff]
        %v563 = vld [vmem:[%s521 + $0xc1] sm:$0xff]
        %v564 = vld [vmem:[%s521 + $0xc9] sm:$0xff]
        %v565 = vld [vmem:[%s521 + $0xd9] sm:$0xff]
        %v566 = vld [vmem:[%s521 + $0xe1] sm:$0xff]
        %v567 = vld [vmem:[%s521 + $0x2] sm:$0xff]
        %v568 = vld [vmem:[%s521 + $0xa] sm:$0xff]
        %v569 = vld [vmem:[%s521 + $0x1a] sm:$0xff]
        %v570 = vld [vmem:[%s521 + $0x22] sm:$0xff]
        %v571 = vld [vmem:[%s521 + $0x32] sm:$0xff]
        %v572 = vld [vmem:[%s521 + $0x3a] sm:$0xff]
        %v573 = vld [vmem:[%s521 + $0x4a] sm:$0xff]
        %v574 = vld [vmem:[%s521 + $0x52] sm:$0xff]
        %v575 = vld [vmem:[%s521 + $0x62] sm:$0xff]
        %v576 = vld [vmem:[%s521 + $0x6a] sm:$0xff]
        %v577 = vld [vmem:[%s521 + $0x7a] sm:$0xff]
        %v578 = vld [vmem:[%s521 + $0x82] sm:$0xff]
        %v579 = vld [vmem:[%s521 + $0x92] sm:$0xff]
        %v580 = vld [vmem:[%s521 + $0x9a] sm:$0xff]
        %v581 = vld [vmem:[%s521 + $0xaa] sm:$0xff]
        %v582 = vld [vmem:[%s521 + $0xb2] sm:$0xff]
        %v583 = vld [vmem:[%s521 + $0xc2] sm:$0xff]
        %v584 = vld [vmem:[%s521 + $0xca] sm:$0xff]
        %v585 = vld [vmem:[%s521 + $0xda] sm:$0xff]
        %v586 = vld [vmem:[%s521 + $0xe2] sm:$0xff]
        %v587 = vld [vmem:[%s1] sm:$0x1]
        %v588 = vperm.slane %v587, 0
        %v589 = vmul.f32 %v527, %v588
        %v590 = vmul.f32 %v528, %v588
        %v591 = vmul.f32 %v529, %v588
        %v592 = vmul.f32 %v530, %v588
        %v593 = vmul.f32 %v531, %v588
        %v594 = vmul.f32 %v532, %v588
        %v595 = vmul.f32 %v533, %v588
        %v596 = vmul.f32 %v534, %v588
        %v597 = vmul.f32 %v535, %v588
        %v598 = vmul.f32 %v536, %v588
        %v599 = vmul.f32 %v537, %v588
        %v600 = vmul.f32 %v538, %v588
        %v601 = vmul.f32 %v539, %v588
        %v602 = vmul.f32 %v540, %v588
        %v603 = vmul.f32 %v541, %v588
        %v604 = vmul.f32 %v542, %v588
        %v605 = vld [vmem:[%s1 + $0x1] sm:$0x1]
        %v606 = vperm.slane %v605, 0
        %v607 = vmul.f32 %v547, %v606
        %v608 = vmul.f32 %v548, %v606
        %v609 = vmul.f32 %v549, %v606
        %v610 = vmul.f32 %v550, %v606
        %v611 = vmul.f32 %v551, %v606
        %v612 = vmul.f32 %v552, %v606
        %v613 = vmul.f32 %v553, %v606
        %v614 = vmul.f32 %v554, %v606
        %v615 = vmul.f32 %v555, %v606
        %v616 = vmul.f32 %v556, %v606
        %v617 = vmul.f32 %v557, %v606
        %v618 = vmul.f32 %v558, %v606
        %v619 = vmul.f32 %v559, %v606
        %v620 = vmul.f32 %v560, %v606
        %v621 = vmul.f32 %v561, %v606
        %v622 = vmul.f32 %v562, %v606
        %v623 = vadd.f32 %v589, %v607
        %v624 = vadd.f32 %v590, %v608
        %v625 = vadd.f32 %v591, %v609
        %v626 = vadd.f32 %v592, %v610
        %v627 = vadd.f32 %v593, %v611
        %v628 = vadd.f32 %v594, %v612
        %v629 = vadd.f32 %v595, %v613
        %v630 = vadd.f32 %v596, %v614
        %v631 = vadd.f32 %v597, %v615
        %v632 = vadd.f32 %v598, %v616
        %v633 = vadd.f32 %v599, %v617
        %v634 = vadd.f32 %v600, %v618
        %v635 = vadd.f32 %v601, %v619
        %v636 = vadd.f32 %v602, %v620
        %v637 = vadd.f32 %v603, %v621
        %v638 = vadd.f32 %v604, %v622
        %v639 = vld [vmem:[%s1 + $0x2] sm:$0x1]
        %v640 = vperm.slane %v639, 0
        %v641 = vmul.f32 %v567, %v640
        %v642 = vmul.f32 %v568, %v640
        %v643 = vmul.f32 %v569, %v640
        %v644 = vmul.f32 %v570, %v640
        %v645 = vmul.f32 %v571, %v640
        %v646 = vmul.f32 %v572, %v640
        %v647 = vmul.f32 %v573, %v640
        %v648 = vmul.f32 %v574, %v640
        %v649 = vmul.f32 %v575, %v640
        %v650 = vmul.f32 %v576, %v640
        %v651 = vmul.f32 %v577, %v640
        %v652 = vmul.f32 %v578, %v640
        %v653 = vmul.f32 %v579, %v640
        %v654 = vmul.f32 %v580, %v640
        %v655 = vmul.f32 %v581, %v640
        %v656 = vmul.f32 %v582, %v640
        %v657 = vadd.f32 %v623, %v641
        %v658 = vadd.f32 %v624, %v642
        %v659 = vadd.f32 %v625, %v643
        %v660 = vadd.f32 %v626, %v644
        %v661 = vadd.f32 %v627, %v645
        %v662 = vadd.f32 %v628, %v646
        %v663 = vadd.f32 %v629, %v647
        %v664 = vadd.f32 %v630, %v648
        %v665 = vadd.f32 %v631, %v649
        %v666 = vadd.f32 %v632, %v650
        %v667 = vadd.f32 %v633, %v651
        %v668 = vadd.f32 %v634, %v652
        %v669 = vadd.f32 %v635, %v653
        %v670 = vadd.f32 %v636, %v654
        %v671 = vadd.f32 %v637, %v655
        %v672 = vadd.f32 %v638, %v656
        %v673 = vld [vmem:[%s1 + $0x3] sm:$0x1]
        %v674 = vperm.slane %v673, 0
        %v675 = vmul.f32 %v529, %v674
        %v676 = vmul.f32 %v530, %v674
        %v677 = vmul.f32 %v531, %v674
        %v678 = vmul.f32 %v532, %v674
        %v679 = vmul.f32 %v533, %v674
        %v680 = vmul.f32 %v534, %v674
        %v681 = vmul.f32 %v535, %v674
        %v682 = vmul.f32 %v536, %v674
        %v683 = vmul.f32 %v537, %v674
        %v684 = vmul.f32 %v538, %v674
        %v685 = vmul.f32 %v539, %v674
        %v686 = vmul.f32 %v540, %v674
        %v687 = vmul.f32 %v541, %v674
        %v688 = vmul.f32 %v542, %v674
        %v689 = vmul.f32 %v543, %v674
        %v690 = vmul.f32 %v544, %v674
        %v691 = vadd.f32 %v657, %v675
        %v692 = vadd.f32 %v658, %v676
        %v693 = vadd.f32 %v659, %v677
        %v694 = vadd.f32 %v660, %v678
        %v695 = vadd.f32 %v661, %v679
        %v696 = vadd.f32 %v662, %v680
        %v697 = vadd.f32 %v663, %v681
        %v698 = vadd.f32 %v664, %v682
        %v699 = vadd.f32 %v665, %v683
        %v700 = vadd.f32 %v666, %v684
        %v701 = vadd.f32 %v667, %v685
        %v702 = vadd.f32 %v668, %v686
        %v703 = vadd.f32 %v669, %v687
        %v704 = vadd.f32 %v670, %v688
        %v705 = vadd.f32 %v671, %v689
        %v706 = vadd.f32 %v672, %v690
        %v707 = vld [vmem:[%s1 + $0x4] sm:$0x1]
        %v708 = vperm.slane %v707, 0
        %v709 = vmul.f32 %v549, %v708
        %v710 = vmul.f32 %v550, %v708
        %v711 = vmul.f32 %v551, %v708
        %v712 = vmul.f32 %v552, %v708
        %v713 = vmul.f32 %v553, %v708
        %v714 = vmul.f32 %v554, %v708
        %v715 = vmul.f32 %v555, %v708
        %v716 = vmul.f32 %v556, %v708
        %v717 = vmul.f32 %v557, %v708
        %v718 = vmul.f32 %v558, %v708
        %v719 = vmul.f32 %v559, %v708
        %v720 = vmul.f32 %v560, %v708
        %v721 = vmul.f32 %v561, %v708
        %v722 = vmul.f32 %v562, %v708
        %v723 = vmul.f32 %v563, %v708
        %v724 = vmul.f32 %v564, %v708
        %v725 = vadd.f32 %v691, %v709
        %v726 = vadd.f32 %v692, %v710
        %v727 = vadd.f32 %v693, %v711
        %v728 = vadd.f32 %v694, %v712
        %v729 = vadd.f32 %v695, %v713
        %v730 = vadd.f32 %v696, %v714
        %v731 = vadd.f32 %v697, %v715
        %v732 = vadd.f32 %v698, %v716
        %v733 = vadd.f32 %v699, %v717
        %v734 = vadd.f32 %v700, %v718
        %v735 = vadd.f32 %v701, %v719
        %v736 = vadd.f32 %v702, %v720
        %v737 = vadd.f32 %v703, %v721
        %v738 = vadd.f32 %v704, %v722
        %v739 = vadd.f32 %v705, %v723
        %v740 = vadd.f32 %v706, %v724
        %v741 = vld [vmem:[%s1 + $0x5] sm:$0x1]
        %v742 = vperm.slane %v741, 0
        %v743 = vmul.f32 %v569, %v742
        %v744 = vmul.f32 %v570, %v742
        %v745 = vmul.f32 %v571, %v742
        %v746 = vmul.f32 %v572, %v742
        %v747 = vmul.f32 %v573, %v742
        %v748 = vmul.f32 %v574, %v742
        %v749 = vmul.f32 %v575, %v742
        %v750 = vmul.f32 %v576, %v742
        %v751 = vmul.f32 %v577, %v742
        %v752 = vmul.f32 %v578, %v742
        %v753 = vmul.f32 %v579, %v742
        %v754 = vmul.f32 %v580, %v742
        %v755 = vmul.f32 %v581, %v742
        %v756 = vmul.f32 %v582, %v742
        %v757 = vmul.f32 %v583, %v742
        %v758 = vmul.f32 %v584, %v742
        %v759 = vadd.f32 %v725, %v743
        %v760 = vadd.f32 %v726, %v744
        %v761 = vadd.f32 %v727, %v745
        %v762 = vadd.f32 %v728, %v746
        %v763 = vadd.f32 %v729, %v747
        %v764 = vadd.f32 %v730, %v748
        %v765 = vadd.f32 %v731, %v749
        %v766 = vadd.f32 %v732, %v750
        %v767 = vadd.f32 %v733, %v751
        %v768 = vadd.f32 %v734, %v752
        %v769 = vadd.f32 %v735, %v753
        %v770 = vadd.f32 %v736, %v754
        %v771 = vadd.f32 %v737, %v755
        %v772 = vadd.f32 %v738, %v756
        %v773 = vadd.f32 %v739, %v757
        %v774 = vadd.f32 %v740, %v758
        %v775 = vld [vmem:[%s1 + $0x6] sm:$0x1]
        %v776 = vperm.slane %v775, 0
        %v777 = vmul.f32 %v531, %v776
        %v778 = vmul.f32 %v532, %v776
        %v779 = vmul.f32 %v533, %v776
        %v780 = vmul.f32 %v534, %v776
        %v781 = vmul.f32 %v535, %v776
        %v782 = vmul.f32 %v536, %v776
        %v783 = vmul.f32 %v537, %v776
        %v784 = vmul.f32 %v538, %v776
        %v785 = vmul.f32 %v539, %v776
        %v786 = vmul.f32 %v540, %v776
        %v787 = vmul.f32 %v541, %v776
        %v788 = vmul.f32 %v542, %v776
        %v789 = vmul.f32 %v543, %v776
        %v790 = vmul.f32 %v544, %v776
        %v791 = vmul.f32 %v545, %v776
        %v792 = vmul.f32 %v546, %v776
        %v793 = vadd.f32 %v759, %v777
        %v794 = vadd.f32 %v760, %v778
        %v795 = vadd.f32 %v761, %v779
        %v796 = vadd.f32 %v762, %v780
        %v797 = vadd.f32 %v763, %v781
        %v798 = vadd.f32 %v764, %v782
        %v799 = vadd.f32 %v765, %v783
        %v800 = vadd.f32 %v766, %v784
        %v801 = vadd.f32 %v767, %v785
        %v802 = vadd.f32 %v768, %v786
        %v803 = vadd.f32 %v769, %v787
        %v804 = vadd.f32 %v770, %v788
        %v805 = vadd.f32 %v771, %v789
        %v806 = vadd.f32 %v772, %v790
        %v807 = vadd.f32 %v773, %v791
        %v808 = vadd.f32 %v774, %v792
        %v809 = vld [vmem:[%s1 + $0x7] sm:$0x1]
        %v810 = vperm.slane %v809, 0
        %v811 = vmul.f32 %v551, %v810
        %v812 = vmul.f32 %v552, %v810
        %v813 = vmul.f32 %v553, %v810
        %v814 = vmul.f32 %v554, %v810
        %v815 = vmul.f32 %v555, %v810
        %v816 = vmul.f32 %v556, %v810
        %v817 = vmul.f32 %v557, %v810
        %v818 = vmul.f32 %v558, %v810
        %v819 = vmul.f32 %v559, %v810
        %v820 = vmul.f32 %v560, %v810
        %v821 = vmul.f32 %v561, %v810
        %v822 = vmul.f32 %v562, %v810
        %v823 = vmul.f32 %v563, %v810
        %v824 = vmul.f32 %v564, %v810
        %v825 = vmul.f32 %v565, %v810
        %v826 = vmul.f32 %v566, %v810
        %v827 = vadd.f32 %v793, %v811
        %v828 = vadd.f32 %v794, %v812
        %v829 = vadd.f32 %v795, %v813
        %v830 = vadd.f32 %v796, %v814
        %v831 = vadd.f32 %v797, %v815
        %v832 = vadd.f32 %v798, %v816
        %v833 = vadd.f32 %v799, %v817
        %v834 = vadd.f32 %v800, %v818
        %v835 = vadd.f32 %v801, %v819
        %v836 = vadd.f32 %v802, %v820
        %v837 = vadd.f32 %v803, %v821
        %v838 = vadd.f32 %v804, %v822
        %v839 = vadd.f32 %v805, %v823
        %v840 = vadd.f32 %v806, %v824
        %v841 = vadd.f32 %v807, %v825
        %v842 = vadd.f32 %v808, %v826
        %v843 = vld [vmem:[%s1 + $0x8] sm:$0x1]
        %v844 = vperm.slane %v843, 0
        %v845 = vmul.f32 %v571, %v844
        %v846 = vmul.f32 %v572, %v844
        %v847 = vmul.f32 %v573, %v844
        %v848 = vmul.f32 %v574, %v844
        %v849 = vmul.f32 %v575, %v844
        %v850 = vmul.f32 %v576, %v844
        %v851 = vmul.f32 %v577, %v844
        %v852 = vmul.f32 %v578, %v844
        %v853 = vmul.f32 %v579, %v844
        %v854 = vmul.f32 %v580, %v844
        %v855 = vmul.f32 %v581, %v844
        %v856 = vmul.f32 %v582, %v844
        %v857 = vmul.f32 %v583, %v844
        %v858 = vmul.f32 %v584, %v844
        %v859 = vmul.f32 %v585, %v844
        %v860 = vmul.f32 %v586, %v844
        %v861 = vadd.f32 %v827, %v845
        %v862 = vadd.f32 %v828, %v846
        %v863 = vadd.f32 %v829, %v847
        %v864 = vadd.f32 %v830, %v848
        %v865 = vadd.f32 %v831, %v849
        %v866 = vadd.f32 %v832, %v850
        %v867 = vadd.f32 %v833, %v851
        %v868 = vadd.f32 %v834, %v852
        %v869 = vadd.f32 %v835, %v853
        %v870 = vadd.f32 %v836, %v854
        %v871 = vadd.f32 %v837, %v855
        %v872 = vadd.f32 %v838, %v856
        %v873 = vadd.f32 %v839, %v857
        %v874 = vadd.f32 %v840, %v858
        %v875 = vadd.f32 %v841, %v859
        %v876 = vadd.f32 %v842, %v860
        %v877 = vld [vmem:[%s2] sm:$0x1]
        %v879 = vperm.slane %v877, 0
        %v881 = vadd.f32 %v861, %v879
        %v882 = vadd.f32 %v862, %v879
        %v883 = vadd.f32 %v863, %v879
        %v884 = vadd.f32 %v864, %v879
        %v885 = vadd.f32 %v865, %v879
        %v886 = vadd.f32 %v866, %v879
        %v887 = vadd.f32 %v867, %v879
        %v888 = vadd.f32 %v868, %v879
        %v889 = vadd.f32 %v869, %v879
        %v890 = vadd.f32 %v870, %v879
        %v891 = vadd.f32 %v871, %v879
        %v892 = vadd.f32 %v872, %v879
        %v893 = vadd.f32 %v873, %v879
        %v894 = vadd.f32 %v874, %v879
        %v895 = vadd.f32 %v875, %v879
        %v896 = vadd.f32 %v876, %v879
        %897 = vadd.xlane.f32.xlu0 %v881
        %v898 = vpop.xlane.xlu0 %897
        %899 = vadd.xlane.f32.xlu0 %v882
        %v900 = vpop.xlane.xlu0 %899
        %901 = vadd.xlane.f32.xlu0 %v883
        %v902 = vpop.xlane.xlu0 %901
        %903 = vadd.xlane.f32.xlu0 %v884
        %v904 = vpop.xlane.xlu0 %903
        %905 = vadd.xlane.f32.xlu0 %v885
        %v906 = vpop.xlane.xlu0 %905
        %907 = vadd.xlane.f32.xlu0 %v886
        %v908 = vpop.xlane.xlu0 %907
        %909 = vadd.xlane.f32.xlu0 %v887
        %v910 = vpop.xlane.xlu0 %909
        %911 = vadd.xlane.f32.xlu0 %v888
        %v912 = vpop.xlane.xlu0 %911
        %913 = vadd.xlane.f32.xlu0 %v889
        %v914 = vpop.xlane.xlu0 %913
        %915 = vadd.xlane.f32.xlu0 %v890
        %v916 = vpop.xlane.xlu0 %915
        %917 = vadd.xlane.f32.xlu0 %v891
        %v918 = vpop.xlane.xlu0 %917
        %919 = vadd.xlane.f32.xlu0 %v892
        %v920 = vpop.xlane.xlu0 %919
        %921 = vadd.xlane.f32.xlu0 %v893
        %v922 = vpop.xlane.xlu0 %921
        %923 = vadd.xlane.f32.xlu0 %v894
        %v924 = vpop.xlane.xlu0 %923
        %925 = vadd.xlane.f32.xlu0 %v895
        %v926 = vpop.xlane.xlu0 %925
        %927 = vadd.xlane.f32.xlu0 %v896
        %v928 = vpop.xlane.xlu0 %927
        %v929 = vmul.f32 %v898, 0.125
        %v930 = vmul.f32 %v900, 0.125
        %v931 = vmul.f32 %v902, 0.125
        %v932 = vmul.f32 %v904, 0.125
        %v933 = vmul.f32 %v906, 0.125
        %v934 = vmul.f32 %v908, 0.125
        %v935 = vmul.f32 %v910, 0.125
        %v936 = vmul.f32 %v912, 0.125
        %v937 = vmul.f32 %v914, 0.125
        %v938 = vmul.f32 %v916, 0.125
        %v939 = vmul.f32 %v918, 0.125
        %v940 = vmul.f32 %v920, 0.125
        %v941 = vmul.f32 %v922, 0.125
        %v942 = vmul.f32 %v924, 0.125
        %v943 = vmul.f32 %v926, 0.125
        %v944 = vmul.f32 %v928, 0.125
        %v945 = vsub.f32 %v881, %v929
        %v946 = vsub.f32 %v882, %v930
        %v947 = vsub.f32 %v883, %v931
        %v948 = vsub.f32 %v884, %v932
        %v949 = vsub.f32 %v885, %v933
        %v950 = vsub.f32 %v886, %v934
        %v951 = vsub.f32 %v887, %v935
        %v952 = vsub.f32 %v888, %v936
        %v953 = vsub.f32 %v889, %v937
        %v954 = vsub.f32 %v890, %v938
        %v955 = vsub.f32 %v891, %v939
        %v956 = vsub.f32 %v892, %v940
        %v957 = vsub.f32 %v893, %v941
        %v958 = vsub.f32 %v894, %v942
        %v959 = vsub.f32 %v895, %v943
        %v960 = vsub.f32 %v896, %v944
        %v961 = vmul.f32 %v945, %v945
        %v962 = vmul.f32 %v946, %v946
        %v963 = vmul.f32 %v947, %v947
        %v964 = vmul.f32 %v948, %v948
        %v965 = vmul.f32 %v949, %v949
        %v966 = vmul.f32 %v950, %v950
        %v967 = vmul.f32 %v951, %v951
        %v968 = vmul.f32 %v952, %v952
        %v969 = vmul.f32 %v953, %v953
        %v970 = vmul.f32 %v954, %v954
        %v971 = vmul.f32 %v955, %v955
        %v972 = vmul.f32 %v956, %v956
        %v973 = vmul.f32 %v957, %v957
        %v974 = vmul.f32 %v958, %v958
        %v975 = vmul.f32 %v959, %v959
        %v976 = vmul.f32 %v960, %v960
        %977 = vadd.xlane.f32.xlu0 %v961
        %v978 = vpop.xlane.xlu0 %977
        %979 = vadd.xlane.f32.xlu0 %v962
        %v980 = vpop.xlane.xlu0 %979
        %981 = vadd.xlane.f32.xlu0 %v963
        %v982 = vpop.xlane.xlu0 %981
        %983 = vadd.xlane.f32.xlu0 %v964
        %v984 = vpop.xlane.xlu0 %983
        %985 = vadd.xlane.f32.xlu0 %v965
        %v986 = vpop.xlane.xlu0 %985
        %987 = vadd.xlane.f32.xlu0 %v966
        %v988 = vpop.xlane.xlu0 %987
        %989 = vadd.xlane.f32.xlu0 %v967
        %v990 = vpop.xlane.xlu0 %989
        %991 = vadd.xlane.f32.xlu0 %v968
        %v992 = vpop.xlane.xlu0 %991
        %993 = vadd.xlane.f32.xlu0 %v969
        %v994 = vpop.xlane.xlu0 %993
        %995 = vadd.xlane.f32.xlu0 %v970
        %v996 = vpop.xlane.xlu0 %995
        %997 = vadd.xlane.f32.xlu0 %v971
        %v998 = vpop.xlane.xlu0 %997
        %999 = vadd.xlane.f32.xlu0 %v972
        %v1000 = vpop.xlane.xlu0 %999
        %1001 = vadd.xlane.f32.xlu0 %v973
        %v1002 = vpop.xlane.xlu0 %1001
        %1003 = vadd.xlane.f32.xlu0 %v974
        %v1004 = vpop.xlane.xlu0 %1003
        %1005 = vadd.xlane.f32.xlu0 %v975
        %v1006 = vpop.xlane.xlu0 %1005
        %1007 = vadd.xlane.f32.xlu0 %v976
        %v1008 = vpop.xlane.xlu0 %1007
        %v1009 = vmul.f32 %v929, %v929
        %v1010 = vmul.f32 %v930, %v930
        %v1011 = vmul.f32 %v931, %v931
        %v1012 = vmul.f32 %v932, %v932
        %v1013 = vmul.f32 %v933, %v933
        %v1014 = vmul.f32 %v934, %v934
        %v1015 = vmul.f32 %v935, %v935
        %v1016 = vmul.f32 %v936, %v936
        %v1017 = vmul.f32 %v937, %v937
        %v1018 = vmul.f32 %v938, %v938
        %v1019 = vmul.f32 %v939, %v939
        %v1020 = vmul.f32 %v940, %v940
        %v1021 = vmul.f32 %v941, %v941
        %v1022 = vmul.f32 %v942, %v942
        %v1023 = vmul.f32 %v943, %v943
        %v1024 = vmul.f32 %v944, %v944
        %v1025 = vmul.f32 %v1009, 120.0
        %v1026 = vmul.f32 %v1010, 120.0
        %v1027 = vmul.f32 %v1011, 120.0
        %v1028 = vmul.f32 %v1012, 120.0
        %v1029 = vmul.f32 %v1013, 120.0
        %v1030 = vmul.f32 %v1014, 120.0
        %v1031 = vmul.f32 %v1015, 120.0
        %v1032 = vmul.f32 %v1016, 120.0
        %v1033 = vmul.f32 %v1017, 120.0
        %v1034 = vmul.f32 %v1018, 120.0
        %v1035 = vmul.f32 %v1019, 120.0
        %v1036 = vmul.f32 %v1020, 120.0
        %v1037 = vmul.f32 %v1021, 120.0
        %v1038 = vmul.f32 %v1022, 120.0
        %v1039 = vmul.f32 %v1023, 120.0
        %v1040 = vmul.f32 %v1024, 120.0
        %v1041 = vsub.f32 %v978, %v1025
        %v1042 = vsub.f32 %v980, %v1026
        %v1043 = vsub.f32 %v982, %v1027
        %v1044 = vsub.f32 %v984, %v1028
        %v1045 = vsub.f32 %v986, %v1029
        %v1046 = vsub.f32 %v988, %v1030
        %v1047 = vsub.f32 %v990, %v1031
        %v1048 = vsub.f32 %v992, %v1032
        %v1049 = vsub.f32 %v994, %v1033
        %v1050 = vsub.f32 %v996, %v1034
        %v1051 = vsub.f32 %v998, %v1035
        %v1052 = vsub.f32 %v1000, %v1036
        %v1053 = vsub.f32 %v1002, %v1037
        %v1054 = vsub.f32 %v1004, %v1038
        %v1055 = vsub.f32 %v1006, %v1039
        %v1056 = vsub.f32 %v1008, %v1040
        %v1057 = vmul.f32 %v1041, 0.125
        %v1058 = vmul.f32 %v1042, 0.125
        %v1059 = vmul.f32 %v1043, 0.125
        %v1060 = vmul.f32 %v1044, 0.125
        %v1061 = vmul.f32 %v1045, 0.125
        %v1062 = vmul.f32 %v1046, 0.125
        %v1063 = vmul.f32 %v1047, 0.125
        %v1064 = vmul.f32 %v1048, 0.125
        %v1065 = vmul.f32 %v1049, 0.125
        %v1066 = vmul.f32 %v1050, 0.125
        %v1067 = vmul.f32 %v1051, 0.125
        %v1068 = vmul.f32 %v1052, 0.125
        %v1069 = vmul.f32 %v1053, 0.125
        %v1070 = vmul.f32 %v1054, 0.125
        %v1071 = vmul.f32 %v1055, 0.125
        %v1072 = vmul.f32 %v1056, 0.125
        %v1073 = vmax.f32 %v1057, 0.0
        %v1074 = vmax.f32 %v1058, 0.0
        %v1075 = vmax.f32 %v1059, 0.0
        %v1076 = vmax.f32 %v1060, 0.0
        %v1077 = vmax.f32 %v1061, 0.0
        %v1078 = vmax.f32 %v1062, 0.0
        %v1079 = vmax.f32 %v1063, 0.0
        %v1080 = vmax.f32 %v1064, 0.0
        %v1081 = vmax.f32 %v1065, 0.0
        %v1082 = vmax.f32 %v1066, 0.0
        %v1083 = vmax.f32 %v1067, 0.0
        %v1084 = vmax.f32 %v1068, 0.0
        %v1085 = vmax.f32 %v1069, 0.0
        %v1086 = vmax.f32 %v1070, 0.0
        %v1087 = vmax.f32 %v1071, 0.0
        %v1088 = vmax.f32 %v1072, 0.0
        %v1089 = vadd.f32 %v1073, 1e-06
        %v1090 = vadd.f32 %v1074, 1e-06
        %v1091 = vadd.f32 %v1075, 1e-06
        %v1092 = vadd.f32 %v1076, 1e-06
        %v1093 = vadd.f32 %v1077, 1e-06
        %v1094 = vadd.f32 %v1078, 1e-06
        %v1095 = vadd.f32 %v1079, 1e-06
        %v1096 = vadd.f32 %v1080, 1e-06
        %v1097 = vadd.f32 %v1081, 1e-06
        %v1098 = vadd.f32 %v1082, 1e-06
        %v1099 = vadd.f32 %v1083, 1e-06
        %v1100 = vadd.f32 %v1084, 1e-06
        %v1101 = vadd.f32 %v1085, 1e-06
        %v1102 = vadd.f32 %v1086, 1e-06
        %v1103 = vadd.f32 %v1087, 1e-06
        %v1104 = vadd.f32 %v1088, 1e-06
        %v1105 = vrsqrt.pop %v1089
        %v1106 = vmul.f32 %v1105, %v1089
        %v1107 = vmul.f32 %v1106, %v1105
        %v1108 = vmul.f32 0.5, %v1107
        %v1109 = vsub.f32 1.5, %v1108
        %v1110 = vmul.f32 %v1105, %v1109
        %vm1111 = vweird.f32 %v1089
        %vm1112 = vweird.f32 %v1105
        %vm1113 = vmor %vm1111, %vm1112
        %v1114 = vsel %vm1113, %v1105, %v1110
        %v1115 = vrsqrt.pop %v1090
        %v1116 = vmul.f32 %v1115, %v1090
        %v1117 = vmul.f32 %v1116, %v1115
        %v1118 = vmul.f32 0.5, %v1117
        %v1119 = vsub.f32 1.5, %v1118
        %v1120 = vmul.f32 %v1115, %v1119
        %vm1121 = vweird.f32 %v1090
        %vm1122 = vweird.f32 %v1115
        %vm1123 = vmor %vm1121, %vm1122
        %v1124 = vsel %vm1123, %v1115, %v1120
        %v1125 = vrsqrt.pop %v1091
        %v1126 = vmul.f32 %v1125, %v1091
        %v1127 = vmul.f32 %v1126, %v1125
        %v1128 = vmul.f32 0.5, %v1127
        %v1129 = vsub.f32 1.5, %v1128
        %v1130 = vmul.f32 %v1125, %v1129
        %vm1131 = vweird.f32 %v1091
        %vm1132 = vweird.f32 %v1125
        %vm1133 = vmor %vm1131, %vm1132
        %v1134 = vsel %vm1133, %v1125, %v1130
        %v1135 = vrsqrt.pop %v1092
        %v1136 = vmul.f32 %v1135, %v1092
        %v1137 = vmul.f32 %v1136, %v1135
        %v1138 = vmul.f32 0.5, %v1137
        %v1139 = vsub.f32 1.5, %v1138
        %v1140 = vmul.f32 %v1135, %v1139
        %vm1141 = vweird.f32 %v1092
        %vm1142 = vweird.f32 %v1135
        %vm1143 = vmor %vm1141, %vm1142
        %v1144 = vsel %vm1143, %v1135, %v1140
        %v1145 = vrsqrt.pop %v1093
        %v1146 = vmul.f32 %v1145, %v1093
        %v1147 = vmul.f32 %v1146, %v1145
        %v1148 = vmul.f32 0.5, %v1147
        %v1149 = vsub.f32 1.5, %v1148
        %v1150 = vmul.f32 %v1145, %v1149
        %vm1151 = vweird.f32 %v1093
        %vm1152 = vweird.f32 %v1145
        %vm1153 = vmor %vm1151, %vm1152
        %v1154 = vsel %vm1153, %v1145, %v1150
        %v1155 = vrsqrt.pop %v1094
        %v1156 = vmul.f32 %v1155, %v1094
        %v1157 = vmul.f32 %v1156, %v1155
        %v1158 = vmul.f32 0.5, %v1157
        %v1159 = vsub.f32 1.5, %v1158
        %v1160 = vmul.f32 %v1155, %v1159
        %vm1161 = vweird.f32 %v1094
        %vm1162 = vweird.f32 %v1155
        %vm1163 = vmor %vm1161, %vm1162
        %v1164 = vsel %vm1163, %v1155, %v1160
        %v1165 = vrsqrt.pop %v1095
        %v1166 = vmul.f32 %v1165, %v1095
        %v1167 = vmul.f32 %v1166, %v1165
        %v1168 = vmul.f32 0.5, %v1167
        %v1169 = vsub.f32 1.5, %v1168
        %v1170 = vmul.f32 %v1165, %v1169
        %vm1171 = vweird.f32 %v1095
        %vm1172 = vweird.f32 %v1165
        %vm1173 = vmor %vm1171, %vm1172
        %v1174 = vsel %vm1173, %v1165, %v1170
        %v1175 = vrsqrt.pop %v1096
        %v1176 = vmul.f32 %v1175, %v1096
        %v1177 = vmul.f32 %v1176, %v1175
        %v1178 = vmul.f32 0.5, %v1177
        %v1179 = vsub.f32 1.5, %v1178
        %v1180 = vmul.f32 %v1175, %v1179
        %vm1181 = vweird.f32 %v1096
        %vm1182 = vweird.f32 %v1175
        %vm1183 = vmor %vm1181, %vm1182
        %v1184 = vsel %vm1183, %v1175, %v1180
        %v1185 = vrsqrt.pop %v1097
        %v1186 = vmul.f32 %v1185, %v1097
        %v1187 = vmul.f32 %v1186, %v1185
        %v1188 = vmul.f32 0.5, %v1187
        %v1189 = vsub.f32 1.5, %v1188
        %v1190 = vmul.f32 %v1185, %v1189
        %vm1191 = vweird.f32 %v1097
        %vm1192 = vweird.f32 %v1185
        %vm1193 = vmor %vm1191, %vm1192
        %v1194 = vsel %vm1193, %v1185, %v1190
        %v1195 = vrsqrt.pop %v1098
        %v1196 = vmul.f32 %v1195, %v1098
        %v1197 = vmul.f32 %v1196, %v1195
        %v1198 = vmul.f32 0.5, %v1197
        %v1199 = vsub.f32 1.5, %v1198
        %v1200 = vmul.f32 %v1195, %v1199
        %vm1201 = vweird.f32 %v1098
        %vm1202 = vweird.f32 %v1195
        %vm1203 = vmor %vm1201, %vm1202
        %v1204 = vsel %vm1203, %v1195, %v1200
        %v1205 = vrsqrt.pop %v1099
        %v1206 = vmul.f32 %v1205, %v1099
        %v1207 = vmul.f32 %v1206, %v1205
        %v1208 = vmul.f32 0.5, %v1207
        %v1209 = vsub.f32 1.5, %v1208
        %v1210 = vmul.f32 %v1205, %v1209
        %vm1211 = vweird.f32 %v1099
        %vm1212 = vweird.f32 %v1205
        %vm1213 = vmor %vm1211, %vm1212
        %v1214 = vsel %vm1213, %v1205, %v1210
        %v1215 = vrsqrt.pop %v1100
        %v1216 = vmul.f32 %v1215, %v1100
        %v1217 = vmul.f32 %v1216, %v1215
        %v1218 = vmul.f32 0.5, %v1217
        %v1219 = vsub.f32 1.5, %v1218
        %v1220 = vmul.f32 %v1215, %v1219
        %vm1221 = vweird.f32 %v1100
        %vm1222 = vweird.f32 %v1215
        %vm1223 = vmor %vm1221, %vm1222
        %v1224 = vsel %vm1223, %v1215, %v1220
        %v1225 = vrsqrt.pop %v1101
        %v1226 = vmul.f32 %v1225, %v1101
        %v1227 = vmul.f32 %v1226, %v1225
        %v1228 = vmul.f32 0.5, %v1227
        %v1229 = vsub.f32 1.5, %v1228
        %v1230 = vmul.f32 %v1225, %v1229
        %vm1231 = vweird.f32 %v1101
        %vm1232 = vweird.f32 %v1225
        %vm1233 = vmor %vm1231, %vm1232
        %v1234 = vsel %vm1233, %v1225, %v1230
        %v1235 = vrsqrt.pop %v1102
        %v1236 = vmul.f32 %v1235, %v1102
        %v1237 = vmul.f32 %v1236, %v1235
        %v1238 = vmul.f32 0.5, %v1237
        %v1239 = vsub.f32 1.5, %v1238
        %v1240 = vmul.f32 %v1235, %v1239
        %vm1241 = vweird.f32 %v1102
        %vm1242 = vweird.f32 %v1235
        %vm1243 = vmor %vm1241, %vm1242
        %v1244 = vsel %vm1243, %v1235, %v1240
        %v1245 = vrsqrt.pop %v1103
        %v1246 = vmul.f32 %v1245, %v1103
        %v1247 = vmul.f32 %v1246, %v1245
        %v1248 = vmul.f32 0.5, %v1247
        %v1249 = vsub.f32 1.5, %v1248
        %v1250 = vmul.f32 %v1245, %v1249
        %vm1251 = vweird.f32 %v1103
        %vm1252 = vweird.f32 %v1245
        %vm1253 = vmor %vm1251, %vm1252
        %v1254 = vsel %vm1253, %v1245, %v1250
        %v1255 = vrsqrt.pop %v1104
        %v1256 = vmul.f32 %v1255, %v1104
        %v1257 = vmul.f32 %v1256, %v1255
        %v1258 = vmul.f32 0.5, %v1257
        %v1259 = vsub.f32 1.5, %v1258
        %v1260 = vmul.f32 %v1255, %v1259
        %vm1261 = vweird.f32 %v1104
        %vm1262 = vweird.f32 %v1255
        %vm1263 = vmor %vm1261, %vm1262
        %v1264 = vsel %vm1263, %v1255, %v1260
        %v1265 = vmul.f32 %v945, %v1114
        %v1266 = vmul.f32 %v946, %v1124
        %v1267 = vmul.f32 %v947, %v1134
        %v1268 = vmul.f32 %v948, %v1144
        %v1269 = vmul.f32 %v949, %v1154
        %v1270 = vmul.f32 %v950, %v1164
        %v1271 = vmul.f32 %v951, %v1174
        %v1272 = vmul.f32 %v952, %v1184
        %v1273 = vmul.f32 %v953, %v1194
        %v1274 = vmul.f32 %v954, %v1204
        %v1275 = vmul.f32 %v955, %v1214
        %v1276 = vmul.f32 %v956, %v1224
        %v1277 = vmul.f32 %v957, %v1234
        %v1278 = vmul.f32 %v958, %v1244
        %v1279 = vmul.f32 %v959, %v1254
        %v1280 = vmul.f32 %v960, %v1264
        %v1281 = vld [vmem:[%s3] sm:$0x1]
        %v1283 = vperm.slane %v1281, 0
        %v1285 = vmul.f32 %v1265, %v1283
        %v1286 = vmul.f32 %v1266, %v1283
        %v1287 = vmul.f32 %v1267, %v1283
        %v1288 = vmul.f32 %v1268, %v1283
        %v1289 = vmul.f32 %v1269, %v1283
        %v1290 = vmul.f32 %v1270, %v1283
        %v1291 = vmul.f32 %v1271, %v1283
        %v1292 = vmul.f32 %v1272, %v1283
        %v1293 = vmul.f32 %v1273, %v1283
        %v1294 = vmul.f32 %v1274, %v1283
        %v1295 = vmul.f32 %v1275, %v1283
        %v1296 = vmul.f32 %v1276, %v1283
        %v1297 = vmul.f32 %v1277, %v1283
        %v1298 = vmul.f32 %v1278, %v1283
        %v1299 = vmul.f32 %v1279, %v1283
        %v1300 = vmul.f32 %v1280, %v1283
        %v1301 = vld [vmem:[%s4] sm:$0x1]
        %v1303 = vperm.slane %v1301, 0
        %v1305 = vadd.f32 %v1285, %v1303
        %v1306 = vadd.f32 %v1286, %v1303
        %v1307 = vadd.f32 %v1287, %v1303
        %v1308 = vadd.f32 %v1288, %v1303
        %v1309 = vadd.f32 %v1289, %v1303
        %v1310 = vadd.f32 %v1290, %v1303
        %v1311 = vadd.f32 %v1291, %v1303
        %v1312 = vadd.f32 %v1292, %v1303
        %v1313 = vadd.f32 %v1293, %v1303
        %v1314 = vadd.f32 %v1294, %v1303
        %v1315 = vadd.f32 %v1295, %v1303
        %v1316 = vadd.f32 %v1296, %v1303
        %v1317 = vadd.f32 %v1297, %v1303
        %v1318 = vadd.f32 %v1298, %v1303
        %v1319 = vadd.f32 %v1299, %v1303
        %v1320 = vadd.f32 %v1300, %v1303
        %v1321 = vpack.c.bf16 %v1306, %v1305
        %v1322 = vpack.c.bf16 %v1308, %v1307
        %v1323 = vpack.c.bf16 %v1310, %v1309
        %v1324 = vpack.c.bf16 %v1312, %v1311
        %v1325 = vpack.c.bf16 %v1314, %v1313
        %v1326 = vpack.c.bf16 %v1316, %v1315
        %v1327 = vpack.c.bf16 %v1318, %v1317
        %v1328 = vpack.c.bf16 %v1320, %v1319
        %v1329 = vld [vmem:[%s5] sm:$0xf]
        %v1330 = vld [vmem:[%s5 + $0x4] sm:$0xf]
        %v1331 = vld [vmem:[%s5 + $0x8] sm:$0xf]
        %v1332 = vld [vmem:[%s5 + $0xc] sm:$0xf]
        %v1333 = vld [vmem:[%s5 + $0x10] sm:$0xf]
        %v1334 = vld [vmem:[%s5 + $0x14] sm:$0xf]
        %v1335 = vld [vmem:[%s5 + $0x18] sm:$0xf]
        %v1336 = vld [vmem:[%s5 + $0x1c] sm:$0xf]
        %v1337 = vld [vmem:[%s5 + $0x20] sm:$0xf]
        %v1338 = vld [vmem:[%s5 + $0x24] sm:$0xf]
        %v1339 = vld [vmem:[%s5 + $0x28] sm:$0xf]
        %v1340 = vld [vmem:[%s5 + $0x2c] sm:$0xf]
        %v1341 = vld [vmem:[%s5 + $0x30] sm:$0xf]
        %v1342 = vld [vmem:[%s5 + $0x34] sm:$0xf]
        %v1343 = vld [vmem:[%s5 + $0x38] sm:$0xf]
        %v1344 = vld [vmem:[%s5 + $0x3c] sm:$0xf]
        %v1345 = vld [vmem:[%s6] sm:$0x1]
        %v1347 = vperm.slane %v1345, 0
        %v1365 = vunpack.c.l.b16 %v1329
        %v1366 = vunpack.c.l.b16 %v1330
        %v1367 = vunpack.c.l.b16 %v1331
        %v1368 = vunpack.c.l.b16 %v1332
        %v1369 = vunpack.c.l.b16 %v1333
        %v1370 = vunpack.c.l.b16 %v1334
        %v1371 = vunpack.c.l.b16 %v1335
        %v1372 = vunpack.c.l.b16 %v1336
        %v1373 = vunpack.c.l.b16 %v1337
        %v1374 = vunpack.c.l.b16 %v1338
        %v1375 = vunpack.c.l.b16 %v1339
        %v1376 = vunpack.c.l.b16 %v1340
        %v1377 = vunpack.c.l.b16 %v1341
        %v1378 = vunpack.c.l.b16 %v1342
        %v1379 = vunpack.c.l.b16 %v1343
        %v1380 = vunpack.c.l.b16 %v1344
        %v1381 = vpack.c.b16 %v1366, %v1365
        %v1382 = vpack.c.b16 %v1368, %v1367
        %v1383 = vpack.c.b16 %v1370, %v1369
        %v1384 = vpack.c.b16 %v1372, %v1371
        %v1385 = vpack.c.b16 %v1374, %v1373
        %v1386 = vpack.c.b16 %v1376, %v1375
        %v1387 = vpack.c.b16 %v1378, %v1377
        %v1388 = vpack.c.b16 %v1380, %v1379
        %1397 = vmatpush.bf16.msra.mxu0 %v1388
        %1398 = vmatpush.bf16.msra.mxu0 %v1387
        %1399 = vmatpush.bf16.msra.mxu0 %v1386
        %1400 = vmatpush.bf16.msra.mxu0 %v1385
        %1401 = vmatpush.bf16.msra.mxu0 %v1384
        %1402 = vmatpush.bf16.msra.mxu0 %v1383
        %1403 = vmatpush.bf16.msra.mxu0 %v1382
        %1404 = vmatpush.bf16.msra.mxu0 %v1381
        %1405 = vmatmul.bf16.gmra.mxu0 %v1321
        %v1406 = vpop.f32.mrf.mxu0
        %v1407 = vadd.f32 %v1347, %v1406
        %v1408 = vpop.f32.mrf.mxu0
        %v1409 = vadd.f32 %v1347, %v1408
        %1410 = vmatmul.bf16.gmra.mxu0 %v1322
        %v1411 = vpop.f32.mrf.mxu0
        %v1412 = vadd.f32 %v1347, %v1411
        %v1413 = vpop.f32.mrf.mxu0
        %v1414 = vadd.f32 %v1347, %v1413
        %1415 = vmatmul.bf16.gmra.mxu0 %v1323
        %v1416 = vpop.f32.mrf.mxu0
        %v1417 = vadd.f32 %v1347, %v1416
        %v1418 = vpop.f32.mrf.mxu0
        %v1419 = vadd.f32 %v1347, %v1418
        %1420 = vmatmul.bf16.gmra.mxu0 %v1324
        %v1421 = vpop.f32.mrf.mxu0
        %v1422 = vadd.f32 %v1347, %v1421
        %v1423 = vpop.f32.mrf.mxu0
        %v1424 = vadd.f32 %v1347, %v1423
        %1425 = vmatmul.bf16.gmra.mxu0 %v1325
        %v1426 = vpop.f32.mrf.mxu0
        %v1427 = vadd.f32 %v1347, %v1426
        %v1428 = vpop.f32.mrf.mxu0
        %v1429 = vadd.f32 %v1347, %v1428
        %1430 = vmatmul.bf16.gmra.mxu0 %v1326
        %v1431 = vpop.f32.mrf.mxu0
        %v1432 = vadd.f32 %v1347, %v1431
        %v1433 = vpop.f32.mrf.mxu0
        %v1434 = vadd.f32 %v1347, %v1433
        %1435 = vmatmul.bf16.gmra.mxu0 %v1327
        %v1436 = vpop.f32.mrf.mxu0
        %v1437 = vadd.f32 %v1347, %v1436
        %v1438 = vpop.f32.mrf.mxu0
        %v1439 = vadd.f32 %v1347, %v1438
        %1440 = vmatmul.bf16.gmra.mxu0 %v1328
        %v1441 = vpop.f32.mrf.mxu0
        %v1442 = vadd.f32 %v1347, %v1441
        %v1443 = vpop.f32.mrf.mxu0
        %v1444 = vadd.f32 %v1347, %v1443
        %1445 = vdwg.mxu0
        %v1446 = vmul.f32 %v1407, 0.5
        %v1447 = vmul.f32 %v1409, 0.5
        %v1448 = vmul.f32 %v1412, 0.5
        %v1449 = vmul.f32 %v1414, 0.5
        %v1450 = vmul.f32 %v1417, 0.5
        %v1451 = vmul.f32 %v1419, 0.5
        %v1452 = vmul.f32 %v1422, 0.5
        %v1453 = vmul.f32 %v1424, 0.5
        %v1454 = vmul.f32 %v1427, 0.5
        %v1455 = vmul.f32 %v1429, 0.5
        %v1456 = vmul.f32 %v1432, 0.5
        %v1457 = vmul.f32 %v1434, 0.5
        %v1458 = vmul.f32 %v1437, 0.5
        %v1459 = vmul.f32 %v1439, 0.5
        %v1460 = vmul.f32 %v1442, 0.5
        %v1461 = vmul.f32 %v1444, 0.5
        %v1462 = vmul.f32 %v1407, %v1407
        %v1463 = vmul.f32 %v1409, %v1409
        %v1464 = vmul.f32 %v1412, %v1412
        %v1465 = vmul.f32 %v1414, %v1414
        %v1466 = vmul.f32 %v1417, %v1417
        %v1467 = vmul.f32 %v1419, %v1419
        %v1468 = vmul.f32 %v1422, %v1422
        %v1469 = vmul.f32 %v1424, %v1424
        %v1470 = vmul.f32 %v1427, %v1427
        %v1471 = vmul.f32 %v1429, %v1429
        %v1472 = vmul.f32 %v1432, %v1432
        %v1473 = vmul.f32 %v1434, %v1434
        %v1474 = vmul.f32 %v1437, %v1437
        %v1475 = vmul.f32 %v1439, %v1439
        %v1476 = vmul.f32 %v1442, %v1442
        %v1477 = vmul.f32 %v1444, %v1444
        %v1478 = vmul.f32 %v1462, %v1407
        %v1479 = vmul.f32 %v1463, %v1409
        %v1480 = vmul.f32 %v1464, %v1412
        %v1481 = vmul.f32 %v1465, %v1414
        %v1482 = vmul.f32 %v1466, %v1417
        %v1483 = vmul.f32 %v1467, %v1419
        %v1484 = vmul.f32 %v1468, %v1422
        %v1485 = vmul.f32 %v1469, %v1424
        %v1486 = vmul.f32 %v1470, %v1427
        %v1487 = vmul.f32 %v1471, %v1429
        %v1488 = vmul.f32 %v1472, %v1432
        %v1489 = vmul.f32 %v1473, %v1434
        %v1490 = vmul.f32 %v1474, %v1437
        %v1491 = vmul.f32 %v1475, %v1439
        %v1492 = vmul.f32 %v1476, %v1442
        %v1493 = vmul.f32 %v1477, %v1444
        %v1494 = vmul.f32 %v1478, 0.044715
        %v1495 = vmul.f32 %v1479, 0.044715
        %v1496 = vmul.f32 %v1480, 0.044715
        %v1497 = vmul.f32 %v1481, 0.044715
        %v1498 = vmul.f32 %v1482, 0.044715
        %v1499 = vmul.f32 %v1483, 0.044715
        %v1500 = vmul.f32 %v1484, 0.044715
        %v1501 = vmul.f32 %v1485, 0.044715
        %v1502 = vmul.f32 %v1486, 0.044715
        %v1503 = vmul.f32 %v1487, 0.044715
        %v1504 = vmul.f32 %v1488, 0.044715
        %v1505 = vmul.f32 %v1489, 0.044715
        %v1506 = vmul.f32 %v1490, 0.044715
        %v1507 = vmul.f32 %v1491, 0.044715
        %v1508 = vmul.f32 %v1492, 0.044715
        %v1509 = vmul.f32 %v1493, 0.044715
        %v1510 = vadd.f32 %v1407, %v1494
        %v1511 = vadd.f32 %v1409, %v1495
        %v1512 = vadd.f32 %v1412, %v1496
        %v1513 = vadd.f32 %v1414, %v1497
        %v1514 = vadd.f32 %v1417, %v1498
        %v1515 = vadd.f32 %v1419, %v1499
        %v1516 = vadd.f32 %v1422, %v1500
        %v1517 = vadd.f32 %v1424, %v1501
        %v1518 = vadd.f32 %v1427, %v1502
        %v1519 = vadd.f32 %v1429, %v1503
        %v1520 = vadd.f32 %v1432, %v1504
        %v1521 = vadd.f32 %v1434, %v1505
        %v1522 = vadd.f32 %v1437, %v1506
        %v1523 = vadd.f32 %v1439, %v1507
        %v1524 = vadd.f32 %v1442, %v1508
        %v1525 = vadd.f32 %v1444, %v1509
        %v1526 = vmul.f32 %v1510, 0.7978846
        %v1527 = vmul.f32 %v1511, 0.7978846
        %v1528 = vmul.f32 %v1512, 0.7978846
        %v1529 = vmul.f32 %v1513, 0.7978846
        %v1530 = vmul.f32 %v1514, 0.7978846
        %v1531 = vmul.f32 %v1515, 0.7978846
        %v1532 = vmul.f32 %v1516, 0.7978846
        %v1533 = vmul.f32 %v1517, 0.7978846
        %v1534 = vmul.f32 %v1518, 0.7978846
        %v1535 = vmul.f32 %v1519, 0.7978846
        %v1536 = vmul.f32 %v1520, 0.7978846
        %v1537 = vmul.f32 %v1521, 0.7978846
        %v1538 = vmul.f32 %v1522, 0.7978846
        %v1539 = vmul.f32 %v1523, 0.7978846
        %v1540 = vmul.f32 %v1524, 0.7978846
        %v1541 = vmul.f32 %v1525, 0.7978846
        %v1542 = vtanh.pop %v1526
        %v1543 = vtanh.pop %v1527
        %v1544 = vtanh.pop %v1528
        %v1545 = vtanh.pop %v1529
        %v1546 = vtanh.pop %v1530
        %v1547 = vtanh.pop %v1531
        %v1548 = vtanh.pop %v1532
        %v1549 = vtanh.pop %v1533
        %v1550 = vtanh.pop %v1534
        %v1551 = vtanh.pop %v1535
        %v1552 = vtanh.pop %v1536
        %v1553 = vtanh.pop %v1537
        %v1554 = vtanh.pop %v1538
        %v1555 = vtanh.pop %v1539
        %v1556 = vtanh.pop %v1540
        %v1557 = vtanh.pop %v1541
        %v1558 = vadd.f32 %v1542, 1.0
        %v1559 = vadd.f32 %v1543, 1.0
        %v1560 = vadd.f32 %v1544, 1.0
        %v1561 = vadd.f32 %v1545, 1.0
        %v1562 = vadd.f32 %v1546, 1.0
        %v1563 = vadd.f32 %v1547, 1.0
        %v1564 = vadd.f32 %v1548, 1.0
        %v1565 = vadd.f32 %v1549, 1.0
        %v1566 = vadd.f32 %v1550, 1.0
        %v1567 = vadd.f32 %v1551, 1.0
        %v1568 = vadd.f32 %v1552, 1.0
        %v1569 = vadd.f32 %v1553, 1.0
        %v1570 = vadd.f32 %v1554, 1.0
        %v1571 = vadd.f32 %v1555, 1.0
        %v1572 = vadd.f32 %v1556, 1.0
        %v1573 = vadd.f32 %v1557, 1.0
        %v1574 = vmul.f32 %v1446, %v1558
        %v1575 = vmul.f32 %v1447, %v1559
        %v1576 = vmul.f32 %v1448, %v1560
        %v1577 = vmul.f32 %v1449, %v1561
        %v1578 = vmul.f32 %v1450, %v1562
        %v1579 = vmul.f32 %v1451, %v1563
        %v1580 = vmul.f32 %v1452, %v1564
        %v1581 = vmul.f32 %v1453, %v1565
        %v1582 = vmul.f32 %v1454, %v1566
        %v1583 = vmul.f32 %v1455, %v1567
        %v1584 = vmul.f32 %v1456, %v1568
        %v1585 = vmul.f32 %v1457, %v1569
        %v1586 = vmul.f32 %v1458, %v1570
        %v1587 = vmul.f32 %v1459, %v1571
        %v1588 = vmul.f32 %v1460, %v1572
        %v1589 = vmul.f32 %v1461, %v1573
        %v1590 = vpack.c.bf16 %v1575, %v1574
        %v1591 = vpack.c.bf16 %v1577, %v1576
        %v1592 = vpack.c.bf16 %v1579, %v1578
        %v1593 = vpack.c.bf16 %v1581, %v1580
        %v1594 = vpack.c.bf16 %v1583, %v1582
        %v1595 = vpack.c.bf16 %v1585, %v1584
        %v1596 = vpack.c.bf16 %v1587, %v1586
        %v1597 = vpack.c.bf16 %v1589, %v1588
        %v1598 = vld [vmem:[%s7] sm:$0xf]
        %v1599 = vld [vmem:[%s7 + $0x4] sm:$0xf]
        %v1600 = vld [vmem:[%s7 + $0x8] sm:$0xf]
        %v1601 = vld [vmem:[%s7 + $0xc] sm:$0xf]
        %v1602 = vld [vmem:[%s7 + $0x10] sm:$0xf]
        %v1603 = vld [vmem:[%s7 + $0x14] sm:$0xf]
        %v1604 = vld [vmem:[%s7 + $0x18] sm:$0xf]
        %v1605 = vld [vmem:[%s7 + $0x1c] sm:$0xf]
        %v1606 = vld [vmem:[%s7 + $0x20] sm:$0xf]
        %v1607 = vld [vmem:[%s7 + $0x24] sm:$0xf]
        %v1608 = vld [vmem:[%s7 + $0x28] sm:$0xf]
        %v1609 = vld [vmem:[%s7 + $0x2c] sm:$0xf]
        %v1610 = vld [vmem:[%s7 + $0x30] sm:$0xf]
        %v1611 = vld [vmem:[%s7 + $0x34] sm:$0xf]
        %v1612 = vld [vmem:[%s7 + $0x38] sm:$0xf]
        %v1613 = vld [vmem:[%s7 + $0x3c] sm:$0xf]
        %v1614 = vld [vmem:[%s8] sm:$0x1]
        %v1616 = vperm.slane %v1614, 0
        %v1634 = vunpack.c.l.b16 %v1598
        %v1635 = vunpack.c.l.b16 %v1599
        %v1636 = vunpack.c.l.b16 %v1600
        %v1637 = vunpack.c.l.b16 %v1601
        %v1638 = vunpack.c.l.b16 %v1602
        %v1639 = vunpack.c.l.b16 %v1603
        %v1640 = vunpack.c.l.b16 %v1604
        %v1641 = vunpack.c.l.b16 %v1605
        %v1642 = vunpack.c.l.b16 %v1606
        %v1643 = vunpack.c.l.b16 %v1607
        %v1644 = vunpack.c.l.b16 %v1608
        %v1645 = vunpack.c.l.b16 %v1609
        %v1646 = vunpack.c.l.b16 %v1610
        %v1647 = vunpack.c.l.b16 %v1611
        %v1648 = vunpack.c.l.b16 %v1612
        %v1649 = vunpack.c.l.b16 %v1613
        %v1650 = vpack.c.b16 %v1635, %v1634
        %v1651 = vpack.c.b16 %v1637, %v1636
        %v1652 = vpack.c.b16 %v1639, %v1638
        %v1653 = vpack.c.b16 %v1641, %v1640
        %v1654 = vpack.c.b16 %v1643, %v1642
        %v1655 = vpack.c.b16 %v1645, %v1644
        %v1656 = vpack.c.b16 %v1647, %v1646
        %v1657 = vpack.c.b16 %v1649, %v1648
        %1666 = vmatpush.bf16.msra.mxu0 %v1657
        %1667 = vmatpush.bf16.msra.mxu0 %v1656
        %1668 = vmatpush.bf16.msra.mxu0 %v1655
        %1669 = vmatpush.bf16.msra.mxu0 %v1654
        %1670 = vmatpush.bf16.msra.mxu0 %v1653
        %1671 = vmatpush.bf16.msra.mxu0 %v1652
        %1672 = vmatpush.bf16.msra.mxu0 %v1651
        %1673 = vmatpush.bf16.msra.mxu0 %v1650
        %1674 = vmatmul.bf16.gmra.mxu0 %v1590
        %v1675 = vpop.f32.mrf.mxu0
        %v1676 = vadd.f32 %v1616, %v1675
        %v1677 = vpop.f32.mrf.mxu0
        %v1678 = vadd.f32 %v1616, %v1677
        %1679 = vmatmul.bf16.gmra.mxu0 %v1591
        %v1680 = vpop.f32.mrf.mxu0
        %v1681 = vadd.f32 %v1616, %v1680
        %v1682 = vpop.f32.mrf.mxu0
        %v1683 = vadd.f32 %v1616, %v1682
        %1684 = vmatmul.bf16.gmra.mxu0 %v1592
        %v1685 = vpop.f32.mrf.mxu0
        %v1686 = vadd.f32 %v1616, %v1685
        %v1687 = vpop.f32.mrf.mxu0
        %v1688 = vadd.f32 %v1616, %v1687
        %1689 = vmatmul.bf16.gmra.mxu0 %v1593
        %v1690 = vpop.f32.mrf.mxu0
        %v1691 = vadd.f32 %v1616, %v1690
        %v1692 = vpop.f32.mrf.mxu0
        %v1693 = vadd.f32 %v1616, %v1692
        %1694 = vmatmul.bf16.gmra.mxu0 %v1594
        %v1695 = vpop.f32.mrf.mxu0
        %v1696 = vadd.f32 %v1616, %v1695
        %v1697 = vpop.f32.mrf.mxu0
        %v1698 = vadd.f32 %v1616, %v1697
        %1699 = vmatmul.bf16.gmra.mxu0 %v1595
        %v1700 = vpop.f32.mrf.mxu0
        %v1701 = vadd.f32 %v1616, %v1700
        %v1702 = vpop.f32.mrf.mxu0
        %v1703 = vadd.f32 %v1616, %v1702
        %1704 = vmatmul.bf16.gmra.mxu0 %v1596
        %v1705 = vpop.f32.mrf.mxu0
        %v1706 = vadd.f32 %v1616, %v1705
        %v1707 = vpop.f32.mrf.mxu0
        %v1708 = vadd.f32 %v1616, %v1707
        %1709 = vmatmul.bf16.gmra.mxu0 %v1597
        %v1710 = vpop.f32.mrf.mxu0
        %v1711 = vadd.f32 %v1616, %v1710
        %v1712 = vpop.f32.mrf.mxu0
        %v1713 = vadd.f32 %v1616, %v1712
        %1714 = vdwg.mxu0
        %v1715 = vld [vmem:[%s9] sm:$0x1]
        %v1717 = vperm.slane %v1715, 0
        %v1719 = vmul.f32 %v1676, %v1717
        %v1720 = vmul.f32 %v1678, %v1717
        %v1721 = vmul.f32 %v1681, %v1717
        %v1722 = vmul.f32 %v1683, %v1717
        %v1723 = vmul.f32 %v1686, %v1717
        %v1724 = vmul.f32 %v1688, %v1717
        %v1725 = vmul.f32 %v1691, %v1717
        %v1726 = vmul.f32 %v1693, %v1717
        %v1727 = vmul.f32 %v1696, %v1717
        %v1728 = vmul.f32 %v1698, %v1717
        %v1729 = vmul.f32 %v1701, %v1717
        %v1730 = vmul.f32 %v1703, %v1717
        %v1731 = vmul.f32 %v1706, %v1717
        %v1732 = vmul.f32 %v1708, %v1717
        %v1733 = vmul.f32 %v1711, %v1717
        %v1734 = vmul.f32 %v1713, %v1717
        %v1735 = vadd.f32 %v549, %v1719
        %v1736 = vadd.f32 %v550, %v1720
        %v1737 = vadd.f32 %v551, %v1721
        %v1738 = vadd.f32 %v552, %v1722
        %v1739 = vadd.f32 %v553, %v1723
        %v1740 = vadd.f32 %v554, %v1724
        %v1741 = vadd.f32 %v555, %v1725
        %v1742 = vadd.f32 %v556, %v1726
        %v1743 = vadd.f32 %v557, %v1727
        %v1744 = vadd.f32 %v558, %v1728
        %v1745 = vadd.f32 %v559, %v1729
        %v1746 = vadd.f32 %v560, %v1730
        %v1747 = vadd.f32 %v561, %v1731
        %v1748 = vadd.f32 %v562, %v1732
        %v1749 = vadd.f32 %v563, %v1733
        %v1750 = vadd.f32 %v564, %v1734
        %1751 = vst [vmem:[%s325] sm:$0xff] %v1735
        %1752 = vst [vmem:[%s325 + $0x8] sm:$0xff] %v1736
        %1753 = vst [vmem:[%s325 + $0x10] sm:$0xff] %v1737
        %1754 = vst [vmem:[%s325 + $0x18] sm:$0xff] %v1738
        %1755 = vst [vmem:[%s325 + $0x20] sm:$0xff] %v1739
        %1756 = vst [vmem:[%s325 + $0x28] sm:$0xff] %v1740
        %1757 = vst [vmem:[%s325 + $0x30] sm:$0xff] %v1741
        %1758 = vst [vmem:[%s325 + $0x38] sm:$0xff] %v1742
        %1759 = vst [vmem:[%s325 + $0x40] sm:$0xff] %v1743
        %1760 = vst [vmem:[%s325 + $0x48] sm:$0xff] %v1744
        %1761 = vst [vmem:[%s325 + $0x50] sm:$0xff] %v1745
        %1762 = vst [vmem:[%s325 + $0x58] sm:$0xff] %v1746
        %1763 = vst [vmem:[%s325 + $0x60] sm:$0xff] %v1747
        %1764 = vst [vmem:[%s325 + $0x68] sm:$0xff] %v1748
        %1765 = vst [vmem:[%s325 + $0x70] sm:$0xff] %v1749
        %1766 = vst [vmem:[%s325 + $0x78] sm:$0xff] %v1750
        %s1767 = sand.u32 %s235, 1
        %s1768 = scalar_lea.sflag [#allocation5], %s1767
        %s1769 = sand.u32 %s235, 1
        %s1770 = smul.addr %s1769, 128
        %s1771 = scalar_lea.vmem [#allocation4], %s1770
        // Predicated region
        $region109: #{tpu_custom_call.1} parent=55 // pred_check
          %p1772 = pneg %p245
        $region110: #{tpu_custom_call.1} parent=55 // pred_check_branch
          %1774 = sbr.rel (%p1772) target = $region112
        $region111: #{tpu_custom_call.1} parent=55 // pred_region
          %s1775 = smul.u32 16, %s29
          %1777 = vsyncadd %s1768, 0
          %s1778 = smul.addr %s28, 32
          %s1779 = sadd.s32 %s1775, %s1778
          %s1780 = smul.addr %s1779, 8
          %s1781 = scalar_lea.hbm %s10, %s1780
          %s1782 = sshll.u32 %s1771, 4
          %s1783 = int_to_ptr.vmem [resolvable:$true] %s1782
          %s1784 = sshll.u32 %s1781, 4
          %s1785 = int_to_ptr.hbm [resolvable:$true] %s1784
          %1790 = dma.vmem_to_hbm [thread:$0]  %s1783, 2048, %s1785, %s1768, 128, 128, 8
        $region112: #{tpu_custom_call.1} parent=55 // pred_fallthru
          _
      $region56: #{tpu_custom_call.1} parent=5 // pred_fallthru
        _
      %p1791 = scmp.le.s32.totalorder 2, %s19
      // Predicated region
      $region113: #{tpu_custom_call.1} parent=5 // pred_check
        %p1792 = pneg %p1791
      $region114: #{tpu_custom_call.1} parent=5 // pred_check_branch
        %1794 = sbr.rel (%p1792) target = $region116
      $region115: #{tpu_custom_call.1} parent=5 // pred_region
        %s1795 = ssub.s32 %s19, 2
        // Predicated region
        $region117: #{tpu_custom_call.1} parent=115 // pred_check
          %p1796 = pneg %p251
        $region118: #{tpu_custom_call.1} parent=115 // pred_check_branch
          %1798 = sbr.rel (%p1796) target = $region120
        $region119: #{tpu_custom_call.1} parent=115 // pred_region
          %s1799 = sand.u32 %s236, 1
          %s1800 = scalar_lea.sflag [#allocation5], %s1799
          %s1801 = sand.u32 %s236, 1
          %s1802 = smul.addr %s1801, 128
          %s1803 = scalar_lea.vmem [#allocation4], %s1802
          %1805 = dma.done %s1800, 2048
        $region120: #{tpu_custom_call.1} parent=115 // pred_fallthru
          _
      $region116: #{tpu_custom_call.1} parent=5 // pred_fallthru
        _
    $region6: #{tpu_custom_call.1} parent=1 // loop_footer
      %s23 = sadd.s32 1, %s19
    $region7: #{tpu_custom_call.1} parent=1 // loop_footer_branch
      %18 = sbr.rel target = $region3
    $region8: #{tpu_custom_call.1} parent=1 // loop_exit
      _
    %1806 = vsyncpa [#allocation5], 1
    %s1807 = scalar_lea.sflag [#allocation5], 1
    %1808 = vsyncpa %s1807, 1
  %1809 = vsyncmov [#allocation3]
  %s1810 = vpop.sfrf %1809
  %p1811 = scmp.eq.s32.totalorder %s1810, 0
  %p1812 = pneg %p1811
  %1814 = shalt.err (%p1812)
  %s1815 = scalar_lea.sflag [#allocation3], 1
  %1816 = vsyncmov %s1815
  %s1817 = vpop.sfrf %1816
  %p1818 = scmp.eq.s32.totalorder %s1817, 0
  %p1819 = pneg %p1818
  %1821 = shalt.err (%p1819)

// kernel: tpu_custom_call.1
$region0: #{tpu_custom_call.1}
  #allocation0 [shape = 'u32[]', space=smem, size = 0x4, offset = 0x4, fixed_abs, tag = 'smem constant byte address 0x4 - core index']
  #allocation1 [shape = 'u32[72,128]{1,0:T(1,128)}', space=vmem, size = 0x9000, scoped, tag = 'internal scratch']
  #allocation2 [shape = 'f32[2,10,18,128]{3,2,1,0:T(8,128)}', space=vmem, size = 0x3c000, scoped, tag = 'scratch operand']
  #allocation3 [shape = 's32[2]{0}', space=sflag, size = 0x8, scoped, tag = 'scratch operand']
  #allocation6 [shape = 's32[]', space=sflag, size = 0x4, offset = 0, fixed_abs, tag = 'sflag constant byte address 0x0 - dummy sync flag']
  #allocation7 [shape = 's32[]', space=sflag, size = 0x4, offset = 0, fixed_abs, tag = 'sflag constant byte address 0x0 - dummy sync flag']
  %s0 = inlined_call_operand.vmem [shape: f32[2,18,18,128], index: 0, kind: input, shape index: {}]
  %s1 = inlined_call_operand.vmem [shape: f32[9,128], index: 1, kind: input, shape index: {}]
  %s2 = inlined_call_operand.vmem [shape: f32[1,128], index: 2, kind: input, shape index: {}]
  %s3 = inlined_call_operand.vmem [shape: f32[1,128], index: 3, kind: input, shape index: {}]
  %s4 = inlined_call_operand.vmem [shape: f32[1,128], index: 4, kind: input, shape index: {}]
  %s5 = inlined_call_operand.vmem [shape: bf16[128,128], index: 5, kind: input, shape index: {}]
  %s6 = inlined_call_operand.vmem [shape: f32[1,128], index: 6, kind: input, shape index: {}]
  %s7 = inlined_call_operand.vmem [shape: bf16[128,128], index: 7, kind: input, shape index: {}]
  %s8 = inlined_call_operand.vmem [shape: f32[1,128], index: 8, kind: input, shape index: {}]
  %s9 = inlined_call_operand.vmem [shape: f32[1,128], index: 9, kind: input, shape index: {}]
  %s10 = inlined_call_operand.hbm [shape: f32[2,256,128], index: 10, kind: output, shape index: {}]
  %s11 = sld [smem:[#allocation0]]
  $region121: #{tpu_custom_call.1} parent=0
    _
  %s13 = ssub.s32 1, %s11
  %s14 = scalar_select 0, %s13, %s11
  $region1: #{tpu_custom_call.1} parent=0
    #allocation4 [shape = 'u8[131072]{0}', space=vmem, size = 0x20000, scoped, tag = 'output window, operand 0']
    #allocation5 [shape = 's32[2]{0}', space=sflag, size = 0x8, scoped, tag = 'scoped memory for tpu_custom_call.1']
    %15 = vsyncpa [#allocation5], 0
    %s16 = scalar_lea.sflag [#allocation5], 1
    %17 = vsyncpa %s16, 0
    loop: start=0, step=1, limit=6
    $region2: #{tpu_custom_call.1} parent=1 // loop_pre_header
      _
    $region3: #{tpu_custom_call.1} parent=1 // loop_header
      %s19 = sphi 0, %s23
      %p20 = scmp.ge.s32.totalorder %s19, 6
      %s26 = sphi 0, %s38
      %s27 = sphi 0, %s34
      %s28 = sphi 0, %s26
      %s29 = sphi 0, %s27
      %s30 = sphi 0, %s28
      %s31 = sphi 0, %s29
      %s39 = sphi 0, %s39
      %s41 = sphi 0, %s39
      %s42 = sphi 0, %s41
      %s56 = sphi 0, %s42
      %s60 = sphi 0, %s60
      %s62 = sphi 0, %s60
      %s63 = sphi 0, %s62
      %s77 = sphi 0, %s63
      %s81 = sphi 0, %s81
      %s83 = sphi 0, %s81
      %s84 = sphi 0, %s83
      %s98 = sphi 0, %s84
      %s102 = sphi 0, %s102
      %s104 = sphi 0, %s102
      %s105 = sphi 0, %s104
      %s119 = sphi 0, %s105
      %s123 = sphi 0, %s123
      %s125 = sphi 0, %s123
      %s126 = sphi 0, %s125
      %s140 = sphi 0, %s126
      %s144 = sphi 0, %s144
      %s146 = sphi 0, %s144
      %s147 = sphi 0, %s146
      %s161 = sphi 0, %s147
      %s165 = sphi 0, %s165
      %s167 = sphi 0, %s165
      %s168 = sphi 0, %s167
      %s182 = sphi 0, %s168
      %s186 = sphi 0, %s186
      %s188 = sphi 0, %s186
      %s189 = sphi 0, %s188
      %s203 = sphi 0, %s189
      %s207 = sphi 0, %s207
      %s209 = sphi 0, %s207
      %s210 = sphi 0, %s209
      %s224 = sphi 0, %s210
      %s232 = sphi 0, %s234
      %s235 = sphi 0, %s232
      %s236 = sphi 0, %s235
      %s252 = sphi 0, %s236
    $region4: #{tpu_custom_call.1} parent=1 // loop_header_branch
      %22 = sbr.rel (%p20) target = $region8
    $region5: #{tpu_custom_call.1} parent=1 // loop_body
      %s24 = ssub.s32 %s19, 1
      %s25 = ssub.s32 %s19, 2
      %s32 = sadd.s32 1, %s27
      %p33 = scmp.ge.s32.totalorder %s32, 2
      %s34 = scalar_select %p33, 0, %s32
      %s35 = sadd.s32 1, %s26
      %s36 = scalar_select %p33, %s35, %s26
      %p37 = scmp.ge.s32.totalorder %s36, 2
      %s38 = scalar_select %p37, 0, %s36
      %s40 = sadd.s32 %s39, 1
      %p43 = scmp.eq.s32.totalorder %s19, 3
      %p44 = scmp.ne.s32.totalorder %s39, %s41
      %p45 = scmp.eq.s32.totalorder %s19, 0
      %p46 = por %p44, %p45
      %p47 = scmp.ne.s32.totalorder %s39, %s41
      %p48 = scmp.eq.s32.totalorder %s24, 3
      %p49 = por %p47, %p48
      %p50 = scmp.ne.s32.totalorder %s41, %s42
      %p51 = scmp.eq.s32.totalorder %s24, 0
      %p52 = por %p50, %p51
      %p53 = scmp.ne.s32.totalorder %s41, %s42
      %p54 = scmp.eq.s32.totalorder %s25, 3
      %p55 = por %p53, %p54
      %p57 = scmp.ne.s32.totalorder %s42, %s56
      %p58 = scmp.eq.s32.totalorder %s25, 0
      %p59 = por %p57, %p58
      %s61 = sadd.s32 %s60, 1
      %p64 = scmp.eq.s32.totalorder %s19, 3
      %p65 = scmp.ne.s32.totalorder %s60, %s62
      %p66 = scmp.eq.s32.totalorder %s19, 0
      %p67 = por %p65, %p66
      %p68 = scmp.ne.s32.totalorder %s60, %s62
      %p69 = scmp.eq.s32.totalorder %s24, 3
      %p70 = por %p68, %p69
      %p71 = scmp.ne.s32.totalorder %s62, %s63
      %p72 = scmp.eq.s32.totalorder %s24, 0
      %p73 = por %p71, %p72
      %p74 = scmp.ne.s32.totalorder %s62, %s63
      %p75 = scmp.eq.s32.totalorder %s25, 3
      %p76 = por %p74, %p75
      %p78 = scmp.ne.s32.totalorder %s63, %s77
      %p79 = scmp.eq.s32.totalorder %s25, 0
      %p80 = por %p78, %p79
      %s82 = sadd.s32 %s81, 1
      %p85 = scmp.eq.s32.totalorder %s19, 3
      %p86 = scmp.ne.s32.totalorder %s81, %s83
      %p87 = scmp.eq.s32.totalorder %s19, 0
      %p88 = por %p86, %p87
      %p89 = scmp.ne.s32.totalorder %s81, %s83
      %p90 = scmp.eq.s32.totalorder %s24, 3
      %p91 = por %p89, %p90
      %p92 = scmp.ne.s32.totalorder %s83, %s84
      %p93 = scmp.eq.s32.totalorder %s24, 0
      %p94 = por %p92, %p93
      %p95 = scmp.ne.s32.totalorder %s83, %s84
      %p96 = scmp.eq.s32.totalorder %s25, 3
      %p97 = por %p95, %p96
      %p99 = scmp.ne.s32.totalorder %s84, %s98
      %p100 = scmp.eq.s32.totalorder %s25, 0
      %p101 = por %p99, %p100
      %s103 = sadd.s32 %s102, 1
      %p106 = scmp.eq.s32.totalorder %s19, 3
      %p107 = scmp.ne.s32.totalorder %s102, %s104
      %p108 = scmp.eq.s32.totalorder %s19, 0
      %p109 = por %p107, %p108
      %p110 = scmp.ne.s32.totalorder %s102, %s104
      %p111 = scmp.eq.s32.totalorder %s24, 3
      %p112 = por %p110, %p111
      %p113 = scmp.ne.s32.totalorder %s104, %s105
      %p114 = scmp.eq.s32.totalorder %s24, 0
      %p115 = por %p113, %p114
      %p116 = scmp.ne.s32.totalorder %s104, %s105
      %p117 = scmp.eq.s32.totalorder %s25, 3
      %p118 = por %p116, %p117
      %p120 = scmp.ne.s32.totalorder %s105, %s119
      %p121 = scmp.eq.s32.totalorder %s25, 0
      %p122 = por %p120, %p121
      %s124 = sadd.s32 %s123, 1
      %p127 = scmp.eq.s32.totalorder %s19, 3
      %p128 = scmp.ne.s32.totalorder %s123, %s125
      %p129 = scmp.eq.s32.totalorder %s19, 0
      %p130 = por %p128, %p129
      %p131 = scmp.ne.s32.totalorder %s123, %s125
      %p132 = scmp.eq.s32.totalorder %s24, 3
      %p133 = por %p131, %p132
      %p134 = scmp.ne.s32.totalorder %s125, %s126
      %p135 = scmp.eq.s32.totalorder %s24, 0
      %p136 = por %p134, %p135
      %p137 = scmp.ne.s32.totalorder %s125, %s126
      %p138 = scmp.eq.s32.totalorder %s25, 3
      %p139 = por %p137, %p138
      %p141 = scmp.ne.s32.totalorder %s126, %s140
      %p142 = scmp.eq.s32.totalorder %s25, 0
      %p143 = por %p141, %p142
      %s145 = sadd.s32 %s144, 1
      %p148 = scmp.eq.s32.totalorder %s19, 3
      %p149 = scmp.ne.s32.totalorder %s144, %s146
      %p150 = scmp.eq.s32.totalorder %s19, 0
      %p151 = por %p149, %p150
      %p152 = scmp.ne.s32.totalorder %s144, %s146
      %p153 = scmp.eq.s32.totalorder %s24, 3
      %p154 = por %p152, %p153
      %p155 = scmp.ne.s32.totalorder %s146, %s147
      %p156 = scmp.eq.s32.totalorder %s24, 0
      %p157 = por %p155, %p156
      %p158 = scmp.ne.s32.totalorder %s146, %s147
      %p159 = scmp.eq.s32.totalorder %s25, 3
      %p160 = por %p158, %p159
      %p162 = scmp.ne.s32.totalorder %s147, %s161
      %p163 = scmp.eq.s32.totalorder %s25, 0
      %p164 = por %p162, %p163
      %s166 = sadd.s32 %s165, 1
      %p169 = scmp.eq.s32.totalorder %s19, 3
      %p170 = scmp.ne.s32.totalorder %s165, %s167
      %p171 = scmp.eq.s32.totalorder %s19, 0
      %p172 = por %p170, %p171
      %p173 = scmp.ne.s32.totalorder %s165, %s167
      %p174 = scmp.eq.s32.totalorder %s24, 3
      %p175 = por %p173, %p174
      %p176 = scmp.ne.s32.totalorder %s167, %s168
      %p177 = scmp.eq.s32.totalorder %s24, 0
      %p178 = por %p176, %p177
      %p179 = scmp.ne.s32.totalorder %s167, %s168
      %p180 = scmp.eq.s32.totalorder %s25, 3
      %p181 = por %p179, %p180
      %p183 = scmp.ne.s32.totalorder %s168, %s182
      %p184 = scmp.eq.s32.totalorder %s25, 0
      %p185 = por %p183, %p184
      %s187 = sadd.s32 %s186, 1
      %p190 = scmp.eq.s32.totalorder %s19, 3
      %p191 = scmp.ne.s32.totalorder %s186, %s188
      %p192 = scmp.eq.s32.totalorder %s19, 0
      %p193 = por %p191, %p192
      %p194 = scmp.ne.s32.totalorder %s186, %s188
      %p195 = scmp.eq.s32.totalorder %s24, 3
      %p196 = por %p194, %p195
      %p197 = scmp.ne.s32.totalorder %s188, %s189
      %p198 = scmp.eq.s32.totalorder %s24, 0
      %p199 = por %p197, %p198
      %p200 = scmp.ne.s32.totalorder %s188, %s189
      %p201 = scmp.eq.s32.totalorder %s25, 3
      %p202 = por %p200, %p201
      %p204 = scmp.ne.s32.totalorder %s189, %s203
      %p205 = scmp.eq.s32.totalorder %s25, 0
      %p206 = por %p204, %p205
      %s208 = sadd.s32 %s207, 1
      %p211 = scmp.eq.s32.totalorder %s19, 3
      %p212 = scmp.ne.s32.totalorder %s207, %s209
      %p213 = scmp.eq.s32.totalorder %s19, 0
      %p214 = por %p212, %p213
      %p215 = scmp.ne.s32.totalorder %s207, %s209
      %p216 = scmp.eq.s32.totalorder %s24, 3
      %p217 = por %p215, %p216
      %p218 = scmp.ne.s32.totalorder %s209, %s210
      %p219 = scmp.eq.s32.totalorder %s24, 0
      %p220 = por %p218, %p219
      %p221 = scmp.ne.s32.totalorder %s209, %s210
      %p222 = scmp.eq.s32.totalorder %s25, 3
      %p223 = por %p221, %p222
      %p225 = scmp.ne.s32.totalorder %s210, %s224
      %p226 = scmp.eq.s32.totalorder %s25, 0
      %p227 = por %p225, %p226
      %s228 = ssub.s32 %s26, %s38
      %s229 = ssub.s32 %s27, %s34
      %s230 = sor.u32 %s228, %s229
      %p231 = scmp.eq.s32.totalorder %s230, 0
      %s233 = sadd.s32 %s232, 1
      %s234 = scalar_select %p231, %s232, %s233
      %p237 = pneg %p231
      %p238 = scmp.eq.s32.totalorder %s19, 3
      %p239 = por %p237, %p238
      %p240 = scmp.ne.s32.totalorder %s232, %s235
      %p241 = scmp.eq.s32.totalorder %s19, 0
      %p242 = por %p240, %p241
      %p243 = scmp.ne.s32.totalorder %s232, %s235
      %p244 = scmp.eq.s32.totalorder %s24, 3
      %p245 = por %p243, %p244
      %p246 = scmp.ne.s32.totalorder %s235, %s236
      %p247 = scmp.eq.s32.totalorder %s24, 0
      %p248 = por %p246, %p247
      %p249 = scmp.ne.s32.totalorder %s235, %s236
      %p250 = scmp.eq.s32.totalorder %s25, 3
      %p251 = por %p249, %p250
      %p253 = scmp.ne.s32.totalorder %s236, %s252
      %p254 = scmp.eq.s32.totalorder %s25, 0
      %p255 = por %p253, %p254
      %p256 = scmp.le.s32.totalorder 1, %s19
      %p257 = scmp.lt.s32.totalorder %s19, 5
      %p258 = pnand %p256, %p257
      %p259 = pneg %p258
      // Predicated region
      $region9: #{tpu_custom_call.1} parent=5 // pred_check
        _
      $region10: #{tpu_custom_call.1} parent=5 // pred_check_branch
        %261 = sbr.rel (%p258) target = $region12
      $region11: #{tpu_custom_call.1} parent=5 // pred_region
        %s262 = ssub.s32 %s19, 1
        // Predicated region
        $region13: #{tpu_custom_call.1} parent=11 // pred_check
          %p263 = pneg %p52
        $region14: #{tpu_custom_call.1} parent=11 // pred_check_branch
          %265 = sbr.rel (%p263) target = $region16
        $region15: #{tpu_custom_call.1} parent=11 // pred_region
          _
        $region16: #{tpu_custom_call.1} parent=11 // pred_fallthru
          _
        // Predicated region
        $region17: #{tpu_custom_call.1} parent=11 // pred_check
          %p266 = pneg %p73
        $region18: #{tpu_custom_call.1} parent=11 // pred_check_branch
          %268 = sbr.rel (%p266) target = $region20
        $region19: #{tpu_custom_call.1} parent=11 // pred_region
          _
        $region20: #{tpu_custom_call.1} parent=11 // pred_fallthru
          _
        // Predicated region
        $region21: #{tpu_custom_call.1} parent=11 // pred_check
          %p269 = pneg %p94
        $region22: #{tpu_custom_call.1} parent=11 // pred_check_branch
          %271 = sbr.rel (%p269) target = $region24
        $region23: #{tpu_custom_call.1} parent=11 // pred_region
          _
        $region24: #{tpu_custom_call.1} parent=11 // pred_fallthru
          _
        // Predicated region
        $region25: #{tpu_custom_call.1} parent=11 // pred_check
          %p272 = pneg %p115
        $region26: #{tpu_custom_call.1} parent=11 // pred_check_branch
          %274 = sbr.rel (%p272) target = $region28
        $region27: #{tpu_custom_call.1} parent=11 // pred_region
          _
        $region28: #{tpu_custom_call.1} parent=11 // pred_fallthru
          _
        // Predicated region
        $region29: #{tpu_custom_call.1} parent=11 // pred_check
          %p275 = pneg %p136
        $region30: #{tpu_custom_call.1} parent=11 // pred_check_branch
          %277 = sbr.rel (%p275) target = $region32
        $region31: #{tpu_custom_call.1} parent=11 // pred_region
          _
        $region32: #{tpu_custom_call.1} parent=11 // pred_fallthru
          _
        // Predicated region
        $region33: #{tpu_custom_call.1} parent=11 // pred_check
          %p278 = pneg %p157
        $region34: #{tpu_custom_call.1} parent=11 // pred_check_branch
          %280 = sbr.rel (%p278) target = $region36
        $region35: #{tpu_custom_call.1} parent=11 // pred_region
          _
        $region36: #{tpu_custom_call.1} parent=11 // pred_fallthru
          _
        // Predicated region
        $region37: #{tpu_custom_call.1} parent=11 // pred_check
          %p281 = pneg %p178
        $region38: #{tpu_custom_call.1} parent=11 // pred_check_branch
          %283 = sbr.rel (%p281) target = $region40
        $region39: #{tpu_custom_call.1} parent=11 // pred_region
          _
        $region40: #{tpu_custom_call.1} parent=11 // pred_fallthru
          _
        // Predicated region
        $region41: #{tpu_custom_call.1} parent=11 // pred_check
          %p284 = pneg %p199
        $region42: #{tpu_custom_call.1} parent=11 // pred_check_branch
          %286 = sbr.rel (%p284) target = $region44
        $region43: #{tpu_custom_call.1} parent=11 // pred_region
          _
        $region44: #{tpu_custom_call.1} parent=11 // pred_fallthru
          _
        // Predicated region
        $region45: #{tpu_custom_call.1} parent=11 // pred_check
          %p287 = pneg %p220
        $region46: #{tpu_custom_call.1} parent=11 // pred_check_branch
          %289 = sbr.rel (%p287) target = $region48
        $region47: #{tpu_custom_call.1} parent=11 // pred_region
          _
        $region48: #{tpu_custom_call.1} parent=11 // pred_fallthru
          _
      $region12: #{tpu_custom_call.1} parent=5 // pred_fallthru
        _
      %p290 = scmp.lt.s32.totalorder %s19, 4
      // Predicated region
      $region49: #{tpu_custom_call.1} parent=5 // pred_check
        %p291 = pneg %p290
      $region50: #{tpu_custom_call.1} parent=5 // pred_check_branch
        %293 = sbr.rel (%p291) target = $region52
      $region51: #{tpu_custom_call.1} parent=5 // pred_region
        _
      $region52: #{tpu_custom_call.1} parent=5 // pred_fallthru
        _
      %p294 = scmp.le.s32.totalorder 1, %s19
      %p295 = scmp.lt.s32.totalorder %s19, 5
      %p296 = pnand %p294, %p295
      %p297 = pneg %p296
      // Predicated region
      $region53: #{tpu_custom_call.1} parent=5 // pred_check
        _
      $region54: #{tpu_custom_call.1} parent=5 // pred_check_branch
        %299 = sbr.rel (%p296) target = $region56
      $region55: #{tpu_custom_call.1} parent=5 // pred_region
        %s300 = ssub.s32 %s19, 1
        %p301 = pneg %p52
        %p302 = pneg %p49
        %p303 = pneg %p73
        %p304 = pneg %p70
        %p305 = pneg %p94
        %p306 = pneg %p91
        %p307 = pneg %p115
        %p308 = pneg %p112
        %p309 = pneg %p136
        %p310 = pneg %p133
        %p311 = pneg %p157
        %p312 = pneg %p154
        %p313 = pneg %p178
        %p314 = pneg %p175
        %p315 = pneg %p199
        %p316 = pneg %p196
        %p317 = pneg %p220
        %p318 = pneg %p217
        %p319 = pneg %p248
        %p320 = pneg %p245
        %s321 = sand.u32 %s235, 1
        %s322 = scalar_lea.sflag [#allocation5], %s321
        %s323 = sand.u32 %s235, 1
        %s324 = smul.addr %s323, 128
        %s325 = scalar_lea.vmem [#allocation4], %s324
        %s326 = smul.u32 16, %s29
        %s327 = sand.u32 %s29, 1
        %p328 = scmp.eq.s32.totalorder %s29, 0
        // Predicated region
        $region57: #{tpu_custom_call.1} parent=55 // pred_check
          %p329 = pneg %p328
        $region58: #{tpu_custom_call.1} parent=55 // pred_check_branch
          %331 = sbr.rel (%p329) target = $region60
        $region59: #{tpu_custom_call.1} parent=55 // pred_region
          %s332 = smul.u32 %s28, 432
          %s333 = scalar_lea.vmem %s0, %s332
          // Predicated region
          $region61: #{tpu_custom_call.1} parent=59 // pred_check
            _
          $region62: #{tpu_custom_call.1} parent=59 // pred_check_branch
            %335 = sbr.rel (0) target = $region64
          $region63: #{tpu_custom_call.1} parent=59 // pred_region
            %s336 = scalar_lea.vmem %s333, 16
            %s337 = scalar_lea.vmem [#allocation2], 16
            loop: start=0, step=1, limit=1
            $region65: #{tpu_custom_call.1} parent=63 // loop_pre_header
              _
            $region66: #{tpu_custom_call.1} parent=63 // loop_header
              %s339 = sphi 0, %s343
              %p340 = scmp.ge.s32.totalorder %s339, 1
              %s344 = sphi %s333, %s333
              %s345 = sphi [#allocation2], [#allocation2]
            $region67: #{tpu_custom_call.1} parent=63 // loop_header_branch
              %342 = sbr.rel (%p340) target = $region71
            $region68: #{tpu_custom_call.1} parent=63 // loop_body
              %v346 = vld [vmem:[%s344] sm:$0xff]
              %347 = vst [vmem:[%s345] sm:$0xff] %v346
              %v348 = vld [vmem:[%s344 + $0x8] sm:$0xff]
              %349 = vst [vmem:[%s345 + $0x8] sm:$0xff] %v348
              %v350 = vld [vmem:[%s344 + $0x18] sm:$0xff]
              %351 = vst [vmem:[%s345 + $0x18] sm:$0xff] %v350
              %v352 = vld [vmem:[%s344 + $0x20] sm:$0xff]
              %353 = vst [vmem:[%s345 + $0x20] sm:$0xff] %v352
              %v354 = vld [vmem:[%s344 + $0x30] sm:$0xff]
              %355 = vst [vmem:[%s345 + $0x30] sm:$0xff] %v354
              %v356 = vld [vmem:[%s344 + $0x38] sm:$0xff]
              %357 = vst [vmem:[%s345 + $0x38] sm:$0xff] %v356
              %v358 = vld [vmem:[%s344 + $0x48] sm:$0xff]
              %359 = vst [vmem:[%s345 + $0x48] sm:$0xff] %v358
              %v360 = vld [vmem:[%s344 + $0x50] sm:$0xff]
              %361 = vst [vmem:[%s345 + $0x50] sm:$0xff] %v360
              %v362 = vld [vmem:[%s344 + $0x60] sm:$0xff]
              %363 = vst [vmem:[%s345 + $0x60] sm:$0xff] %v362
              %v364 = vld [vmem:[%s344 + $0x68] sm:$0xff]
              %365 = vst [vmem:[%s345 + $0x68] sm:$0xff] %v364
              %v366 = vld [vmem:[%s344 + $0x78] sm:$0xff]
              %367 = vst [vmem:[%s345 + $0x78] sm:$0xff] %v366
              %v368 = vld [vmem:[%s344 + $0x80] sm:$0xff]
              %369 = vst [vmem:[%s345 + $0x80] sm:$0xff] %v368
              %v370 = vld [vmem:[%s344 + $0x90] sm:$0xff]
              %371 = vst [vmem:[%s345 + $0x90] sm:$0xff] %v370
              %v372 = vld [vmem:[%s344 + $0x98] sm:$0xff]
              %373 = vst [vmem:[%s345 + $0x98] sm:$0xff] %v372
              %v374 = vld [vmem:[%s344 + $0xa8] sm:$0xff]
              %375 = vst [vmem:[%s345 + $0xa8] sm:$0xff] %v374
              %v376 = vld [vmem:[%s344 + $0xb0] sm:$0xff]
              %377 = vst [vmem:[%s345 + $0xb0] sm:$0xff] %v376
              %v378 = vld [vmem:[%s344 + $0xc0] sm:$0xff]
              %379 = vst [vmem:[%s345 + $0xc0] sm:$0xff] %v378
              %v380 = vld [vmem:[%s344 + $0xc8] sm:$0xff]
              %381 = vst [vmem:[%s345 + $0xc8] sm:$0xff] %v380
              %v382 = vld [vmem:[%s344 + $0xd8] sm:$0xff]
              %383 = vst [vmem:[%s345 + $0xd8] sm:$0xff] %v382
              %v384 = vld [vmem:[%s344 + $0xe0] sm:$0xff]
              %385 = vst [vmem:[%s345 + $0xe0] sm:$0xff] %v384
            $region69: #{tpu_custom_call.1} parent=63 // loop_footer
              %s343 = sadd.s32 1, %s339
            $region70: #{tpu_custom_call.1} parent=63 // loop_footer_branch
              %338 = sbr.rel target = $region66
            $region71: #{tpu_custom_call.1} parent=63 // loop_exit
              _
            %s387 = ssub.s32 4, 1
            loop: start=0, step=1, limit=1
            $region72: #{tpu_custom_call.1} parent=63 // loop_pre_header
              _
            $region73: #{tpu_custom_call.1} parent=63 // loop_header
              %s389 = sphi 0, %s393
              %p390 = scmp.ge.s32.totalorder %s389, 1
              %s394 = sphi %s336, %s336
              %s395 = sphi %s337, %s337
            $region74: #{tpu_custom_call.1} parent=63 // loop_header_branch
              %392 = sbr.rel (%p390) target = $region78
            $region75: #{tpu_custom_call.1} parent=63 // loop_body
              %v396 = vld [vmem:[%s394] sm:%s387]
              %397 = vst [vmem:[%s395] sm:%s387] %v396
              %v398 = vld [vmem:[%s394 + $0x18] sm:%s387]
              %399 = vst [vmem:[%s395 + $0x18] sm:%s387] %v398
              %v400 = vld [vmem:[%s394 + $0x30] sm:%s387]
              %401 = vst [vmem:[%s395 + $0x30] sm:%s387] %v400
              %v402 = vld [vmem:[%s394 + $0x48] sm:%s387]
              %403 = vst [vmem:[%s395 + $0x48] sm:%s387] %v402
              %v404 = vld [vmem:[%s394 + $0x60] sm:%s387]
              %405 = vst [vmem:[%s395 + $0x60] sm:%s387] %v404
              %v406 = vld [vmem:[%s394 + $0x78] sm:%s387]
              %407 = vst [vmem:[%s395 + $0x78] sm:%s387] %v406
              %v408 = vld [vmem:[%s394 + $0x90] sm:%s387]
              %409 = vst [vmem:[%s395 + $0x90] sm:%s387] %v408
              %v410 = vld [vmem:[%s394 + $0xa8] sm:%s387]
              %411 = vst [vmem:[%s395 + $0xa8] sm:%s387] %v410
              %v412 = vld [vmem:[%s394 + $0xc0] sm:%s387]
              %413 = vst [vmem:[%s395 + $0xc0] sm:%s387] %v412
              %v414 = vld [vmem:[%s394 + $0xd8] sm:%s387]
              %415 = vst [vmem:[%s395 + $0xd8] sm:%s387] %v414
            $region76: #{tpu_custom_call.1} parent=63 // loop_footer
              %s393 = sadd.s32 1, %s389
            $region77: #{tpu_custom_call.1} parent=63 // loop_footer_branch
              %388 = sbr.rel target = $region73
            $region78: #{tpu_custom_call.1} parent=63 // loop_exit
              _
          $region64: #{tpu_custom_call.1} parent=59 // pred_fallthru
            _
          // Predicated region
          $region79: #{tpu_custom_call.1} parent=59 // pred_check
            _
          $region80: #{tpu_custom_call.1} parent=59 // pred_check_branch
            %418 = sbr.rel (0) target = $region82
          $region81: #{tpu_custom_call.1} parent=59 // pred_region
            %419 = vsyncadd [#allocation3], 2880
          $region82: #{tpu_custom_call.1} parent=59 // pred_fallthru
            _
        $region60: #{tpu_custom_call.1} parent=55 // pred_fallthru
          _
        %s420 = sadd.s32 %s29, 1
        %p421 = scmp.lt.s32.totalorder %s420, 2
        // Predicated region
        $region83: #{tpu_custom_call.1} parent=55 // pred_check
          %p422 = pneg %p421
        $region84: #{tpu_custom_call.1} parent=55 // pred_check_branch
          %424 = sbr.rel (%p422) target = $region86
        $region85: #{tpu_custom_call.1} parent=55 // pred_region
          %s425 = ssub.s32 1, %s327
          %s426 = smul.u32 %s420, 8
          %s427 = smul.u32 %s426, 24
          %s428 = smul.u32 %s28, 432
          %s429 = sadd.s32 %s427, %s428
          %s430 = scalar_lea.vmem %s0, %s429
          %s431 = smul.u32 %s425, 240
          %s432 = scalar_lea.vmem [#allocation2], %s431
          %s433 = scalar_lea.sflag [#allocation3], %s425
          // Predicated region
          $region87: #{tpu_custom_call.1} parent=85 // pred_check
            _
          $region88: #{tpu_custom_call.1} parent=85 // pred_check_branch
            %435 = sbr.rel (0) target = $region90
          $region89: #{tpu_custom_call.1} parent=85 // pred_region
            %s436 = scalar_lea.vmem %s430, 16
            %s437 = scalar_lea.vmem %s432, 16 [#allocation2]
            loop: start=0, step=1, limit=1
            $region91: #{tpu_custom_call.1} parent=89 // loop_pre_header
              _
            $region92: #{tpu_custom_call.1} parent=89 // loop_header
              %s439 = sphi 0, %s443
              %p440 = scmp.ge.s32.totalorder %s439, 1
              %s444 = sphi %s430, %s430
              %s445 = sphi %s432, %s432
            $region93: #{tpu_custom_call.1} parent=89 // loop_header_branch
              %442 = sbr.rel (%p440) target = $region97
            $region94: #{tpu_custom_call.1} parent=89 // loop_body
              %v446 = vld [vmem:[%s444] sm:$0xff]
              %447 = vst [vmem:[%s445] sm:$0xff] %v446
              %v448 = vld [vmem:[%s444 + $0x8] sm:$0xff]
              %449 = vst [vmem:[%s445 + $0x8] sm:$0xff] %v448
              %v450 = vld [vmem:[%s444 + $0x18] sm:$0xff]
              %451 = vst [vmem:[%s445 + $0x18] sm:$0xff] %v450
              %v452 = vld [vmem:[%s444 + $0x20] sm:$0xff]
              %453 = vst [vmem:[%s445 + $0x20] sm:$0xff] %v452
              %v454 = vld [vmem:[%s444 + $0x30] sm:$0xff]
              %455 = vst [vmem:[%s445 + $0x30] sm:$0xff] %v454
              %v456 = vld [vmem:[%s444 + $0x38] sm:$0xff]
              %457 = vst [vmem:[%s445 + $0x38] sm:$0xff] %v456
              %v458 = vld [vmem:[%s444 + $0x48] sm:$0xff]
              %459 = vst [vmem:[%s445 + $0x48] sm:$0xff] %v458
              %v460 = vld [vmem:[%s444 + $0x50] sm:$0xff]
              %461 = vst [vmem:[%s445 + $0x50] sm:$0xff] %v460
              %v462 = vld [vmem:[%s444 + $0x60] sm:$0xff]
              %463 = vst [vmem:[%s445 + $0x60] sm:$0xff] %v462
              %v464 = vld [vmem:[%s444 + $0x68] sm:$0xff]
              %465 = vst [vmem:[%s445 + $0x68] sm:$0xff] %v464
              %v466 = vld [vmem:[%s444 + $0x78] sm:$0xff]
              %467 = vst [vmem:[%s445 + $0x78] sm:$0xff] %v466
              %v468 = vld [vmem:[%s444 + $0x80] sm:$0xff]
              %469 = vst [vmem:[%s445 + $0x80] sm:$0xff] %v468
              %v470 = vld [vmem:[%s444 + $0x90] sm:$0xff]
              %471 = vst [vmem:[%s445 + $0x90] sm:$0xff] %v470
              %v472 = vld [vmem:[%s444 + $0x98] sm:$0xff]
              %473 = vst [vmem:[%s445 + $0x98] sm:$0xff] %v472
              %v474 = vld [vmem:[%s444 + $0xa8] sm:$0xff]
              %475 = vst [vmem:[%s445 + $0xa8] sm:$0xff] %v474
              %v476 = vld [vmem:[%s444 + $0xb0] sm:$0xff]
              %477 = vst [vmem:[%s445 + $0xb0] sm:$0xff] %v476
              %v478 = vld [vmem:[%s444 + $0xc0] sm:$0xff]
              %479 = vst [vmem:[%s445 + $0xc0] sm:$0xff] %v478
              %v480 = vld [vmem:[%s444 + $0xc8] sm:$0xff]
              %481 = vst [vmem:[%s445 + $0xc8] sm:$0xff] %v480
              %v482 = vld [vmem:[%s444 + $0xd8] sm:$0xff]
              %483 = vst [vmem:[%s445 + $0xd8] sm:$0xff] %v482
              %v484 = vld [vmem:[%s444 + $0xe0] sm:$0xff]
              %485 = vst [vmem:[%s445 + $0xe0] sm:$0xff] %v484
            $region95: #{tpu_custom_call.1} parent=89 // loop_footer
              %s443 = sadd.s32 1, %s439
            $region96: #{tpu_custom_call.1} parent=89 // loop_footer_branch
              %438 = sbr.rel target = $region92
            $region97: #{tpu_custom_call.1} parent=89 // loop_exit
              _
            %s487 = ssub.s32 4, 1
            loop: start=0, step=1, limit=1
            $region98: #{tpu_custom_call.1} parent=89 // loop_pre_header
              _
            $region99: #{tpu_custom_call.1} parent=89 // loop_header
              %s489 = sphi 0, %s493
              %p490 = scmp.ge.s32.totalorder %s489, 1
              %s494 = sphi %s436, %s436
              %s495 = sphi %s437, %s437
            $region100: #{tpu_custom_call.1} parent=89 // loop_header_branch
              %492 = sbr.rel (%p490) target = $region104
            $region101: #{tpu_custom_call.1} parent=89 // loop_body
              %v496 = vld [vmem:[%s494] sm:%s487]
              %497 = vst [vmem:[%s495] sm:%s487] %v496
              %v498 = vld [vmem:[%s494 + $0x18] sm:%s487]
              %499 = vst [vmem:[%s495 + $0x18] sm:%s487] %v498
              %v500 = vld [vmem:[%s494 + $0x30] sm:%s487]
              %501 = vst [vmem:[%s495 + $0x30] sm:%s487] %v500
              %v502 = vld [vmem:[%s494 + $0x48] sm:%s487]
              %503 = vst [vmem:[%s495 + $0x48] sm:%s487] %v502
              %v504 = vld [vmem:[%s494 + $0x60] sm:%s487]
              %505 = vst [vmem:[%s495 + $0x60] sm:%s487] %v504
              %v506 = vld [vmem:[%s494 + $0x78] sm:%s487]
              %507 = vst [vmem:[%s495 + $0x78] sm:%s487] %v506
              %v508 = vld [vmem:[%s494 + $0x90] sm:%s487]
              %509 = vst [vmem:[%s495 + $0x90] sm:%s487] %v508
              %v510 = vld [vmem:[%s494 + $0xa8] sm:%s487]
              %511 = vst [vmem:[%s495 + $0xa8] sm:%s487] %v510
              %v512 = vld [vmem:[%s494 + $0xc0] sm:%s487]
              %513 = vst [vmem:[%s495 + $0xc0] sm:%s487] %v512
              %v514 = vld [vmem:[%s494 + $0xd8] sm:%s487]
              %515 = vst [vmem:[%s495 + $0xd8] sm:%s487] %v514
            $region102: #{tpu_custom_call.1} parent=89 // loop_footer
              %s493 = sadd.s32 1, %s489
            $region103: #{tpu_custom_call.1} parent=89 // loop_footer_branch
              %488 = sbr.rel target = $region99
            $region104: #{tpu_custom_call.1} parent=89 // loop_exit
              _
          $region90: #{tpu_custom_call.1} parent=85 // pred_fallthru
            _
          // Predicated region
          $region105: #{tpu_custom_call.1} parent=85 // pred_check
            _
          $region106: #{tpu_custom_call.1} parent=85 // pred_check_branch
            %518 = sbr.rel (0) target = $region108
          $region107: #{tpu_custom_call.1} parent=85 // pred_region
            %519 = vsyncadd %s433, 2880
          $region108: #{tpu_custom_call.1} parent=85 // pred_fallthru
            _
        $region86: #{tpu_custom_call.1} parent=55 // pred_fallthru
          _
        %s520 = smul.u32 %s327, 240
        %s521 = scalar_lea.vmem [#allocation2], %s520
        %s522 = scalar_lea.sflag [#allocation3], %s327
        %s523 = smul.u32 10, 18
        %s524 = smul.u32 %s523, 1
        %s525 = sshll.u32 %s524, 4
        %526 = dma.done %s522, %s525
        %v527 = vld [vmem:[%s521] sm:$0xff]
        %v528 = vld [vmem:[%s521 + $0x8] sm:$0xff]
        %v529 = vld [vmem:[%s521 + $0x18] sm:$0xff]
        %v530 = vld [vmem:[%s521 + $0x20] sm:$0xff]
        %v531 = vld [vmem:[%s521 + $0x30] sm:$0xff]
        %v532 = vld [vmem:[%s521 + $0x38] sm:$0xff]
        %v533 = vld [vmem:[%s521 + $0x48] sm:$0xff]
        %v534 = vld [vmem:[%s521 + $0x50] sm:$0xff]
        %v535 = vld [vmem:[%s521 + $0x60] sm:$0xff]
        %v536 = vld [vmem:[%s521 + $0x68] sm:$0xff]
        %v537 = vld [vmem:[%s521 + $0x78] sm:$0xff]
        %v538 = vld [vmem:[%s521 + $0x80] sm:$0xff]
        %v539 = vld [vmem:[%s521 + $0x90] sm:$0xff]
        %v540 = vld [vmem:[%s521 + $0x98] sm:$0xff]
        %v541 = vld [vmem:[%s521 + $0xa8] sm:$0xff]
        %v542 = vld [vmem:[%s521 + $0xb0] sm:$0xff]
        %v543 = vld [vmem:[%s521 + $0xc0] sm:$0xff]
        %v544 = vld [vmem:[%s521 + $0xc8] sm:$0xff]
        %v545 = vld [vmem:[%s521 + $0xd8] sm:$0xff]
        %v546 = vld [vmem:[%s521 + $0xe0] sm:$0xff]
        %v547 = vld [vmem:[%s521 + $0x1] sm:$0xff]
        %v548 = vld [vmem:[%s521 + $0x9] sm:$0xff]
        %v549 = vld [vmem:[%s521 + $0x19] sm:$0xff]
        %v550 = vld [vmem:[%s521 + $0x21] sm:$0xff]
        %v551 = vld [vmem:[%s521 + $0x31] sm:$0xff]
        %v552 = vld [vmem:[%s521 + $0x39] sm:$0xff]
        %v553 = vld [vmem:[%s521 + $0x49] sm:$0xff]
        %v554 = vld [vmem:[%s521 + $0x51] sm:$0xff]
        %v555 = vld [vmem:[%s521 + $0x61] sm:$0xff]
        %v556 = vld [vmem:[%s521 + $0x69] sm:$0xff]
        %v557 = vld [vmem:[%s521 + $0x79] sm:$0xff]
        %v558 = vld [vmem:[%s521 + $0x81] sm:$0xff]
        %v559 = vld [vmem:[%s521 + $0x91] sm:$0xff]
        %v560 = vld [vmem:[%s521 + $0x99] sm:$0xff]
        %v561 = vld [vmem:[%s521 + $0xa9] sm:$0xff]
        %v562 = vld [vmem:[%s521 + $0xb1] sm:$0xff]
        %v563 = vld [vmem:[%s521 + $0xc1] sm:$0xff]
        %v564 = vld [vmem:[%s521 + $0xc9] sm:$0xff]
        %v565 = vld [vmem:[%s521 + $0xd9] sm:$0xff]
        %v566 = vld [vmem:[%s521 + $0xe1] sm:$0xff]
        %v567 = vld [vmem:[%s521 + $0x2] sm:$0xff]
        %v568 = vld [vmem:[%s521 + $0xa] sm:$0xff]
        %v569 = vld [vmem:[%s521 + $0x1a] sm:$0xff]
        %v570 = vld [vmem:[%s521 + $0x22] sm:$0xff]
        %v571 = vld [vmem:[%s521 + $0x32] sm:$0xff]
        %v572 = vld [vmem:[%s521 + $0x3a] sm:$0xff]
        %v573 = vld [vmem:[%s521 + $0x4a] sm:$0xff]
        %v574 = vld [vmem:[%s521 + $0x52] sm:$0xff]
        %v575 = vld [vmem:[%s521 + $0x62] sm:$0xff]
        %v576 = vld [vmem:[%s521 + $0x6a] sm:$0xff]
        %v577 = vld [vmem:[%s521 + $0x7a] sm:$0xff]
        %v578 = vld [vmem:[%s521 + $0x82] sm:$0xff]
        %v579 = vld [vmem:[%s521 + $0x92] sm:$0xff]
        %v580 = vld [vmem:[%s521 + $0x9a] sm:$0xff]
        %v581 = vld [vmem:[%s521 + $0xaa] sm:$0xff]
        %v582 = vld [vmem:[%s521 + $0xb2] sm:$0xff]
        %v583 = vld [vmem:[%s521 + $0xc2] sm:$0xff]
        %v584 = vld [vmem:[%s521 + $0xca] sm:$0xff]
        %v585 = vld [vmem:[%s521 + $0xda] sm:$0xff]
        %v586 = vld [vmem:[%s521 + $0xe2] sm:$0xff]
        %v587 = vld [vmem:[%s1] sm:$0x1]
        %v588 = vperm.slane %v587, 0
        %v589 = vmul.f32 %v527, %v588
        %v590 = vmul.f32 %v528, %v588
        %v591 = vmul.f32 %v529, %v588
        %v592 = vmul.f32 %v530, %v588
        %v593 = vmul.f32 %v531, %v588
        %v594 = vmul.f32 %v532, %v588
        %v595 = vmul.f32 %v533, %v588
        %v596 = vmul.f32 %v534, %v588
        %v597 = vmul.f32 %v535, %v588
        %v598 = vmul.f32 %v536, %v588
        %v599 = vmul.f32 %v537, %v588
        %v600 = vmul.f32 %v538, %v588
        %v601 = vmul.f32 %v539, %v588
        %v602 = vmul.f32 %v540, %v588
        %v603 = vmul.f32 %v541, %v588
        %v604 = vmul.f32 %v542, %v588
        %v605 = vld [vmem:[%s1 + $0x1] sm:$0x1]
        %v606 = vperm.slane %v605, 0
        %v607 = vmul.f32 %v547, %v606
        %v608 = vmul.f32 %v548, %v606
        %v609 = vmul.f32 %v549, %v606
        %v610 = vmul.f32 %v550, %v606
        %v611 = vmul.f32 %v551, %v606
        %v612 = vmul.f32 %v552, %v606
        %v613 = vmul.f32 %v553, %v606
        %v614 = vmul.f32 %v554, %v606
        %v615 = vmul.f32 %v555, %v606
        %v616 = vmul.f32 %v556, %v606
        %v617 = vmul.f32 %v557, %v606
        %v618 = vmul.f32 %v558, %v606
        %v619 = vmul.f32 %v559, %v606
        %v620 = vmul.f32 %v560, %v606
        %v621 = vmul.f32 %v561, %v606
        %v622 = vmul.f32 %v562, %v606
        %v623 = vadd.f32 %v589, %v607
        %v624 = vadd.f32 %v590, %v608
        %v625 = vadd.f32 %v591, %v609
        %v626 = vadd.f32 %v592, %v610
        %v627 = vadd.f32 %v593, %v611
        %v628 = vadd.f32 %v594, %v612
        %v629 = vadd.f32 %v595, %v613
        %v630 = vadd.f32 %v596, %v614
        %v631 = vadd.f32 %v597, %v615
        %v632 = vadd.f32 %v598, %v616
        %v633 = vadd.f32 %v599, %v617
        %v634 = vadd.f32 %v600, %v618
        %v635 = vadd.f32 %v601, %v619
        %v636 = vadd.f32 %v602, %v620
        %v637 = vadd.f32 %v603, %v621
        %v638 = vadd.f32 %v604, %v622
        %v639 = vld [vmem:[%s1 + $0x2] sm:$0x1]
        %v640 = vperm.slane %v639, 0
        %v641 = vmul.f32 %v567, %v640
        %v642 = vmul.f32 %v568, %v640
        %v643 = vmul.f32 %v569, %v640
        %v644 = vmul.f32 %v570, %v640
        %v645 = vmul.f32 %v571, %v640
        %v646 = vmul.f32 %v572, %v640
        %v647 = vmul.f32 %v573, %v640
        %v648 = vmul.f32 %v574, %v640
        %v649 = vmul.f32 %v575, %v640
        %v650 = vmul.f32 %v576, %v640
        %v651 = vmul.f32 %v577, %v640
        %v652 = vmul.f32 %v578, %v640
        %v653 = vmul.f32 %v579, %v640
        %v654 = vmul.f32 %v580, %v640
        %v655 = vmul.f32 %v581, %v640
        %v656 = vmul.f32 %v582, %v640
        %v657 = vadd.f32 %v623, %v641
        %v658 = vadd.f32 %v624, %v642
        %v659 = vadd.f32 %v625, %v643
        %v660 = vadd.f32 %v626, %v644
        %v661 = vadd.f32 %v627, %v645
        %v662 = vadd.f32 %v628, %v646
        %v663 = vadd.f32 %v629, %v647
        %v664 = vadd.f32 %v630, %v648
        %v665 = vadd.f32 %v631, %v649
        %v666 = vadd.f32 %v632, %v650
        %v667 = vadd.f32 %v633, %v651
        %v668 = vadd.f32 %v634, %v652
        %v669 = vadd.f32 %v635, %v653
        %v670 = vadd.f32 %v636, %v654
        %v671 = vadd.f32 %v637, %v655
        %v672 = vadd.f32 %v638, %v656
        %v673 = vld [vmem:[%s1 + $0x3] sm:$0x1]
        %v674 = vperm.slane %v673, 0
        %v675 = vmul.f32 %v529, %v674
        %v676 = vmul.f32 %v530, %v674
        %v677 = vmul.f32 %v531, %v674
        %v678 = vmul.f32 %v532, %v674
        %v679 = vmul.f32 %v533, %v674
        %v680 = vmul.f32 %v534, %v674
        %v681 = vmul.f32 %v535, %v674
        %v682 = vmul.f32 %v536, %v674
        %v683 = vmul.f32 %v537, %v674
        %v684 = vmul.f32 %v538, %v674
        %v685 = vmul.f32 %v539, %v674
        %v686 = vmul.f32 %v540, %v674
        %v687 = vmul.f32 %v541, %v674
        %v688 = vmul.f32 %v542, %v674
        %v689 = vmul.f32 %v543, %v674
        %v690 = vmul.f32 %v544, %v674
        %v691 = vadd.f32 %v657, %v675
        %v692 = vadd.f32 %v658, %v676
        %v693 = vadd.f32 %v659, %v677
        %v694 = vadd.f32 %v660, %v678
        %v695 = vadd.f32 %v661, %v679
        %v696 = vadd.f32 %v662, %v680
        %v697 = vadd.f32 %v663, %v681
        %v698 = vadd.f32 %v664, %v682
        %v699 = vadd.f32 %v665, %v683
        %v700 = vadd.f32 %v666, %v684
        %v701 = vadd.f32 %v667, %v685
        %v702 = vadd.f32 %v668, %v686
        %v703 = vadd.f32 %v669, %v687
        %v704 = vadd.f32 %v670, %v688
        %v705 = vadd.f32 %v671, %v689
        %v706 = vadd.f32 %v672, %v690
        %v707 = vld [vmem:[%s1 + $0x4] sm:$0x1]
        %v708 = vperm.slane %v707, 0
        %v709 = vmul.f32 %v549, %v708
        %v710 = vmul.f32 %v550, %v708
        %v711 = vmul.f32 %v551, %v708
        %v712 = vmul.f32 %v552, %v708
        %v713 = vmul.f32 %v553, %v708
        %v714 = vmul.f32 %v554, %v708
        %v715 = vmul.f32 %v555, %v708
        %v716 = vmul.f32 %v556, %v708
        %v717 = vmul.f32 %v557, %v708
        %v718 = vmul.f32 %v558, %v708
        %v719 = vmul.f32 %v559, %v708
        %v720 = vmul.f32 %v560, %v708
        %v721 = vmul.f32 %v561, %v708
        %v722 = vmul.f32 %v562, %v708
        %v723 = vmul.f32 %v563, %v708
        %v724 = vmul.f32 %v564, %v708
        %v725 = vadd.f32 %v691, %v709
        %v726 = vadd.f32 %v692, %v710
        %v727 = vadd.f32 %v693, %v711
        %v728 = vadd.f32 %v694, %v712
        %v729 = vadd.f32 %v695, %v713
        %v730 = vadd.f32 %v696, %v714
        %v731 = vadd.f32 %v697, %v715
        %v732 = vadd.f32 %v698, %v716
        %v733 = vadd.f32 %v699, %v717
        %v734 = vadd.f32 %v700, %v718
        %v735 = vadd.f32 %v701, %v719
        %v736 = vadd.f32 %v702, %v720
        %v737 = vadd.f32 %v703, %v721
        %v738 = vadd.f32 %v704, %v722
        %v739 = vadd.f32 %v705, %v723
        %v740 = vadd.f32 %v706, %v724
        %v741 = vld [vmem:[%s1 + $0x5] sm:$0x1]
        %v742 = vperm.slane %v741, 0
        %v743 = vmul.f32 %v569, %v742
        %v744 = vmul.f32 %v570, %v742
        %v745 = vmul.f32 %v571, %v742
        %v746 = vmul.f32 %v572, %v742
        %v747 = vmul.f32 %v573, %v742
        %v748 = vmul.f32 %v574, %v742
        %v749 = vmul.f32 %v575, %v742
        %v750 = vmul.f32 %v576, %v742
        %v751 = vmul.f32 %v577, %v742
        %v752 = vmul.f32 %v578, %v742
        %v753 = vmul.f32 %v579, %v742
        %v754 = vmul.f32 %v580, %v742
        %v755 = vmul.f32 %v581, %v742
        %v756 = vmul.f32 %v582, %v742
        %v757 = vmul.f32 %v583, %v742
        %v758 = vmul.f32 %v584, %v742
        %v759 = vadd.f32 %v725, %v743
        %v760 = vadd.f32 %v726, %v744
        %v761 = vadd.f32 %v727, %v745
        %v762 = vadd.f32 %v728, %v746
        %v763 = vadd.f32 %v729, %v747
        %v764 = vadd.f32 %v730, %v748
        %v765 = vadd.f32 %v731, %v749
        %v766 = vadd.f32 %v732, %v750
        %v767 = vadd.f32 %v733, %v751
        %v768 = vadd.f32 %v734, %v752
        %v769 = vadd.f32 %v735, %v753
        %v770 = vadd.f32 %v736, %v754
        %v771 = vadd.f32 %v737, %v755
        %v772 = vadd.f32 %v738, %v756
        %v773 = vadd.f32 %v739, %v757
        %v774 = vadd.f32 %v740, %v758
        %v775 = vld [vmem:[%s1 + $0x6] sm:$0x1]
        %v776 = vperm.slane %v775, 0
        %v777 = vmul.f32 %v531, %v776
        %v778 = vmul.f32 %v532, %v776
        %v779 = vmul.f32 %v533, %v776
        %v780 = vmul.f32 %v534, %v776
        %v781 = vmul.f32 %v535, %v776
        %v782 = vmul.f32 %v536, %v776
        %v783 = vmul.f32 %v537, %v776
        %v784 = vmul.f32 %v538, %v776
        %v785 = vmul.f32 %v539, %v776
        %v786 = vmul.f32 %v540, %v776
        %v787 = vmul.f32 %v541, %v776
        %v788 = vmul.f32 %v542, %v776
        %v789 = vmul.f32 %v543, %v776
        %v790 = vmul.f32 %v544, %v776
        %v791 = vmul.f32 %v545, %v776
        %v792 = vmul.f32 %v546, %v776
        %v793 = vadd.f32 %v759, %v777
        %v794 = vadd.f32 %v760, %v778
        %v795 = vadd.f32 %v761, %v779
        %v796 = vadd.f32 %v762, %v780
        %v797 = vadd.f32 %v763, %v781
        %v798 = vadd.f32 %v764, %v782
        %v799 = vadd.f32 %v765, %v783
        %v800 = vadd.f32 %v766, %v784
        %v801 = vadd.f32 %v767, %v785
        %v802 = vadd.f32 %v768, %v786
        %v803 = vadd.f32 %v769, %v787
        %v804 = vadd.f32 %v770, %v788
        %v805 = vadd.f32 %v771, %v789
        %v806 = vadd.f32 %v772, %v790
        %v807 = vadd.f32 %v773, %v791
        %v808 = vadd.f32 %v774, %v792
        %v809 = vld [vmem:[%s1 + $0x7] sm:$0x1]
        %v810 = vperm.slane %v809, 0
        %v811 = vmul.f32 %v551, %v810
        %v812 = vmul.f32 %v552, %v810
        %v813 = vmul.f32 %v553, %v810
        %v814 = vmul.f32 %v554, %v810
        %v815 = vmul.f32 %v555, %v810
        %v816 = vmul.f32 %v556, %v810
        %v817 = vmul.f32 %v557, %v810
        %v818 = vmul.f32 %v558, %v810
        %v819 = vmul.f32 %v559, %v810
        %v820 = vmul.f32 %v560, %v810
        %v821 = vmul.f32 %v561, %v810
        %v822 = vmul.f32 %v562, %v810
        %v823 = vmul.f32 %v563, %v810
        %v824 = vmul.f32 %v564, %v810
        %v825 = vmul.f32 %v565, %v810
        %v826 = vmul.f32 %v566, %v810
        %v827 = vadd.f32 %v793, %v811
        %v828 = vadd.f32 %v794, %v812
        %v829 = vadd.f32 %v795, %v813
        %v830 = vadd.f32 %v796, %v814
        %v831 = vadd.f32 %v797, %v815
        %v832 = vadd.f32 %v798, %v816
        %v833 = vadd.f32 %v799, %v817
        %v834 = vadd.f32 %v800, %v818
        %v835 = vadd.f32 %v801, %v819
        %v836 = vadd.f32 %v802, %v820
        %v837 = vadd.f32 %v803, %v821
        %v838 = vadd.f32 %v804, %v822
        %v839 = vadd.f32 %v805, %v823
        %v840 = vadd.f32 %v806, %v824
        %v841 = vadd.f32 %v807, %v825
        %v842 = vadd.f32 %v808, %v826
        %v843 = vld [vmem:[%s1 + $0x8] sm:$0x1]
        %v844 = vperm.slane %v843, 0
        %v845 = vmul.f32 %v571, %v844
        %v846 = vmul.f32 %v572, %v844
        %v847 = vmul.f32 %v573, %v844
        %v848 = vmul.f32 %v574, %v844
        %v849 = vmul.f32 %v575, %v844
        %v850 = vmul.f32 %v576, %v844
        %v851 = vmul.f32 %v577, %v844
        %v852 = vmul.f32 %v578, %v844
        %v853 = vmul.f32 %v579, %v844
        %v854 = vmul.f32 %v580, %v844
        %v855 = vmul.f32 %v581, %v844
        %v856 = vmul.f32 %v582, %v844
        %v857 = vmul.f32 %v583, %v844
        %v858 = vmul.f32 %v584, %v844
        %v859 = vmul.f32 %v585, %v844
        %v860 = vmul.f32 %v586, %v844
        %v861 = vadd.f32 %v827, %v845
        %v862 = vadd.f32 %v828, %v846
        %v863 = vadd.f32 %v829, %v847
        %v864 = vadd.f32 %v830, %v848
        %v865 = vadd.f32 %v831, %v849
        %v866 = vadd.f32 %v832, %v850
        %v867 = vadd.f32 %v833, %v851
        %v868 = vadd.f32 %v834, %v852
        %v869 = vadd.f32 %v835, %v853
        %v870 = vadd.f32 %v836, %v854
        %v871 = vadd.f32 %v837, %v855
        %v872 = vadd.f32 %v838, %v856
        %v873 = vadd.f32 %v839, %v857
        %v874 = vadd.f32 %v840, %v858
        %v875 = vadd.f32 %v841, %v859
        %v876 = vadd.f32 %v842, %v860
        %v877 = vld [vmem:[%s2] sm:$0x1]
        %v879 = vperm.slane %v877, 0
        %v881 = vadd.f32 %v861, %v879
        %v882 = vadd.f32 %v862, %v879
        %v883 = vadd.f32 %v863, %v879
        %v884 = vadd.f32 %v864, %v879
        %v885 = vadd.f32 %v865, %v879
        %v886 = vadd.f32 %v866, %v879
        %v887 = vadd.f32 %v867, %v879
        %v888 = vadd.f32 %v868, %v879
        %v889 = vadd.f32 %v869, %v879
        %v890 = vadd.f32 %v870, %v879
        %v891 = vadd.f32 %v871, %v879
        %v892 = vadd.f32 %v872, %v879
        %v893 = vadd.f32 %v873, %v879
        %v894 = vadd.f32 %v874, %v879
        %v895 = vadd.f32 %v875, %v879
        %v896 = vadd.f32 %v876, %v879
        %897 = vadd.xlane.f32.xlu0 %v881
        %v898 = vpop.xlane.xlu0 %897
        %899 = vadd.xlane.f32.xlu0 %v882
        %v900 = vpop.xlane.xlu0 %899
        %901 = vadd.xlane.f32.xlu0 %v883
        %v902 = vpop.xlane.xlu0 %901
        %903 = vadd.xlane.f32.xlu0 %v884
        %v904 = vpop.xlane.xlu0 %903
        %905 = vadd.xlane.f32.xlu0 %v885
        %v906 = vpop.xlane.xlu0 %905
        %907 = vadd.xlane.f32.xlu0 %v886
        %v908 = vpop.xlane.xlu0 %907
        %909 = vadd.xlane.f32.xlu0 %v887
        %v910 = vpop.xlane.xlu0 %909
        %911 = vadd.xlane.f32.xlu0 %v888
        %v912 = vpop.xlane.xlu0 %911
        %913 = vadd.xlane.f32.xlu0 %v889
        %v914 = vpop.xlane.xlu0 %913
        %915 = vadd.xlane.f32.xlu0 %v890
        %v916 = vpop.xlane.xlu0 %915
        %917 = vadd.xlane.f32.xlu0 %v891
        %v918 = vpop.xlane.xlu0 %917
        %919 = vadd.xlane.f32.xlu0 %v892
        %v920 = vpop.xlane.xlu0 %919
        %921 = vadd.xlane.f32.xlu0 %v893
        %v922 = vpop.xlane.xlu0 %921
        %923 = vadd.xlane.f32.xlu0 %v894
        %v924 = vpop.xlane.xlu0 %923
        %925 = vadd.xlane.f32.xlu0 %v895
        %v926 = vpop.xlane.xlu0 %925
        %927 = vadd.xlane.f32.xlu0 %v896
        %v928 = vpop.xlane.xlu0 %927
        %v929 = vmul.f32 %v898, 0.125
        %v930 = vmul.f32 %v900, 0.125
        %v931 = vmul.f32 %v902, 0.125
        %v932 = vmul.f32 %v904, 0.125
        %v933 = vmul.f32 %v906, 0.125
        %v934 = vmul.f32 %v908, 0.125
        %v935 = vmul.f32 %v910, 0.125
        %v936 = vmul.f32 %v912, 0.125
        %v937 = vmul.f32 %v914, 0.125
        %v938 = vmul.f32 %v916, 0.125
        %v939 = vmul.f32 %v918, 0.125
        %v940 = vmul.f32 %v920, 0.125
        %v941 = vmul.f32 %v922, 0.125
        %v942 = vmul.f32 %v924, 0.125
        %v943 = vmul.f32 %v926, 0.125
        %v944 = vmul.f32 %v928, 0.125
        %v945 = vsub.f32 %v881, %v929
        %v946 = vsub.f32 %v882, %v930
        %v947 = vsub.f32 %v883, %v931
        %v948 = vsub.f32 %v884, %v932
        %v949 = vsub.f32 %v885, %v933
        %v950 = vsub.f32 %v886, %v934
        %v951 = vsub.f32 %v887, %v935
        %v952 = vsub.f32 %v888, %v936
        %v953 = vsub.f32 %v889, %v937
        %v954 = vsub.f32 %v890, %v938
        %v955 = vsub.f32 %v891, %v939
        %v956 = vsub.f32 %v892, %v940
        %v957 = vsub.f32 %v893, %v941
        %v958 = vsub.f32 %v894, %v942
        %v959 = vsub.f32 %v895, %v943
        %v960 = vsub.f32 %v896, %v944
        %v961 = vmul.f32 %v945, %v945
        %v962 = vmul.f32 %v946, %v946
        %v963 = vmul.f32 %v947, %v947
        %v964 = vmul.f32 %v948, %v948
        %v965 = vmul.f32 %v949, %v949
        %v966 = vmul.f32 %v950, %v950
        %v967 = vmul.f32 %v951, %v951
        %v968 = vmul.f32 %v952, %v952
        %v969 = vmul.f32 %v953, %v953
        %v970 = vmul.f32 %v954, %v954
        %v971 = vmul.f32 %v955, %v955
        %v972 = vmul.f32 %v956, %v956
        %v973 = vmul.f32 %v957, %v957
        %v974 = vmul.f32 %v958, %v958
        %v975 = vmul.f32 %v959, %v959
        %v976 = vmul.f32 %v960, %v960
        %977 = vadd.xlane.f32.xlu0 %v961
        %v978 = vpop.xlane.xlu0 %977
        %979 = vadd.xlane.f32.xlu0 %v962
        %v980 = vpop.xlane.xlu0 %979
        %981 = vadd.xlane.f32.xlu0 %v963
        %v982 = vpop.xlane.xlu0 %981
        %983 = vadd.xlane.f32.xlu0 %v964
        %v984 = vpop.xlane.xlu0 %983
        %985 = vadd.xlane.f32.xlu0 %v965
        %v986 = vpop.xlane.xlu0 %985
        %987 = vadd.xlane.f32.xlu0 %v966
        %v988 = vpop.xlane.xlu0 %987
        %989 = vadd.xlane.f32.xlu0 %v967
        %v990 = vpop.xlane.xlu0 %989
        %991 = vadd.xlane.f32.xlu0 %v968
        %v992 = vpop.xlane.xlu0 %991
        %993 = vadd.xlane.f32.xlu0 %v969
        %v994 = vpop.xlane.xlu0 %993
        %995 = vadd.xlane.f32.xlu0 %v970
        %v996 = vpop.xlane.xlu0 %995
        %997 = vadd.xlane.f32.xlu0 %v971
        %v998 = vpop.xlane.xlu0 %997
        %999 = vadd.xlane.f32.xlu0 %v972
        %v1000 = vpop.xlane.xlu0 %999
        %1001 = vadd.xlane.f32.xlu0 %v973
        %v1002 = vpop.xlane.xlu0 %1001
        %1003 = vadd.xlane.f32.xlu0 %v974
        %v1004 = vpop.xlane.xlu0 %1003
        %1005 = vadd.xlane.f32.xlu0 %v975
        %v1006 = vpop.xlane.xlu0 %1005
        %1007 = vadd.xlane.f32.xlu0 %v976
        %v1008 = vpop.xlane.xlu0 %1007
        %v1009 = vmul.f32 %v929, %v929
        %v1010 = vmul.f32 %v930, %v930
        %v1011 = vmul.f32 %v931, %v931
        %v1012 = vmul.f32 %v932, %v932
        %v1013 = vmul.f32 %v933, %v933
        %v1014 = vmul.f32 %v934, %v934
        %v1015 = vmul.f32 %v935, %v935
        %v1016 = vmul.f32 %v936, %v936
        %v1017 = vmul.f32 %v937, %v937
        %v1018 = vmul.f32 %v938, %v938
        %v1019 = vmul.f32 %v939, %v939
        %v1020 = vmul.f32 %v940, %v940
        %v1021 = vmul.f32 %v941, %v941
        %v1022 = vmul.f32 %v942, %v942
        %v1023 = vmul.f32 %v943, %v943
        %v1024 = vmul.f32 %v944, %v944
        %v1025 = vmul.f32 %v1009, 120.0
        %v1026 = vmul.f32 %v1010, 120.0
        %v1027 = vmul.f32 %v1011, 120.0
        %v1028 = vmul.f32 %v1012, 120.0
        %v1029 = vmul.f32 %v1013, 120.0
        %v1030 = vmul.f32 %v1014, 120.0
        %v1031 = vmul.f32 %v1015, 120.0
        %v1032 = vmul.f32 %v1016, 120.0
        %v1033 = vmul.f32 %v1017, 120.0
        %v1034 = vmul.f32 %v1018, 120.0
        %v1035 = vmul.f32 %v1019, 120.0
        %v1036 = vmul.f32 %v1020, 120.0
        %v1037 = vmul.f32 %v1021, 120.0
        %v1038 = vmul.f32 %v1022, 120.0
        %v1039 = vmul.f32 %v1023, 120.0
        %v1040 = vmul.f32 %v1024, 120.0
        %v1041 = vsub.f32 %v978, %v1025
        %v1042 = vsub.f32 %v980, %v1026
        %v1043 = vsub.f32 %v982, %v1027
        %v1044 = vsub.f32 %v984, %v1028
        %v1045 = vsub.f32 %v986, %v1029
        %v1046 = vsub.f32 %v988, %v1030
        %v1047 = vsub.f32 %v990, %v1031
        %v1048 = vsub.f32 %v992, %v1032
        %v1049 = vsub.f32 %v994, %v1033
        %v1050 = vsub.f32 %v996, %v1034
        %v1051 = vsub.f32 %v998, %v1035
        %v1052 = vsub.f32 %v1000, %v1036
        %v1053 = vsub.f32 %v1002, %v1037
        %v1054 = vsub.f32 %v1004, %v1038
        %v1055 = vsub.f32 %v1006, %v1039
        %v1056 = vsub.f32 %v1008, %v1040
        %v1057 = vmul.f32 %v1041, 0.125
        %v1058 = vmul.f32 %v1042, 0.125
        %v1059 = vmul.f32 %v1043, 0.125
        %v1060 = vmul.f32 %v1044, 0.125
        %v1061 = vmul.f32 %v1045, 0.125
        %v1062 = vmul.f32 %v1046, 0.125
        %v1063 = vmul.f32 %v1047, 0.125
        %v1064 = vmul.f32 %v1048, 0.125
        %v1065 = vmul.f32 %v1049, 0.125
        %v1066 = vmul.f32 %v1050, 0.125
        %v1067 = vmul.f32 %v1051, 0.125
        %v1068 = vmul.f32 %v1052, 0.125
        %v1069 = vmul.f32 %v1053, 0.125
        %v1070 = vmul.f32 %v1054, 0.125
        %v1071 = vmul.f32 %v1055, 0.125
        %v1072 = vmul.f32 %v1056, 0.125
        %v1073 = vmax.f32 %v1057, 0.0
        %v1074 = vmax.f32 %v1058, 0.0
        %v1075 = vmax.f32 %v1059, 0.0
        %v1076 = vmax.f32 %v1060, 0.0
        %v1077 = vmax.f32 %v1061, 0.0
        %v1078 = vmax.f32 %v1062, 0.0
        %v1079 = vmax.f32 %v1063, 0.0
        %v1080 = vmax.f32 %v1064, 0.0
        %v1081 = vmax.f32 %v1065, 0.0
        %v1082 = vmax.f32 %v1066, 0.0
        %v1083 = vmax.f32 %v1067, 0.0
        %v1084 = vmax.f32 %v1068, 0.0
        %v1085 = vmax.f32 %v1069, 0.0
        %v1086 = vmax.f32 %v1070, 0.0
        %v1087 = vmax.f32 %v1071, 0.0
        %v1088 = vmax.f32 %v1072, 0.0
        %v1089 = vadd.f32 %v1073, 1e-06
        %v1090 = vadd.f32 %v1074, 1e-06
        %v1091 = vadd.f32 %v1075, 1e-06
        %v1092 = vadd.f32 %v1076, 1e-06
        %v1093 = vadd.f32 %v1077, 1e-06
        %v1094 = vadd.f32 %v1078, 1e-06
        %v1095 = vadd.f32 %v1079, 1e-06
        %v1096 = vadd.f32 %v1080, 1e-06
        %v1097 = vadd.f32 %v1081, 1e-06
        %v1098 = vadd.f32 %v1082, 1e-06
        %v1099 = vadd.f32 %v1083, 1e-06
        %v1100 = vadd.f32 %v1084, 1e-06
        %v1101 = vadd.f32 %v1085, 1e-06
        %v1102 = vadd.f32 %v1086, 1e-06
        %v1103 = vadd.f32 %v1087, 1e-06
        %v1104 = vadd.f32 %v1088, 1e-06
        %v1105 = vrsqrt.pop %v1089
        %v1106 = vmul.f32 %v1105, %v1089
        %v1107 = vmul.f32 %v1106, %v1105
        %v1108 = vmul.f32 0.5, %v1107
        %v1109 = vsub.f32 1.5, %v1108
        %v1110 = vmul.f32 %v1105, %v1109
        %vm1111 = vweird.f32 %v1089
        %vm1112 = vweird.f32 %v1105
        %vm1113 = vmor %vm1111, %vm1112
        %v1114 = vsel %vm1113, %v1105, %v1110
        %v1115 = vrsqrt.pop %v1090
        %v1116 = vmul.f32 %v1115, %v1090
        %v1117 = vmul.f32 %v1116, %v1115
        %v1118 = vmul.f32 0.5, %v1117
        %v1119 = vsub.f32 1.5, %v1118
        %v1120 = vmul.f32 %v1115, %v1119
        %vm1121 = vweird.f32 %v1090
        %vm1122 = vweird.f32 %v1115
        %vm1123 = vmor %vm1121, %vm1122
        %v1124 = vsel %vm1123, %v1115, %v1120
        %v1125 = vrsqrt.pop %v1091
        %v1126 = vmul.f32 %v1125, %v1091
        %v1127 = vmul.f32 %v1126, %v1125
        %v1128 = vmul.f32 0.5, %v1127
        %v1129 = vsub.f32 1.5, %v1128
        %v1130 = vmul.f32 %v1125, %v1129
        %vm1131 = vweird.f32 %v1091
        %vm1132 = vweird.f32 %v1125
        %vm1133 = vmor %vm1131, %vm1132
        %v1134 = vsel %vm1133, %v1125, %v1130
        %v1135 = vrsqrt.pop %v1092
        %v1136 = vmul.f32 %v1135, %v1092
        %v1137 = vmul.f32 %v1136, %v1135
        %v1138 = vmul.f32 0.5, %v1137
        %v1139 = vsub.f32 1.5, %v1138
        %v1140 = vmul.f32 %v1135, %v1139
        %vm1141 = vweird.f32 %v1092
        %vm1142 = vweird.f32 %v1135
        %vm1143 = vmor %vm1141, %vm1142
        %v1144 = vsel %vm1143, %v1135, %v1140
        %v1145 = vrsqrt.pop %v1093
        %v1146 = vmul.f32 %v1145, %v1093
        %v1147 = vmul.f32 %v1146, %v1145
        %v1148 = vmul.f32 0.5, %v1147
        %v1149 = vsub.f32 1.5, %v1148
        %v1150 = vmul.f32 %v1145, %v1149
        %vm1151 = vweird.f32 %v1093
        %vm1152 = vweird.f32 %v1145
        %vm1153 = vmor %vm1151, %vm1152
        %v1154 = vsel %vm1153, %v1145, %v1150
        %v1155 = vrsqrt.pop %v1094
        %v1156 = vmul.f32 %v1155, %v1094
        %v1157 = vmul.f32 %v1156, %v1155
        %v1158 = vmul.f32 0.5, %v1157
        %v1159 = vsub.f32 1.5, %v1158
        %v1160 = vmul.f32 %v1155, %v1159
        %vm1161 = vweird.f32 %v1094
        %vm1162 = vweird.f32 %v1155
        %vm1163 = vmor %vm1161, %vm1162
        %v1164 = vsel %vm1163, %v1155, %v1160
        %v1165 = vrsqrt.pop %v1095
        %v1166 = vmul.f32 %v1165, %v1095
        %v1167 = vmul.f32 %v1166, %v1165
        %v1168 = vmul.f32 0.5, %v1167
        %v1169 = vsub.f32 1.5, %v1168
        %v1170 = vmul.f32 %v1165, %v1169
        %vm1171 = vweird.f32 %v1095
        %vm1172 = vweird.f32 %v1165
        %vm1173 = vmor %vm1171, %vm1172
        %v1174 = vsel %vm1173, %v1165, %v1170
        %v1175 = vrsqrt.pop %v1096
        %v1176 = vmul.f32 %v1175, %v1096
        %v1177 = vmul.f32 %v1176, %v1175
        %v1178 = vmul.f32 0.5, %v1177
        %v1179 = vsub.f32 1.5, %v1178
        %v1180 = vmul.f32 %v1175, %v1179
        %vm1181 = vweird.f32 %v1096
        %vm1182 = vweird.f32 %v1175
        %vm1183 = vmor %vm1181, %vm1182
        %v1184 = vsel %vm1183, %v1175, %v1180
        %v1185 = vrsqrt.pop %v1097
        %v1186 = vmul.f32 %v1185, %v1097
        %v1187 = vmul.f32 %v1186, %v1185
        %v1188 = vmul.f32 0.5, %v1187
        %v1189 = vsub.f32 1.5, %v1188
        %v1190 = vmul.f32 %v1185, %v1189
        %vm1191 = vweird.f32 %v1097
        %vm1192 = vweird.f32 %v1185
        %vm1193 = vmor %vm1191, %vm1192
        %v1194 = vsel %vm1193, %v1185, %v1190
        %v1195 = vrsqrt.pop %v1098
        %v1196 = vmul.f32 %v1195, %v1098
        %v1197 = vmul.f32 %v1196, %v1195
        %v1198 = vmul.f32 0.5, %v1197
        %v1199 = vsub.f32 1.5, %v1198
        %v1200 = vmul.f32 %v1195, %v1199
        %vm1201 = vweird.f32 %v1098
        %vm1202 = vweird.f32 %v1195
        %vm1203 = vmor %vm1201, %vm1202
        %v1204 = vsel %vm1203, %v1195, %v1200
        %v1205 = vrsqrt.pop %v1099
        %v1206 = vmul.f32 %v1205, %v1099
        %v1207 = vmul.f32 %v1206, %v1205
        %v1208 = vmul.f32 0.5, %v1207
        %v1209 = vsub.f32 1.5, %v1208
        %v1210 = vmul.f32 %v1205, %v1209
        %vm1211 = vweird.f32 %v1099
        %vm1212 = vweird.f32 %v1205
        %vm1213 = vmor %vm1211, %vm1212
        %v1214 = vsel %vm1213, %v1205, %v1210
        %v1215 = vrsqrt.pop %v1100
        %v1216 = vmul.f32 %v1215, %v1100
        %v1217 = vmul.f32 %v1216, %v1215
        %v1218 = vmul.f32 0.5, %v1217
        %v1219 = vsub.f32 1.5, %v1218
        %v1220 = vmul.f32 %v1215, %v1219
        %vm1221 = vweird.f32 %v1100
        %vm1222 = vweird.f32 %v1215
        %vm1223 = vmor %vm1221, %vm1222
        %v1224 = vsel %vm1223, %v1215, %v1220
        %v1225 = vrsqrt.pop %v1101
        %v1226 = vmul.f32 %v1225, %v1101
        %v1227 = vmul.f32 %v1226, %v1225
        %v1228 = vmul.f32 0.5, %v1227
        %v1229 = vsub.f32 1.5, %v1228
        %v1230 = vmul.f32 %v1225, %v1229
        %vm1231 = vweird.f32 %v1101
        %vm1232 = vweird.f32 %v1225
        %vm1233 = vmor %vm1231, %vm1232
        %v1234 = vsel %vm1233, %v1225, %v1230
        %v1235 = vrsqrt.pop %v1102
        %v1236 = vmul.f32 %v1235, %v1102
        %v1237 = vmul.f32 %v1236, %v1235
        %v1238 = vmul.f32 0.5, %v1237
        %v1239 = vsub.f32 1.5, %v1238
        %v1240 = vmul.f32 %v1235, %v1239
        %vm1241 = vweird.f32 %v1102
        %vm1242 = vweird.f32 %v1235
        %vm1243 = vmor %vm1241, %vm1242
        %v1244 = vsel %vm1243, %v1235, %v1240
        %v1245 = vrsqrt.pop %v1103
        %v1246 = vmul.f32 %v1245, %v1103
        %v1247 = vmul.f32 %v1246, %v1245
        %v1248 = vmul.f32 0.5, %v1247
        %v1249 = vsub.f32 1.5, %v1248
        %v1250 = vmul.f32 %v1245, %v1249
        %vm1251 = vweird.f32 %v1103
        %vm1252 = vweird.f32 %v1245
        %vm1253 = vmor %vm1251, %vm1252
        %v1254 = vsel %vm1253, %v1245, %v1250
        %v1255 = vrsqrt.pop %v1104
        %v1256 = vmul.f32 %v1255, %v1104
        %v1257 = vmul.f32 %v1256, %v1255
        %v1258 = vmul.f32 0.5, %v1257
        %v1259 = vsub.f32 1.5, %v1258
        %v1260 = vmul.f32 %v1255, %v1259
        %vm1261 = vweird.f32 %v1104
        %vm1262 = vweird.f32 %v1255
        %vm1263 = vmor %vm1261, %vm1262
        %v1264 = vsel %vm1263, %v1255, %v1260
        %v1265 = vmul.f32 %v945, %v1114
        %v1266 = vmul.f32 %v946, %v1124
        %v1267 = vmul.f32 %v947, %v1134
        %v1268 = vmul.f32 %v948, %v1144
        %v1269 = vmul.f32 %v949, %v1154
        %v1270 = vmul.f32 %v950, %v1164
        %v1271 = vmul.f32 %v951, %v1174
        %v1272 = vmul.f32 %v952, %v1184
        %v1273 = vmul.f32 %v953, %v1194
        %v1274 = vmul.f32 %v954, %v1204
        %v1275 = vmul.f32 %v955, %v1214
        %v1276 = vmul.f32 %v956, %v1224
        %v1277 = vmul.f32 %v957, %v1234
        %v1278 = vmul.f32 %v958, %v1244
        %v1279 = vmul.f32 %v959, %v1254
        %v1280 = vmul.f32 %v960, %v1264
        %v1281 = vld [vmem:[%s3] sm:$0x1]
        %v1283 = vperm.slane %v1281, 0
        %v1285 = vmul.f32 %v1265, %v1283
        %v1286 = vmul.f32 %v1266, %v1283
        %v1287 = vmul.f32 %v1267, %v1283
        %v1288 = vmul.f32 %v1268, %v1283
        %v1289 = vmul.f32 %v1269, %v1283
        %v1290 = vmul.f32 %v1270, %v1283
        %v1291 = vmul.f32 %v1271, %v1283
        %v1292 = vmul.f32 %v1272, %v1283
        %v1293 = vmul.f32 %v1273, %v1283
        %v1294 = vmul.f32 %v1274, %v1283
        %v1295 = vmul.f32 %v1275, %v1283
        %v1296 = vmul.f32 %v1276, %v1283
        %v1297 = vmul.f32 %v1277, %v1283
        %v1298 = vmul.f32 %v1278, %v1283
        %v1299 = vmul.f32 %v1279, %v1283
        %v1300 = vmul.f32 %v1280, %v1283
        %v1301 = vld [vmem:[%s4] sm:$0x1]
        %v1303 = vperm.slane %v1301, 0
        %v1305 = vadd.f32 %v1285, %v1303
        %v1306 = vadd.f32 %v1286, %v1303
        %v1307 = vadd.f32 %v1287, %v1303
        %v1308 = vadd.f32 %v1288, %v1303
        %v1309 = vadd.f32 %v1289, %v1303
        %v1310 = vadd.f32 %v1290, %v1303
        %v1311 = vadd.f32 %v1291, %v1303
        %v1312 = vadd.f32 %v1292, %v1303
        %v1313 = vadd.f32 %v1293, %v1303
        %v1314 = vadd.f32 %v1294, %v1303
        %v1315 = vadd.f32 %v1295, %v1303
        %v1316 = vadd.f32 %v1296, %v1303
        %v1317 = vadd.f32 %v1297, %v1303
        %v1318 = vadd.f32 %v1298, %v1303
        %v1319 = vadd.f32 %v1299, %v1303
        %v1320 = vadd.f32 %v1300, %v1303
        %v1321 = vpack.c.bf16 %v1306, %v1305
        %v1322 = vpack.c.bf16 %v1308, %v1307
        %v1323 = vpack.c.bf16 %v1310, %v1309
        %v1324 = vpack.c.bf16 %v1312, %v1311
        %v1325 = vpack.c.bf16 %v1314, %v1313
        %v1326 = vpack.c.bf16 %v1316, %v1315
        %v1327 = vpack.c.bf16 %v1318, %v1317
        %v1328 = vpack.c.bf16 %v1320, %v1319
        %v1329 = vld [vmem:[%s5] sm:$0xf]
        %v1330 = vld [vmem:[%s5 + $0x4] sm:$0xf]
        %v1331 = vld [vmem:[%s5 + $0x8] sm:$0xf]
        %v1332 = vld [vmem:[%s5 + $0xc] sm:$0xf]
        %v1333 = vld [vmem:[%s5 + $0x10] sm:$0xf]
        %v1334 = vld [vmem:[%s5 + $0x14] sm:$0xf]
        %v1335 = vld [vmem:[%s5 + $0x18] sm:$0xf]
        %v1336 = vld [vmem:[%s5 + $0x1c] sm:$0xf]
        %v1337 = vld [vmem:[%s5 + $0x20] sm:$0xf]
        %v1338 = vld [vmem:[%s5 + $0x24] sm:$0xf]
        %v1339 = vld [vmem:[%s5 + $0x28] sm:$0xf]
        %v1340 = vld [vmem:[%s5 + $0x2c] sm:$0xf]
        %v1341 = vld [vmem:[%s5 + $0x30] sm:$0xf]
        %v1342 = vld [vmem:[%s5 + $0x34] sm:$0xf]
        %v1343 = vld [vmem:[%s5 + $0x38] sm:$0xf]
        %v1344 = vld [vmem:[%s5 + $0x3c] sm:$0xf]
        %v1345 = vld [vmem:[%s6] sm:$0x1]
        %v1347 = vperm.slane %v1345, 0
        %v1365 = vunpack.c.l.b16 %v1329
        %v1366 = vunpack.c.l.b16 %v1330
        %v1367 = vunpack.c.l.b16 %v1331
        %v1368 = vunpack.c.l.b16 %v1332
        %v1369 = vunpack.c.l.b16 %v1333
        %v1370 = vunpack.c.l.b16 %v1334
        %v1371 = vunpack.c.l.b16 %v1335
        %v1372 = vunpack.c.l.b16 %v1336
        %v1373 = vunpack.c.l.b16 %v1337
        %v1374 = vunpack.c.l.b16 %v1338
        %v1375 = vunpack.c.l.b16 %v1339
        %v1376 = vunpack.c.l.b16 %v1340
        %v1377 = vunpack.c.l.b16 %v1341
        %v1378 = vunpack.c.l.b16 %v1342
        %v1379 = vunpack.c.l.b16 %v1343
        %v1380 = vunpack.c.l.b16 %v1344
        %v1381 = vpack.c.b16 %v1366, %v1365
        %v1382 = vpack.c.b16 %v1368, %v1367
        %v1383 = vpack.c.b16 %v1370, %v1369
        %v1384 = vpack.c.b16 %v1372, %v1371
        %v1385 = vpack.c.b16 %v1374, %v1373
        %v1386 = vpack.c.b16 %v1376, %v1375
        %v1387 = vpack.c.b16 %v1378, %v1377
        %v1388 = vpack.c.b16 %v1380, %v1379
        %1397 = vmatpush.bf16.msra.mxu0 %v1388
        %1398 = vmatpush.bf16.msra.mxu0 %v1387
        %1399 = vmatpush.bf16.msra.mxu0 %v1386
        %1400 = vmatpush.bf16.msra.mxu0 %v1385
        %1401 = vmatpush.bf16.msra.mxu0 %v1384
        %1402 = vmatpush.bf16.msra.mxu0 %v1383
        %1403 = vmatpush.bf16.msra.mxu0 %v1382
        %1404 = vmatpush.bf16.msra.mxu0 %v1381
        %1405 = vmatmul.bf16.gmra.mxu0 %v1321
        %v1406 = vpop.f32.mrf.mxu0
        %v1407 = vadd.f32 %v1347, %v1406
        %v1408 = vpop.f32.mrf.mxu0
        %v1409 = vadd.f32 %v1347, %v1408
        %1410 = vmatmul.bf16.gmra.mxu0 %v1322
        %v1411 = vpop.f32.mrf.mxu0
        %v1412 = vadd.f32 %v1347, %v1411
        %v1413 = vpop.f32.mrf.mxu0
        %v1414 = vadd.f32 %v1347, %v1413
        %1415 = vmatmul.bf16.gmra.mxu0 %v1323
        %v1416 = vpop.f32.mrf.mxu0
        %v1417 = vadd.f32 %v1347, %v1416
        %v1418 = vpop.f32.mrf.mxu0
        %v1419 = vadd.f32 %v1347, %v1418
        %1420 = vmatmul.bf16.gmra.mxu0 %v1324
        %v1421 = vpop.f32.mrf.mxu0
        %v1422 = vadd.f32 %v1347, %v1421
        %v1423 = vpop.f32.mrf.mxu0
        %v1424 = vadd.f32 %v1347, %v1423
        %1425 = vmatmul.bf16.gmra.mxu0 %v1325
        %v1426 = vpop.f32.mrf.mxu0
        %v1427 = vadd.f32 %v1347, %v1426
        %v1428 = vpop.f32.mrf.mxu0
        %v1429 = vadd.f32 %v1347, %v1428
        %1430 = vmatmul.bf16.gmra.mxu0 %v1326
        %v1431 = vpop.f32.mrf.mxu0
        %v1432 = vadd.f32 %v1347, %v1431
        %v1433 = vpop.f32.mrf.mxu0
        %v1434 = vadd.f32 %v1347, %v1433
        %1435 = vmatmul.bf16.gmra.mxu0 %v1327
        %v1436 = vpop.f32.mrf.mxu0
        %v1437 = vadd.f32 %v1347, %v1436
        %v1438 = vpop.f32.mrf.mxu0
        %v1439 = vadd.f32 %v1347, %v1438
        %1440 = vmatmul.bf16.gmra.mxu0 %v1328
        %v1441 = vpop.f32.mrf.mxu0
        %v1442 = vadd.f32 %v1347, %v1441
        %v1443 = vpop.f32.mrf.mxu0
        %v1444 = vadd.f32 %v1347, %v1443
        %1445 = vdwg.mxu0
        %v1446 = vmul.f32 %v1407, 0.5
        %v1447 = vmul.f32 %v1409, 0.5
        %v1448 = vmul.f32 %v1412, 0.5
        %v1449 = vmul.f32 %v1414, 0.5
        %v1450 = vmul.f32 %v1417, 0.5
        %v1451 = vmul.f32 %v1419, 0.5
        %v1452 = vmul.f32 %v1422, 0.5
        %v1453 = vmul.f32 %v1424, 0.5
        %v1454 = vmul.f32 %v1427, 0.5
        %v1455 = vmul.f32 %v1429, 0.5
        %v1456 = vmul.f32 %v1432, 0.5
        %v1457 = vmul.f32 %v1434, 0.5
        %v1458 = vmul.f32 %v1437, 0.5
        %v1459 = vmul.f32 %v1439, 0.5
        %v1460 = vmul.f32 %v1442, 0.5
        %v1461 = vmul.f32 %v1444, 0.5
        %v1462 = vmul.f32 %v1407, %v1407
        %v1463 = vmul.f32 %v1409, %v1409
        %v1464 = vmul.f32 %v1412, %v1412
        %v1465 = vmul.f32 %v1414, %v1414
        %v1466 = vmul.f32 %v1417, %v1417
        %v1467 = vmul.f32 %v1419, %v1419
        %v1468 = vmul.f32 %v1422, %v1422
        %v1469 = vmul.f32 %v1424, %v1424
        %v1470 = vmul.f32 %v1427, %v1427
        %v1471 = vmul.f32 %v1429, %v1429
        %v1472 = vmul.f32 %v1432, %v1432
        %v1473 = vmul.f32 %v1434, %v1434
        %v1474 = vmul.f32 %v1437, %v1437
        %v1475 = vmul.f32 %v1439, %v1439
        %v1476 = vmul.f32 %v1442, %v1442
        %v1477 = vmul.f32 %v1444, %v1444
        %v1478 = vmul.f32 %v1462, %v1407
        %v1479 = vmul.f32 %v1463, %v1409
        %v1480 = vmul.f32 %v1464, %v1412
        %v1481 = vmul.f32 %v1465, %v1414
        %v1482 = vmul.f32 %v1466, %v1417
        %v1483 = vmul.f32 %v1467, %v1419
        %v1484 = vmul.f32 %v1468, %v1422
        %v1485 = vmul.f32 %v1469, %v1424
        %v1486 = vmul.f32 %v1470, %v1427
        %v1487 = vmul.f32 %v1471, %v1429
        %v1488 = vmul.f32 %v1472, %v1432
        %v1489 = vmul.f32 %v1473, %v1434
        %v1490 = vmul.f32 %v1474, %v1437
        %v1491 = vmul.f32 %v1475, %v1439
        %v1492 = vmul.f32 %v1476, %v1442
        %v1493 = vmul.f32 %v1477, %v1444
        %v1494 = vmul.f32 %v1478, 0.044715
        %v1495 = vmul.f32 %v1479, 0.044715
        %v1496 = vmul.f32 %v1480, 0.044715
        %v1497 = vmul.f32 %v1481, 0.044715
        %v1498 = vmul.f32 %v1482, 0.044715
        %v1499 = vmul.f32 %v1483, 0.044715
        %v1500 = vmul.f32 %v1484, 0.044715
        %v1501 = vmul.f32 %v1485, 0.044715
        %v1502 = vmul.f32 %v1486, 0.044715
        %v1503 = vmul.f32 %v1487, 0.044715
        %v1504 = vmul.f32 %v1488, 0.044715
        %v1505 = vmul.f32 %v1489, 0.044715
        %v1506 = vmul.f32 %v1490, 0.044715
        %v1507 = vmul.f32 %v1491, 0.044715
        %v1508 = vmul.f32 %v1492, 0.044715
        %v1509 = vmul.f32 %v1493, 0.044715
        %v1510 = vadd.f32 %v1407, %v1494
        %v1511 = vadd.f32 %v1409, %v1495
        %v1512 = vadd.f32 %v1412, %v1496
        %v1513 = vadd.f32 %v1414, %v1497
        %v1514 = vadd.f32 %v1417, %v1498
        %v1515 = vadd.f32 %v1419, %v1499
        %v1516 = vadd.f32 %v1422, %v1500
        %v1517 = vadd.f32 %v1424, %v1501
        %v1518 = vadd.f32 %v1427, %v1502
        %v1519 = vadd.f32 %v1429, %v1503
        %v1520 = vadd.f32 %v1432, %v1504
        %v1521 = vadd.f32 %v1434, %v1505
        %v1522 = vadd.f32 %v1437, %v1506
        %v1523 = vadd.f32 %v1439, %v1507
        %v1524 = vadd.f32 %v1442, %v1508
        %v1525 = vadd.f32 %v1444, %v1509
        %v1526 = vmul.f32 %v1510, 0.7978846
        %v1527 = vmul.f32 %v1511, 0.7978846
        %v1528 = vmul.f32 %v1512, 0.7978846
        %v1529 = vmul.f32 %v1513, 0.7978846
        %v1530 = vmul.f32 %v1514, 0.7978846
        %v1531 = vmul.f32 %v1515, 0.7978846
        %v1532 = vmul.f32 %v1516, 0.7978846
        %v1533 = vmul.f32 %v1517, 0.7978846
        %v1534 = vmul.f32 %v1518, 0.7978846
        %v1535 = vmul.f32 %v1519, 0.7978846
        %v1536 = vmul.f32 %v1520, 0.7978846
        %v1537 = vmul.f32 %v1521, 0.7978846
        %v1538 = vmul.f32 %v1522, 0.7978846
        %v1539 = vmul.f32 %v1523, 0.7978846
        %v1540 = vmul.f32 %v1524, 0.7978846
        %v1541 = vmul.f32 %v1525, 0.7978846
        %v1542 = vtanh.pop %v1526
        %v1543 = vtanh.pop %v1527
        %v1544 = vtanh.pop %v1528
        %v1545 = vtanh.pop %v1529
        %v1546 = vtanh.pop %v1530
        %v1547 = vtanh.pop %v1531
        %v1548 = vtanh.pop %v1532
        %v1549 = vtanh.pop %v1533
        %v1550 = vtanh.pop %v1534
        %v1551 = vtanh.pop %v1535
        %v1552 = vtanh.pop %v1536
        %v1553 = vtanh.pop %v1537
        %v1554 = vtanh.pop %v1538
        %v1555 = vtanh.pop %v1539
        %v1556 = vtanh.pop %v1540
        %v1557 = vtanh.pop %v1541
        %v1558 = vadd.f32 %v1542, 1.0
        %v1559 = vadd.f32 %v1543, 1.0
        %v1560 = vadd.f32 %v1544, 1.0
        %v1561 = vadd.f32 %v1545, 1.0
        %v1562 = vadd.f32 %v1546, 1.0
        %v1563 = vadd.f32 %v1547, 1.0
        %v1564 = vadd.f32 %v1548, 1.0
        %v1565 = vadd.f32 %v1549, 1.0
        %v1566 = vadd.f32 %v1550, 1.0
        %v1567 = vadd.f32 %v1551, 1.0
        %v1568 = vadd.f32 %v1552, 1.0
        %v1569 = vadd.f32 %v1553, 1.0
        %v1570 = vadd.f32 %v1554, 1.0
        %v1571 = vadd.f32 %v1555, 1.0
        %v1572 = vadd.f32 %v1556, 1.0
        %v1573 = vadd.f32 %v1557, 1.0
        %v1574 = vmul.f32 %v1446, %v1558
        %v1575 = vmul.f32 %v1447, %v1559
        %v1576 = vmul.f32 %v1448, %v1560
        %v1577 = vmul.f32 %v1449, %v1561
        %v1578 = vmul.f32 %v1450, %v1562
        %v1579 = vmul.f32 %v1451, %v1563
        %v1580 = vmul.f32 %v1452, %v1564
        %v1581 = vmul.f32 %v1453, %v1565
        %v1582 = vmul.f32 %v1454, %v1566
        %v1583 = vmul.f32 %v1455, %v1567
        %v1584 = vmul.f32 %v1456, %v1568
        %v1585 = vmul.f32 %v1457, %v1569
        %v1586 = vmul.f32 %v1458, %v1570
        %v1587 = vmul.f32 %v1459, %v1571
        %v1588 = vmul.f32 %v1460, %v1572
        %v1589 = vmul.f32 %v1461, %v1573
        %v1590 = vpack.c.bf16 %v1575, %v1574
        %v1591 = vpack.c.bf16 %v1577, %v1576
        %v1592 = vpack.c.bf16 %v1579, %v1578
        %v1593 = vpack.c.bf16 %v1581, %v1580
        %v1594 = vpack.c.bf16 %v1583, %v1582
        %v1595 = vpack.c.bf16 %v1585, %v1584
        %v1596 = vpack.c.bf16 %v1587, %v1586
        %v1597 = vpack.c.bf16 %v1589, %v1588
        %v1598 = vld [vmem:[%s7] sm:$0xf]
        %v1599 = vld [vmem:[%s7 + $0x4] sm:$0xf]
        %v1600 = vld [vmem:[%s7 + $0x8] sm:$0xf]
        %v1601 = vld [vmem:[%s7 + $0xc] sm:$0xf]
        %v1602 = vld [vmem:[%s7 + $0x10] sm:$0xf]
        %v1603 = vld [vmem:[%s7 + $0x14] sm:$0xf]
        %v1604 = vld [vmem:[%s7 + $0x18] sm:$0xf]
        %v1605 = vld [vmem:[%s7 + $0x1c] sm:$0xf]
        %v1606 = vld [vmem:[%s7 + $0x20] sm:$0xf]
        %v1607 = vld [vmem:[%s7 + $0x24] sm:$0xf]
        %v1608 = vld [vmem:[%s7 + $0x28] sm:$0xf]
        %v1609 = vld [vmem:[%s7 + $0x2c] sm:$0xf]
        %v1610 = vld [vmem:[%s7 + $0x30] sm:$0xf]
        %v1611 = vld [vmem:[%s7 + $0x34] sm:$0xf]
        %v1612 = vld [vmem:[%s7 + $0x38] sm:$0xf]
        %v1613 = vld [vmem:[%s7 + $0x3c] sm:$0xf]
        %v1614 = vld [vmem:[%s8] sm:$0x1]
        %v1616 = vperm.slane %v1614, 0
        %v1634 = vunpack.c.l.b16 %v1598
        %v1635 = vunpack.c.l.b16 %v1599
        %v1636 = vunpack.c.l.b16 %v1600
        %v1637 = vunpack.c.l.b16 %v1601
        %v1638 = vunpack.c.l.b16 %v1602
        %v1639 = vunpack.c.l.b16 %v1603
        %v1640 = vunpack.c.l.b16 %v1604
        %v1641 = vunpack.c.l.b16 %v1605
        %v1642 = vunpack.c.l.b16 %v1606
        %v1643 = vunpack.c.l.b16 %v1607
        %v1644 = vunpack.c.l.b16 %v1608
        %v1645 = vunpack.c.l.b16 %v1609
        %v1646 = vunpack.c.l.b16 %v1610
        %v1647 = vunpack.c.l.b16 %v1611
        %v1648 = vunpack.c.l.b16 %v1612
        %v1649 = vunpack.c.l.b16 %v1613
        %v1650 = vpack.c.b16 %v1635, %v1634
        %v1651 = vpack.c.b16 %v1637, %v1636
        %v1652 = vpack.c.b16 %v1639, %v1638
        %v1653 = vpack.c.b16 %v1641, %v1640
        %v1654 = vpack.c.b16 %v1643, %v1642
        %v1655 = vpack.c.b16 %v1645, %v1644
        %v1656 = vpack.c.b16 %v1647, %v1646
        %v1657 = vpack.c.b16 %v1649, %v1648
        %1666 = vmatpush.bf16.msra.mxu0 %v1657
        %1667 = vmatpush.bf16.msra.mxu0 %v1656
        %1668 = vmatpush.bf16.msra.mxu0 %v1655
        %1669 = vmatpush.bf16.msra.mxu0 %v1654
        %1670 = vmatpush.bf16.msra.mxu0 %v1653
        %1671 = vmatpush.bf16.msra.mxu0 %v1652
        %1672 = vmatpush.bf16.msra.mxu0 %v1651
        %1673 = vmatpush.bf16.msra.mxu0 %v1650
        %1674 = vmatmul.bf16.gmra.mxu0 %v1590
        %v1675 = vpop.f32.mrf.mxu0
        %v1676 = vadd.f32 %v1616, %v1675
        %v1677 = vpop.f32.mrf.mxu0
        %v1678 = vadd.f32 %v1616, %v1677
        %1679 = vmatmul.bf16.gmra.mxu0 %v1591
        %v1680 = vpop.f32.mrf.mxu0
        %v1681 = vadd.f32 %v1616, %v1680
        %v1682 = vpop.f32.mrf.mxu0
        %v1683 = vadd.f32 %v1616, %v1682
        %1684 = vmatmul.bf16.gmra.mxu0 %v1592
        %v1685 = vpop.f32.mrf.mxu0
        %v1686 = vadd.f32 %v1616, %v1685
        %v1687 = vpop.f32.mrf.mxu0
        %v1688 = vadd.f32 %v1616, %v1687
        %1689 = vmatmul.bf16.gmra.mxu0 %v1593
        %v1690 = vpop.f32.mrf.mxu0
        %v1691 = vadd.f32 %v1616, %v1690
        %v1692 = vpop.f32.mrf.mxu0
        %v1693 = vadd.f32 %v1616, %v1692
        %1694 = vmatmul.bf16.gmra.mxu0 %v1594
        %v1695 = vpop.f32.mrf.mxu0
        %v1696 = vadd.f32 %v1616, %v1695
        %v1697 = vpop.f32.mrf.mxu0
        %v1698 = vadd.f32 %v1616, %v1697
        %1699 = vmatmul.bf16.gmra.mxu0 %v1595
        %v1700 = vpop.f32.mrf.mxu0
        %v1701 = vadd.f32 %v1616, %v1700
        %v1702 = vpop.f32.mrf.mxu0
        %v1703 = vadd.f32 %v1616, %v1702
        %1704 = vmatmul.bf16.gmra.mxu0 %v1596
        %v1705 = vpop.f32.mrf.mxu0
        %v1706 = vadd.f32 %v1616, %v1705
        %v1707 = vpop.f32.mrf.mxu0
        %v1708 = vadd.f32 %v1616, %v1707
        %1709 = vmatmul.bf16.gmra.mxu0 %v1597
        %v1710 = vpop.f32.mrf.mxu0
        %v1711 = vadd.f32 %v1616, %v1710
        %v1712 = vpop.f32.mrf.mxu0
        %v1713 = vadd.f32 %v1616, %v1712
        %1714 = vdwg.mxu0
        %v1715 = vld [vmem:[%s9] sm:$0x1]
        %v1717 = vperm.slane %v1715, 0
        %v1719 = vmul.f32 %v1676, %v1717
        %v1720 = vmul.f32 %v1678, %v1717
        %v1721 = vmul.f32 %v1681, %v1717
        %v1722 = vmul.f32 %v1683, %v1717
        %v1723 = vmul.f32 %v1686, %v1717
        %v1724 = vmul.f32 %v1688, %v1717
        %v1725 = vmul.f32 %v1691, %v1717
        %v1726 = vmul.f32 %v1693, %v1717
        %v1727 = vmul.f32 %v1696, %v1717
        %v1728 = vmul.f32 %v1698, %v1717
        %v1729 = vmul.f32 %v1701, %v1717
        %v1730 = vmul.f32 %v1703, %v1717
        %v1731 = vmul.f32 %v1706, %v1717
        %v1732 = vmul.f32 %v1708, %v1717
        %v1733 = vmul.f32 %v1711, %v1717
        %v1734 = vmul.f32 %v1713, %v1717
        %v1735 = vadd.f32 %v549, %v1719
        %v1736 = vadd.f32 %v550, %v1720
        %v1737 = vadd.f32 %v551, %v1721
        %v1738 = vadd.f32 %v552, %v1722
        %v1739 = vadd.f32 %v553, %v1723
        %v1740 = vadd.f32 %v554, %v1724
        %v1741 = vadd.f32 %v555, %v1725
        %v1742 = vadd.f32 %v556, %v1726
        %v1743 = vadd.f32 %v557, %v1727
        %v1744 = vadd.f32 %v558, %v1728
        %v1745 = vadd.f32 %v559, %v1729
        %v1746 = vadd.f32 %v560, %v1730
        %v1747 = vadd.f32 %v561, %v1731
        %v1748 = vadd.f32 %v562, %v1732
        %v1749 = vadd.f32 %v563, %v1733
        %v1750 = vadd.f32 %v564, %v1734
        %1751 = vst [vmem:[%s325] sm:$0xff] %v1735
        %1752 = vst [vmem:[%s325 + $0x8] sm:$0xff] %v1736
        %1753 = vst [vmem:[%s325 + $0x10] sm:$0xff] %v1737
        %1754 = vst [vmem:[%s325 + $0x18] sm:$0xff] %v1738
        %1755 = vst [vmem:[%s325 + $0x20] sm:$0xff] %v1739
        %1756 = vst [vmem:[%s325 + $0x28] sm:$0xff] %v1740
        %1757 = vst [vmem:[%s325 + $0x30] sm:$0xff] %v1741
        %1758 = vst [vmem:[%s325 + $0x38] sm:$0xff] %v1742
        %1759 = vst [vmem:[%s325 + $0x40] sm:$0xff] %v1743
        %1760 = vst [vmem:[%s325 + $0x48] sm:$0xff] %v1744
        %1761 = vst [vmem:[%s325 + $0x50] sm:$0xff] %v1745
        %1762 = vst [vmem:[%s325 + $0x58] sm:$0xff] %v1746
        %1763 = vst [vmem:[%s325 + $0x60] sm:$0xff] %v1747
        %1764 = vst [vmem:[%s325 + $0x68] sm:$0xff] %v1748
        %1765 = vst [vmem:[%s325 + $0x70] sm:$0xff] %v1749
        %1766 = vst [vmem:[%s325 + $0x78] sm:$0xff] %v1750
        %s1767 = sand.u32 %s235, 1
        %s1768 = scalar_lea.sflag [#allocation5], %s1767
        %s1769 = sand.u32 %s235, 1
        %s1770 = smul.addr %s1769, 128
        %s1771 = scalar_lea.vmem [#allocation4], %s1770
        // Predicated region
        $region109: #{tpu_custom_call.1} parent=55 // pred_check
          %p1772 = pneg %p245
        $region110: #{tpu_custom_call.1} parent=55 // pred_check_branch
          %1774 = sbr.rel (%p1772) target = $region112
        $region111: #{tpu_custom_call.1} parent=55 // pred_region
          %s1775 = smul.u32 16, %s29
          %1777 = vsyncadd %s1768, 0
          %s1778 = smul.addr %s28, 32
          %s1779 = sadd.s32 %s1775, %s1778
          %s1780 = smul.addr %s1779, 8
          %s1781 = scalar_lea.hbm %s10, %s1780
          %s1782 = sshll.u32 %s1771, 4
          %s1783 = int_to_ptr.vmem [resolvable:$true] %s1782
          %s1784 = sshll.u32 %s1781, 4
          %s1785 = int_to_ptr.hbm [resolvable:$true] %s1784
          %1790 = dma.vmem_to_hbm [thread:$0]  %s1783, 2048, %s1785, %s1768, 128, 128, 8
        $region112: #{tpu_custom_call.1} parent=55 // pred_fallthru
          _
      $region56: #{tpu_custom_call.1} parent=5 // pred_fallthru
        _
      %p1791 = scmp.le.s32.totalorder 2, %s19
      // Predicated region
      $region113: #{tpu_custom_call.1} parent=5 // pred_check
        %p1792 = pneg %p1791
      $region114: #{tpu_custom_call.1} parent=5 // pred_check_branch
        %1794 = sbr.rel (%p1792) target = $region116
      $region115: #{tpu_custom_call.1} parent=5 // pred_region
        %s1795 = ssub.s32 %s19, 2
        // Predicated region
        $region117: #{tpu_custom_call.1} parent=115 // pred_check
          %p1796 = pneg %p251
        $region118: #{tpu_custom_call.1} parent=115 // pred_check_branch
          %1798 = sbr.rel (%p1796) target = $region120
        $region119: #{tpu_custom_call.1} parent=115 // pred_region
          %s1799 = sand.u32 %s236, 1
          %s1800 = scalar_lea.sflag [#allocation5], %s1799
          %s1801 = sand.u32 %s236, 1
          %s1802 = smul.addr %s1801, 128
          %s1803 = scalar_lea.vmem [#allocation4], %s1802
          %1805 = dma.done %s1800, 2048
        $region120: #{tpu_custom_call.1} parent=115 // pred_fallthru
          _
      $region116: #{tpu_custom_call.1} parent=5 // pred_fallthru
        _
    $region6: #{tpu_custom_call.1} parent=1 // loop_footer
      %s23 = sadd.s32 1, %s19
    $region7: #{tpu_custom_call.1} parent=1 // loop_footer_branch
      %18 = sbr.rel target = $region3
    $region8: #{tpu_custom_call.1} parent=1 // loop_exit
      _
    %1806 = vsyncpa [#allocation5], 1
    %s1807 = scalar_lea.sflag [#allocation5], 1
    %1808 = vsyncpa %s1807, 1
  %1809 = vsyncmov [#allocation3]
  %s1810 = vpop.sfrf %1809
  %p1811 = scmp.eq.s32.totalorder %s1810, 0
  %p1812 = pneg %p1811
  %1814 = shalt.err (%p1812)
  %s1815 = scalar_lea.sflag [#allocation3], 1
  %1816 = vsyncmov %s1815
  %s1817 = vpop.sfrf %1816
  %p1818 = scmp.eq.s32.totalorder %s1817, 0
  %p1819 = pneg %p1818
  %1821 = shalt.err (%p1819)

</llo_original>
